<compile_context>
chip_gen: v5e
topology: v5e:2x2
jax: 0.10.0
libtpu: 0.0.40
codegen_flags: <defaults>
</compile_context>

<pallas_src>
import jax
import jax.numpy as jnp
from jax.experimental import pallas as pl
from jax.experimental.pallas import tpu as pltpu


def _round_up(x: int, m: int) -> int:
    return ((x + m - 1) // m) * m


def _round_down(x: int, m: int) -> int:
    return (x // m) * m


def _standardize_kernel(x_ref, mean_ref, std_ref, o_ref):
    # Elementwise hot path: (x - mean) * (1/std), broadcast over rows.
    x = x_ref[...]
    m = mean_ref[...]             # (1, F) -> broadcasts over the node-tile rows
    inv = 1.0 / std_ref[...]      # exact divide on a single (1, F) row, hidden under DMA
    o_ref[...] = ((x - m) * inv).astype(o_ref.dtype)


def standardize(x: jax.Array, mean: jax.Array, std: jax.Array,
                *, target_tile_bytes: int = 4 << 20,
                min_pallas_elements: int = 64 * 1024) -> jax.Array:
    """Apply (x - mean) / std over node features.

    x:    [N, F] node feature matrix
    mean: [F]    per-feature mean
    std:  [F]    per-feature std (std == 0 yields inf/nan, same as PyTorch)
    """
    N, F = x.shape
    assert mean.shape == (F,) and std.shape == (F,)

    mean2 = mean.astype(x.dtype).reshape(1, F)
    std2 = std.astype(x.dtype).reshape(1, F)

    # Tiny / degenerate inputs: a fused XLA elementwise op is strictly faster
    # than a pallas_call launch + pipeline warm-up/drain.
    if N == 0 or x.size < min_pallas_elements:
        return ((x - mean2) / std2).astype(x.dtype)

    itemsize = jnp.dtype(x.dtype).itemsize
    sublane = max(8, 32 // itemsize)          # 8 for f32, 16 for bf16, 32 for 1B dtypes
    n_rounded = _round_up(N, sublane)

    # Byte-based tile sizing: ~target_tile_bytes of x per grid step, rounded to
    # a sublane multiple and clamped to the (rounded-up) array extent.
    rows_for_target = _round_down(max(target_tile_bytes // (itemsize * F), sublane), sublane)
    tile_rows = max(sublane, min(rows_for_target, n_rounded))
    n_steps = pl.cdiv(N, tile_rows)

    # Short grids: re-tile to an even number of roughly equal steps so the two
    # TensorCores on v7x get balanced work (no-op effect on v5e/v6e).
    if 2 <= n_steps <= 7:
        n_bal = _round_up(n_steps, 2)
        tile_rows = max(sublane, min(n_rounded, _round_up(pl.cdiv(N, n_bal), sublane)))
        n_steps = pl.cdiv(N, tile_rows)

    # Explicit scoped-VMEM budget: 2 double-buffered tiles (x in + out) plus the
    # resident (1, F) mean/std rows, with slack. Keeps enlarged tiles safe under
    # v5e's 16 MiB default and documents the accounting.
    tile_bytes = tile_rows * F * itemsize
    row_bytes = F * itemsize
    vmem_limit = int(4 * tile_bytes + 4 * row_bytes + (2 << 20))

    # NOTE: for very large F (sublane * F * itemsize > target_tile_bytes) a
    # second grid axis over F would be needed; CGCNN feature widths (<~512)
    # never get close, so a single row-axis grid is kept.

    # TODO(synk): PyTorch clones the Data container (data.clone()); only the
    # tensor transform on data.x has a Pallas equivalent.
    return pl.pallas_call(
        _standardize_kernel,
        out_shape=jax.ShapeDtypeStruct((N, F), x.dtype),
        grid=(n_steps,),
        in_specs=[
            pl.BlockSpec((tile_rows, F), lambda i: (i, 0)),   # x tile (ragged tail masked)
            pl.BlockSpec((1, F), lambda i: (0, 0)),           # mean (resident)
            pl.BlockSpec((1, F), lambda i: (0, 0)),           # std  (resident)
        ],
        out_specs=pl.BlockSpec((tile_rows, F), lambda i: (i, 0)),
        compiler_params=pltpu.CompilerParams(
            dimension_semantics=("parallel",),
            vmem_limit_bytes=vmem_limit,
        ),
    )(x, mean2, std2)


if __name__ == "__main__":
    key = jax.random.PRNGKey(0)
    k_x, k_m, k_s, k_x2, k_x3 = jax.random.split(key, 5)

    # Lane-dense feature width (multiple of 128).
    F = 128
    mean_b = jax.random.normal(k_m, (F,), dtype=jnp.float32)
    std_b = jax.random.uniform(k_s, (F,), dtype=jnp.float32, minval=0.5, maxval=2.0)

    # 1) Ragged-N case -> Pallas path, single byte-capped tile, masked tail rows.
    N1 = 6150
    x1 = jax.random.normal(k_x, (N1, F), dtype=jnp.float32) * 3.0 + 1.5
    out1 = jax.block_until_ready(standardize(x1, mean_b, std_b))
    ref1 = (x1 - mean_b[None, :]) / std_b[None, :]
    assert out1.shape == ref1.shape and out1.dtype == ref1.dtype
    assert jnp.allclose(out1, ref1, atol=1e-6, rtol=1e-5)

    # 2) Same data with a small tile target -> multi-step grid + balanced-step path.
    out1b = jax.block_until_ready(standardize(x1, mean_b, std_b, target_tile_bytes=1 << 20))
    assert jnp.allclose(out1b, ref1, atol=1e-6, rtol=1e-5)

    # 3) Ragged lane width (CGCNN atom features are commonly 92-wide):
    #    full-extent F block; correctness still exact.
    F2 = 92
    mean_c = jax.random.normal(k_m, (F2,), dtype=jnp.float32)
    std_c = jax.random.uniform(k_s, (F2,), dtype=jnp.float32, minval=0.5, maxval=2.0)
    N2 = 1000
    x2 = jax.random.normal(k_x2, (N2, F2), dtype=jnp.float32)
    out2 = jax.block_until_ready(standardize(x2, mean_c, std_c))
    ref2 = (x2 - mean_c[None, :]) / std_c[None, :]
    assert jnp.allclose(out2, ref2, atol=1e-6, rtol=1e-5)

    # 4) Tiny input -> pure-XLA fallback path.
    N3 = 37
    x3 = jax.random.normal(k_x3, (N3, F), dtype=jnp.float32)
    out3 = jax.block_until_ready(standardize(x3, mean_b, std_b))
    ref3 = (x3 - mean_b[None, :]) / std_b[None, :]
    assert jnp.allclose(out3, ref3, atol=1e-6, rtol=1e-5)

    print("KERNEL_OK")
</pallas_src>

<mosaic_0001>
module attributes {stable_mosaic.version = 11 : i64} {
  func.func @_standardize_kernel(%arg0: i32, %arg1: memref<6152x128xf32, #tpu.memory_space<vmem>>, %arg2: memref<1x128xf32, #tpu.memory_space<vmem>>, %arg3: memref<1x128xf32, #tpu.memory_space<vmem>>, %arg4: memref<6152x128xf32, #tpu.memory_space<vmem>>) attributes {dimension_semantics = [#tpu.dimension_semantics<parallel>], iteration_bounds = array<i64: 1>, scalar_prefetch = 0 : i64, scratch_operands = 0 : i64, tpu.core_type = #tpu.core_type<tc>, window_params = [{transform_indices = @transform_0, window_bounds = array<i64: 6152, 128>}, {pipeline_mode = #tpu.pipeline_mode<synchronous>, transform_indices = @transform_1, window_bounds = array<i64: 1, 128>}, {pipeline_mode = #tpu.pipeline_mode<synchronous>, transform_indices = @transform_2, window_bounds = array<i64: 1, 128>}, {transform_indices = @transform_3, window_bounds = array<i64: 6152, 128>}]} {
    %c0 = arith.constant 0 : index
    %c0_0 = arith.constant 0 : index
    %0 = vector.load %arg1[%c0, %c0_0] : memref<6152x128xf32, #tpu.memory_space<vmem>>, vector<6152x128xf32>
    %c0_1 = arith.constant 0 : index
    %c0_2 = arith.constant 0 : index
    %1 = vector.load %arg2[%c0_1, %c0_2] : memref<1x128xf32, #tpu.memory_space<vmem>>, vector<1x128xf32>
    %c0_3 = arith.constant 0 : index
    %c0_4 = arith.constant 0 : index
    %2 = vector.load %arg3[%c0_3, %c0_4] : memref<1x128xf32, #tpu.memory_space<vmem>>, vector<1x128xf32>
    %cst = arith.constant 1.000000e+00 : f32
    %3 = vector.broadcast %cst : f32 to vector<1x128xf32>
    %4 = arith.divf %3, %2 : vector<1x128xf32>
    %5 = vector.broadcast %1 : vector<1x128xf32> to vector<6152x128xf32>
    %6 = arith.subf %0, %5 : vector<6152x128xf32>
    %7 = vector.broadcast %4 : vector<1x128xf32> to vector<6152x128xf32>
    %8 = arith.mulf %6, %7 : vector<6152x128xf32>
    %c0_5 = arith.constant 0 : index
    %c0_6 = arith.constant 0 : index
    %9 = vector.load %arg4[%c0_5, %c0_6] : memref<6152x128xf32, #tpu.memory_space<vmem>>, vector<6152x128xf32>
    tpu.vector_store %arg4[%c0_5, %c0_6], %8 {strides = array<i32>} : memref<6152x128xf32, #tpu.memory_space<vmem>>, vector<6152x128xf32>,
    return
  }
  func.func @transform_0(%arg0: i32) -> (i32, i32) {
    %c0_i32 = arith.constant 0 : i32
    %c0_i32_0 = arith.constant 0 : i32
    return %arg0, %c0_i32 : i32, i32
  }
  func.func @transform_1(%arg0: i32) -> (i32, i32) {
    %c0_i32 = arith.constant 0 : i32
    %c0_i32_0 = arith.constant 0 : i32
    %c0_i32_1 = arith.constant 0 : i32
    return %c0_i32, %c0_i32_0 : i32, i32
  }
  func.func @transform_2(%arg0: i32) -> (i32, i32) {
    %c0_i32 = arith.constant 0 : i32
    %c0_i32_0 = arith.constant 0 : i32
    %c0_i32_1 = arith.constant 0 : i32
    return %c0_i32, %c0_i32_0 : i32, i32
  }
  func.func @transform_3(%arg0: i32) -> (i32, i32) {
    %c0_i32 = arith.constant 0 : i32
    %c0_i32_0 = arith.constant 0 : i32
    return %arg0, %c0_i32 : i32, i32
  }
}

</mosaic_0001>

<llo_original>
// kernel: tpu_custom_call.1
$region0: #{tpu_custom_call.1}
  #allocation0 [shape = 'u32[]', space=smem, size = 0x4, offset = 0x4, fixed_abs, tag = 'smem constant byte address 0x4 - core index']
  #allocation1 [shape = 'u32[72,128]{1,0:T(1,128)}', space=vmem, size = 0x9000, scoped, tag = 'internal scratch']
  %s0 = inlined_call_operand.hbm [shape: f32[6150,128], index: 0, kind: input, shape index: {}]
  %s1 = inlined_call_operand.hbm [shape: f32[1,128], index: 1, kind: input, shape index: {}]
  %s2 = inlined_call_operand.hbm [shape: f32[1,128], index: 2, kind: input, shape index: {}]
  %s3 = inlined_call_operand.hbm [shape: f32[6150,128], index: 3, kind: output, shape index: {}]
  %s4 = sld [smem:[#allocation0]]
  $region34: #{tpu_custom_call.1} parent=0
    _
  %s6 = ssub.s32 1, %s4
  %s7 = scalar_select 0, %s6, %s4
  $region1: #{tpu_custom_call.1} parent=0
    #allocation2 [shape = 'u8[3149824]{0}', space=vmem, size = 0x301000, scoped, tag = 'input window, operand 0, single buffered']
    #allocation3 [shape = 's32[1]{0}', space=sflag, size = 0x4, scoped, tag = 'scoped memory for tpu_custom_call.1']
    #allocation4 [shape = 's32[1]{0}', space=sflag, size = 0x4, scoped, tag = 'scoped memory for tpu_custom_call.1']
    #allocation5 [shape = 'u8[512]{0}', space=vmem, size = 0x400, scoped, tag = 'input window, operand 1, single buffered']
    #allocation6 [shape = 's32[1]{0}', space=sflag, size = 0x4, scoped, tag = 'scoped memory for tpu_custom_call.1']
    #allocation7 [shape = 'u8[512]{0}', space=vmem, size = 0x400, scoped, tag = 'input window, operand 2, single buffered']
    #allocation8 [shape = 'u8[3149824]{0}', space=vmem, size = 0x301000, scoped, tag = 'output window, operand 0, single buffered']
    %8 = vsyncpa [#allocation3], 0
    %9 = vsyncpa [#allocation6], 0
    %10 = vsyncpa [#allocation4], 0
    // Predicated region
    $region2: #{tpu_custom_call.1} parent=1 // pred_check
      _
    $region3: #{tpu_custom_call.1} parent=1 // pred_check_branch
      %12 = sbr.rel (0) target = $region5
    $region4: #{tpu_custom_call.1} parent=1 // pred_region
      %14 = vsyncadd [#allocation3], 0
      %s15 = sshll.u32 %s0, 4
      %s16 = int_to_ptr.hbm [resolvable:$true] %s15
      %s17 = sshll.u32 [#allocation2], 4
      %s18 = int_to_ptr.vmem [resolvable:$true] %s17
      %23 = dma.hbm_to_vmem [thread:$0]  %s16, 98432, %s18, [#allocation3], 128, 128, 8
    $region5: #{tpu_custom_call.1} parent=1 // pred_fallthru
      _
    // Predicated region
    $region6: #{tpu_custom_call.1} parent=1 // pred_check
      _
    $region7: #{tpu_custom_call.1} parent=1 // pred_check_branch
      %25 = sbr.rel (0) target = $region9
    $region8: #{tpu_custom_call.1} parent=1 // pred_region
      %27 = vsyncadd [#allocation6], 0
      %s29 = sshll.u32 %s1, 4
      %s30 = int_to_ptr.hbm [resolvable:$true] %s29
      %s31 = sshll.u32 [#allocation5], 4
      %s32 = int_to_ptr.vmem [resolvable:$true] %s31
      %34 = dma.hbm_to_vmem [thread:$0]  %s30, 16, %s32, [#allocation6]
    $region9: #{tpu_custom_call.1} parent=1 // pred_fallthru
      _
    // Predicated region
    $region10: #{tpu_custom_call.1} parent=1 // pred_check
      _
    $region11: #{tpu_custom_call.1} parent=1 // pred_check_branch
      %36 = sbr.rel (0) target = $region13
    $region12: #{tpu_custom_call.1} parent=1 // pred_region
      %38 = vsyncadd [#allocation6], 0
      %s40 = sshll.u32 %s2, 4
      %s41 = int_to_ptr.hbm [resolvable:$true] %s40
      %s42 = sshll.u32 [#allocation7], 4
      %s43 = int_to_ptr.vmem [resolvable:$true] %s42
      %45 = dma.hbm_to_vmem [thread:$0]  %s41, 16, %s43, [#allocation6]
    $region13: #{tpu_custom_call.1} parent=1 // pred_fallthru
      _
    // Predicated region
    $region14: #{tpu_custom_call.1} parent=1 // pred_check
      _
    $region15: #{tpu_custom_call.1} parent=1 // pred_check_branch
      %47 = sbr.rel (0) target = $region17
    $region16: #{tpu_custom_call.1} parent=1 // pred_region
      %49 = dma.done [#allocation3], 98432
    $region17: #{tpu_custom_call.1} parent=1 // pred_fallthru
      _
    // Predicated region
    $region18: #{tpu_custom_call.1} parent=1 // pred_check
      _
    $region19: #{tpu_custom_call.1} parent=1 // pred_check_branch
      %51 = sbr.rel (0) target = $region21
    $region20: #{tpu_custom_call.1} parent=1 // pred_region
      %53 = dma.done [#allocation6], 16
    $region21: #{tpu_custom_call.1} parent=1 // pred_fallthru
      _
    // Predicated region
    $region22: #{tpu_custom_call.1} parent=1 // pred_check
      _
    $region23: #{tpu_custom_call.1} parent=1 // pred_check_branch
      %55 = sbr.rel (0) target = $region25
    $region24: #{tpu_custom_call.1} parent=1 // pred_region
      %57 = dma.done [#allocation6], 16
    $region25: #{tpu_custom_call.1} parent=1 // pred_fallthru
      _
    %v58 = vld [vmem:[#allocation2] sm:$0xff]
    %v59 = vld [vmem:[#allocation2 + $0x8] sm:$0xff]
    %v60 = vld [vmem:[#allocation2 + $0x10] sm:$0xff]
    %v61 = vld [vmem:[#allocation2 + $0x18] sm:$0xff]
    %v62 = vld [vmem:[#allocation2 + $0x20] sm:$0xff]
    %v63 = vld [vmem:[#allocation2 + $0x28] sm:$0xff]
    %v64 = vld [vmem:[#allocation2 + $0x30] sm:$0xff]
    %v65 = vld [vmem:[#allocation2 + $0x38] sm:$0xff]
    %v66 = vld [vmem:[#allocation2 + $0x40] sm:$0xff]
    %v67 = vld [vmem:[#allocation2 + $0x48] sm:$0xff]
    %v68 = vld [vmem:[#allocation2 + $0x50] sm:$0xff]
    %v69 = vld [vmem:[#allocation2 + $0x58] sm:$0xff]
    %v70 = vld [vmem:[#allocation2 + $0x60] sm:$0xff]
    %v71 = vld [vmem:[#allocation2 + $0x68] sm:$0xff]
    %v72 = vld [vmem:[#allocation2 + $0x70] sm:$0xff]
    %v73 = vld [vmem:[#allocation2 + $0x78] sm:$0xff]
    %v74 = vld [vmem:[#allocation2 + $0x80] sm:$0xff]
    %v75 = vld [vmem:[#allocation2 + $0x88] sm:$0xff]
    %v76 = vld [vmem:[#allocation2 + $0x90] sm:$0xff]
    %v77 = vld [vmem:[#allocation2 + $0x98] sm:$0xff]
    %v78 = vld [vmem:[#allocation2 + $0xa0] sm:$0xff]
    %v79 = vld [vmem:[#allocation2 + $0xa8] sm:$0xff]
    %v80 = vld [vmem:[#allocation2 + $0xb0] sm:$0xff]
    %v81 = vld [vmem:[#allocation2 + $0xb8] sm:$0xff]
    %v82 = vld [vmem:[#allocation2 + $0xc0] sm:$0xff]
    %v83 = vld [vmem:[#allocation2 + $0xc8] sm:$0xff]
    %v84 = vld [vmem:[#allocation2 + $0xd0] sm:$0xff]
    %v85 = vld [vmem:[#allocation2 + $0xd8] sm:$0xff]
    %v86 = vld [vmem:[#allocation2 + $0xe0] sm:$0xff]
    %v87 = vld [vmem:[#allocation2 + $0xe8] sm:$0xff]
    %v88 = vld [vmem:[#allocation2 + $0xf0] sm:$0xff]
    %v89 = vld [vmem:[#allocation2 + $0xf8] sm:$0xff]
    %v90 = vld [vmem:[#allocation2 + $0x100] sm:$0xff]
    %v91 = vld [vmem:[#allocation2 + $0x108] sm:$0xff]
    %v92 = vld [vmem:[#allocation2 + $0x110] sm:$0xff]
    %v93 = vld [vmem:[#allocation2 + $0x118] sm:$0xff]
    %v94 = vld [vmem:[#allocation2 + $0x120] sm:$0xff]
    %v95 = vld [vmem:[#allocation2 + $0x128] sm:$0xff]
    %v96 = vld [vmem:[#allocation2 + $0x130] sm:$0xff]
    %v97 = vld [vmem:[#allocation2 + $0x138] sm:$0xff]
    %v98 = vld [vmem:[#allocation2 + $0x140] sm:$0xff]
    %v99 = vld [vmem:[#allocation2 + $0x148] sm:$0xff]
    %v100 = vld [vmem:[#allocation2 + $0x150] sm:$0xff]
    %v101 = vld [vmem:[#allocation2 + $0x158] sm:$0xff]
    %v102 = vld [vmem:[#allocation2 + $0x160] sm:$0xff]
    %v103 = vld [vmem:[#allocation2 + $0x168] sm:$0xff]
    %v104 = vld [vmem:[#allocation2 + $0x170] sm:$0xff]
    %v105 = vld [vmem:[#allocation2 + $0x178] sm:$0xff]
    %v106 = vld [vmem:[#allocation2 + $0x180] sm:$0xff]
    %v107 = vld [vmem:[#allocation2 + $0x188] sm:$0xff]
    %v108 = vld [vmem:[#allocation2 + $0x190] sm:$0xff]
    %v109 = vld [vmem:[#allocation2 + $0x198] sm:$0xff]
    %v110 = vld [vmem:[#allocation2 + $0x1a0] sm:$0xff]
    %v111 = vld [vmem:[#allocation2 + $0x1a8] sm:$0xff]
    %v112 = vld [vmem:[#allocation2 + $0x1b0] sm:$0xff]
    %v113 = vld [vmem:[#allocation2 + $0x1b8] sm:$0xff]
    %v114 = vld [vmem:[#allocation2 + $0x1c0] sm:$0xff]
    %v115 = vld [vmem:[#allocation2 + $0x1c8] sm:$0xff]
    %v116 = vld [vmem:[#allocation2 + $0x1d0] sm:$0xff]
    %v117 = vld [vmem:[#allocation2 + $0x1d8] sm:$0xff]
    %v118 = vld [vmem:[#allocation2 + $0x1e0] sm:$0xff]
    %v119 = vld [vmem:[#allocation2 + $0x1e8] sm:$0xff]
    %v120 = vld [vmem:[#allocation2 + $0x1f0] sm:$0xff]
    %v121 = vld [vmem:[#allocation2 + $0x1f8] sm:$0xff]
    %v122 = vld [vmem:[#allocation2 + $0x200] sm:$0xff]
    %v123 = vld [vmem:[#allocation2 + $0x208] sm:$0xff]
    %v124 = vld [vmem:[#allocation2 + $0x210] sm:$0xff]
    %v125 = vld [vmem:[#allocation2 + $0x218] sm:$0xff]
    %v126 = vld [vmem:[#allocation2 + $0x220] sm:$0xff]
    %v127 = vld [vmem:[#allocation2 + $0x228] sm:$0xff]
    %v128 = vld [vmem:[#allocation2 + $0x230] sm:$0xff]
    %v129 = vld [vmem:[#allocation2 + $0x238] sm:$0xff]
    %v130 = vld [vmem:[#allocation2 + $0x240] sm:$0xff]
    %v131 = vld [vmem:[#allocation2 + $0x248] sm:$0xff]
    %v132 = vld [vmem:[#allocation2 + $0x250] sm:$0xff]
    %v133 = vld [vmem:[#allocation2 + $0x258] sm:$0xff]
    %v134 = vld [vmem:[#allocation2 + $0x260] sm:$0xff]
    %v135 = vld [vmem:[#allocation2 + $0x268] sm:$0xff]
    %v136 = vld [vmem:[#allocation2 + $0x270] sm:$0xff]
    %v137 = vld [vmem:[#allocation2 + $0x278] sm:$0xff]
    %v138 = vld [vmem:[#allocation2 + $0x280] sm:$0xff]
    %v139 = vld [vmem:[#allocation2 + $0x288] sm:$0xff]
    %v140 = vld [vmem:[#allocation2 + $0x290] sm:$0xff]
    %v141 = vld [vmem:[#allocation2 + $0x298] sm:$0xff]
    %v142 = vld [vmem:[#allocation2 + $0x2a0] sm:$0xff]
    %v143 = vld [vmem:[#allocation2 + $0x2a8] sm:$0xff]
    %v144 = vld [vmem:[#allocation2 + $0x2b0] sm:$0xff]
    %v145 = vld [vmem:[#allocation2 + $0x2b8] sm:$0xff]
    %v146 = vld [vmem:[#allocation2 + $0x2c0] sm:$0xff]
    %v147 = vld [vmem:[#allocation2 + $0x2c8] sm:$0xff]
    %v148 = vld [vmem:[#allocation2 + $0x2d0] sm:$0xff]
    %v149 = vld [vmem:[#allocation2 + $0x2d8] sm:$0xff]
    %v150 = vld [vmem:[#allocation2 + $0x2e0] sm:$0xff]
    %v151 = vld [vmem:[#allocation2 + $0x2e8] sm:$0xff]
    %v152 = vld [vmem:[#allocation2 + $0x2f0] sm:$0xff]
    %v153 = vld [vmem:[#allocation2 + $0x2f8] sm:$0xff]
    %v154 = vld [vmem:[#allocation2 + $0x300] sm:$0xff]
    %v155 = vld [vmem:[#allocation2 + $0x308] sm:$0xff]
    %v156 = vld [vmem:[#allocation2 + $0x310] sm:$0xff]
    %v157 = vld [vmem:[#allocation2 + $0x318] sm:$0xff]
    %v158 = vld [vmem:[#allocation2 + $0x320] sm:$0xff]
    %v159 = vld [vmem:[#allocation2 + $0x328] sm:$0xff]
    %v160 = vld [vmem:[#allocation2 + $0x330] sm:$0xff]
    %v161 = vld [vmem:[#allocation2 + $0x338] sm:$0xff]
    %v162 = vld [vmem:[#allocation2 + $0x340] sm:$0xff]
    %v163 = vld [vmem:[#allocation2 + $0x348] sm:$0xff]
    %v164 = vld [vmem:[#allocation2 + $0x350] sm:$0xff]
    %v165 = vld [vmem:[#allocation2 + $0x358] sm:$0xff]
    %v166 = vld [vmem:[#allocation2 + $0x360] sm:$0xff]
    %v167 = vld [vmem:[#allocation2 + $0x368] sm:$0xff]
    %v168 = vld [vmem:[#allocation2 + $0x370] sm:$0xff]
    %v169 = vld [vmem:[#allocation2 + $0x378] sm:$0xff]
    %v170 = vld [vmem:[#allocation2 + $0x380] sm:$0xff]
    %v171 = vld [vmem:[#allocation2 + $0x388] sm:$0xff]
    %v172 = vld [vmem:[#allocation2 + $0x390] sm:$0xff]
    %v173 = vld [vmem:[#allocation2 + $0x398] sm:$0xff]
    %v174 = vld [vmem:[#allocation2 + $0x3a0] sm:$0xff]
    %v175 = vld [vmem:[#allocation2 + $0x3a8] sm:$0xff]
    %v176 = vld [vmem:[#allocation2 + $0x3b0] sm:$0xff]
    %v177 = vld [vmem:[#allocation2 + $0x3b8] sm:$0xff]
    %v178 = vld [vmem:[#allocation2 + $0x3c0] sm:$0xff]
    %v179 = vld [vmem:[#allocation2 + $0x3c8] sm:$0xff]
    %v180 = vld [vmem:[#allocation2 + $0x3d0] sm:$0xff]
    %v181 = vld [vmem:[#allocation2 + $0x3d8] sm:$0xff]
    %v182 = vld [vmem:[#allocation2 + $0x3e0] sm:$0xff]
    %v183 = vld [vmem:[#allocation2 + $0x3e8] sm:$0xff]
    %v184 = vld [vmem:[#allocation2 + $0x3f0] sm:$0xff]
    %v185 = vld [vmem:[#allocation2 + $0x3f8] sm:$0xff]
    %v186 = vld [vmem:[#allocation2 + $0x400] sm:$0xff]
    %v187 = vld [vmem:[#allocation2 + $0x408] sm:$0xff]
    %v188 = vld [vmem:[#allocation2 + $0x410] sm:$0xff]
    %v189 = vld [vmem:[#allocation2 + $0x418] sm:$0xff]
    %v190 = vld [vmem:[#allocation2 + $0x420] sm:$0xff]
    %v191 = vld [vmem:[#allocation2 + $0x428] sm:$0xff]
    %v192 = vld [vmem:[#allocation2 + $0x430] sm:$0xff]
    %v193 = vld [vmem:[#allocation2 + $0x438] sm:$0xff]
    %v194 = vld [vmem:[#allocation2 + $0x440] sm:$0xff]
    %v195 = vld [vmem:[#allocation2 + $0x448] sm:$0xff]
    %v196 = vld [vmem:[#allocation2 + $0x450] sm:$0xff]
    %v197 = vld [vmem:[#allocation2 + $0x458] sm:$0xff]
    %v198 = vld [vmem:[#allocation2 + $0x460] sm:$0xff]
    %v199 = vld [vmem:[#allocation2 + $0x468] sm:$0xff]
    %v200 = vld [vmem:[#allocation2 + $0x470] sm:$0xff]
    %v201 = vld [vmem:[#allocation2 + $0x478] sm:$0xff]
    %v202 = vld [vmem:[#allocation2 + $0x480] sm:$0xff]
    %v203 = vld [vmem:[#allocation2 + $0x488] sm:$0xff]
    %v204 = vld [vmem:[#allocation2 + $0x490] sm:$0xff]
    %v205 = vld [vmem:[#allocation2 + $0x498] sm:$0xff]
    %v206 = vld [vmem:[#allocation2 + $0x4a0] sm:$0xff]
    %v207 = vld [vmem:[#allocation2 + $0x4a8] sm:$0xff]
    %v208 = vld [vmem:[#allocation2 + $0x4b0] sm:$0xff]
    %v209 = vld [vmem:[#allocation2 + $0x4b8] sm:$0xff]
    %v210 = vld [vmem:[#allocation2 + $0x4c0] sm:$0xff]
    %v211 = vld [vmem:[#allocation2 + $0x4c8] sm:$0xff]
    %v212 = vld [vmem:[#allocation2 + $0x4d0] sm:$0xff]
    %v213 = vld [vmem:[#allocation2 + $0x4d8] sm:$0xff]
    %v214 = vld [vmem:[#allocation2 + $0x4e0] sm:$0xff]
    %v215 = vld [vmem:[#allocation2 + $0x4e8] sm:$0xff]
    %v216 = vld [vmem:[#allocation2 + $0x4f0] sm:$0xff]
    %v217 = vld [vmem:[#allocation2 + $0x4f8] sm:$0xff]
    %v218 = vld [vmem:[#allocation2 + $0x500] sm:$0xff]
    %v219 = vld [vmem:[#allocation2 + $0x508] sm:$0xff]
    %v220 = vld [vmem:[#allocation2 + $0x510] sm:$0xff]
    %v221 = vld [vmem:[#allocation2 + $0x518] sm:$0xff]
    %v222 = vld [vmem:[#allocation2 + $0x520] sm:$0xff]
    %v223 = vld [vmem:[#allocation2 + $0x528] sm:$0xff]
    %v224 = vld [vmem:[#allocation2 + $0x530] sm:$0xff]
    %v225 = vld [vmem:[#allocation2 + $0x538] sm:$0xff]
    %v226 = vld [vmem:[#allocation2 + $0x540] sm:$0xff]
    %v227 = vld [vmem:[#allocation2 + $0x548] sm:$0xff]
    %v228 = vld [vmem:[#allocation2 + $0x550] sm:$0xff]
    %v229 = vld [vmem:[#allocation2 + $0x558] sm:$0xff]
    %v230 = vld [vmem:[#allocation2 + $0x560] sm:$0xff]
    %v231 = vld [vmem:[#allocation2 + $0x568] sm:$0xff]
    %v232 = vld [vmem:[#allocation2 + $0x570] sm:$0xff]
    %v233 = vld [vmem:[#allocation2 + $0x578] sm:$0xff]
    %v234 = vld [vmem:[#allocation2 + $0x580] sm:$0xff]
    %v235 = vld [vmem:[#allocation2 + $0x588] sm:$0xff]
    %v236 = vld [vmem:[#allocation2 + $0x590] sm:$0xff]
    %v237 = vld [vmem:[#allocation2 + $0x598] sm:$0xff]
    %v238 = vld [vmem:[#allocation2 + $0x5a0] sm:$0xff]
    %v239 = vld [vmem:[#allocation2 + $0x5a8] sm:$0xff]
    %v240 = vld [vmem:[#allocation2 + $0x5b0] sm:$0xff]
    %v241 = vld [vmem:[#allocation2 + $0x5b8] sm:$0xff]
    %v242 = vld [vmem:[#allocation2 + $0x5c0] sm:$0xff]
    %v243 = vld [vmem:[#allocation2 + $0x5c8] sm:$0xff]
    %v244 = vld [vmem:[#allocation2 + $0x5d0] sm:$0xff]
    %v245 = vld [vmem:[#allocation2 + $0x5d8] sm:$0xff]
    %v246 = vld [vmem:[#allocation2 + $0x5e0] sm:$0xff]
    %v247 = vld [vmem:[#allocation2 + $0x5e8] sm:$0xff]
    %v248 = vld [vmem:[#allocation2 + $0x5f0] sm:$0xff]
    %v249 = vld [vmem:[#allocation2 + $0x5f8] sm:$0xff]
    %v250 = vld [vmem:[#allocation2 + $0x600] sm:$0xff]
    %v251 = vld [vmem:[#allocation2 + $0x608] sm:$0xff]
    %v252 = vld [vmem:[#allocation2 + $0x610] sm:$0xff]
    %v253 = vld [vmem:[#allocation2 + $0x618] sm:$0xff]
    %v254 = vld [vmem:[#allocation2 + $0x620] sm:$0xff]
    %v255 = vld [vmem:[#allocation2 + $0x628] sm:$0xff]
    %v256 = vld [vmem:[#allocation2 + $0x630] sm:$0xff]
    %v257 = vld [vmem:[#allocation2 + $0x638] sm:$0xff]
    %v258 = vld [vmem:[#allocation2 + $0x640] sm:$0xff]
    %v259 = vld [vmem:[#allocation2 + $0x648] sm:$0xff]
    %v260 = vld [vmem:[#allocation2 + $0x650] sm:$0xff]
    %v261 = vld [vmem:[#allocation2 + $0x658] sm:$0xff]
    %v262 = vld [vmem:[#allocation2 + $0x660] sm:$0xff]
    %v263 = vld [vmem:[#allocation2 + $0x668] sm:$0xff]
    %v264 = vld [vmem:[#allocation2 + $0x670] sm:$0xff]
    %v265 = vld [vmem:[#allocation2 + $0x678] sm:$0xff]
    %v266 = vld [vmem:[#allocation2 + $0x680] sm:$0xff]
    %v267 = vld [vmem:[#allocation2 + $0x688] sm:$0xff]
    %v268 = vld [vmem:[#allocation2 + $0x690] sm:$0xff]
    %v269 = vld [vmem:[#allocation2 + $0x698] sm:$0xff]
    %v270 = vld [vmem:[#allocation2 + $0x6a0] sm:$0xff]
    %v271 = vld [vmem:[#allocation2 + $0x6a8] sm:$0xff]
    %v272 = vld [vmem:[#allocation2 + $0x6b0] sm:$0xff]
    %v273 = vld [vmem:[#allocation2 + $0x6b8] sm:$0xff]
    %v274 = vld [vmem:[#allocation2 + $0x6c0] sm:$0xff]
    %v275 = vld [vmem:[#allocation2 + $0x6c8] sm:$0xff]
    %v276 = vld [vmem:[#allocation2 + $0x6d0] sm:$0xff]
    %v277 = vld [vmem:[#allocation2 + $0x6d8] sm:$0xff]
    %v278 = vld [vmem:[#allocation2 + $0x6e0] sm:$0xff]
    %v279 = vld [vmem:[#allocation2 + $0x6e8] sm:$0xff]
    %v280 = vld [vmem:[#allocation2 + $0x6f0] sm:$0xff]
    %v281 = vld [vmem:[#allocation2 + $0x6f8] sm:$0xff]
    %v282 = vld [vmem:[#allocation2 + $0x700] sm:$0xff]
    %v283 = vld [vmem:[#allocation2 + $0x708] sm:$0xff]
    %v284 = vld [vmem:[#allocation2 + $0x710] sm:$0xff]
    %v285 = vld [vmem:[#allocation2 + $0x718] sm:$0xff]
    %v286 = vld [vmem:[#allocation2 + $0x720] sm:$0xff]
    %v287 = vld [vmem:[#allocation2 + $0x728] sm:$0xff]
    %v288 = vld [vmem:[#allocation2 + $0x730] sm:$0xff]
    %v289 = vld [vmem:[#allocation2 + $0x738] sm:$0xff]
    %v290 = vld [vmem:[#allocation2 + $0x740] sm:$0xff]
    %v291 = vld [vmem:[#allocation2 + $0x748] sm:$0xff]
    %v292 = vld [vmem:[#allocation2 + $0x750] sm:$0xff]
    %v293 = vld [vmem:[#allocation2 + $0x758] sm:$0xff]
    %v294 = vld [vmem:[#allocation2 + $0x760] sm:$0xff]
    %v295 = vld [vmem:[#allocation2 + $0x768] sm:$0xff]
    %v296 = vld [vmem:[#allocation2 + $0x770] sm:$0xff]
    %v297 = vld [vmem:[#allocation2 + $0x778] sm:$0xff]
    %v298 = vld [vmem:[#allocation2 + $0x780] sm:$0xff]
    %v299 = vld [vmem:[#allocation2 + $0x788] sm:$0xff]
    %v300 = vld [vmem:[#allocation2 + $0x790] sm:$0xff]
    %v301 = vld [vmem:[#allocation2 + $0x798] sm:$0xff]
    %v302 = vld [vmem:[#allocation2 + $0x7a0] sm:$0xff]
    %v303 = vld [vmem:[#allocation2 + $0x7a8] sm:$0xff]
    %v304 = vld [vmem:[#allocation2 + $0x7b0] sm:$0xff]
    %v305 = vld [vmem:[#allocation2 + $0x7b8] sm:$0xff]
    %v306 = vld [vmem:[#allocation2 + $0x7c0] sm:$0xff]
    %v307 = vld [vmem:[#allocation2 + $0x7c8] sm:$0xff]
    %v308 = vld [vmem:[#allocation2 + $0x7d0] sm:$0xff]
    %v309 = vld [vmem:[#allocation2 + $0x7d8] sm:$0xff]
    %v310 = vld [vmem:[#allocation2 + $0x7e0] sm:$0xff]
    %v311 = vld [vmem:[#allocation2 + $0x7e8] sm:$0xff]
    %v312 = vld [vmem:[#allocation2 + $0x7f0] sm:$0xff]
    %v313 = vld [vmem:[#allocation2 + $0x7f8] sm:$0xff]
    %v314 = vld [vmem:[#allocation2 + $0x800] sm:$0xff]
    %v315 = vld [vmem:[#allocation2 + $0x808] sm:$0xff]
    %v316 = vld [vmem:[#allocation2 + $0x810] sm:$0xff]
    %v317 = vld [vmem:[#allocation2 + $0x818] sm:$0xff]
    %v318 = vld [vmem:[#allocation2 + $0x820] sm:$0xff]
    %v319 = vld [vmem:[#allocation2 + $0x828] sm:$0xff]
    %v320 = vld [vmem:[#allocation2 + $0x830] sm:$0xff]
    %v321 = vld [vmem:[#allocation2 + $0x838] sm:$0xff]
    %v322 = vld [vmem:[#allocation2 + $0x840] sm:$0xff]
    %v323 = vld [vmem:[#allocation2 + $0x848] sm:$0xff]
    %v324 = vld [vmem:[#allocation2 + $0x850] sm:$0xff]
    %v325 = vld [vmem:[#allocation2 + $0x858] sm:$0xff]
    %v326 = vld [vmem:[#allocation2 + $0x860] sm:$0xff]
    %v327 = vld [vmem:[#allocation2 + $0x868] sm:$0xff]
    %v328 = vld [vmem:[#allocation2 + $0x870] sm:$0xff]
    %v329 = vld [vmem:[#allocation2 + $0x878] sm:$0xff]
    %v330 = vld [vmem:[#allocation2 + $0x880] sm:$0xff]
    %v331 = vld [vmem:[#allocation2 + $0x888] sm:$0xff]
    %v332 = vld [vmem:[#allocation2 + $0x890] sm:$0xff]
    %v333 = vld [vmem:[#allocation2 + $0x898] sm:$0xff]
    %v334 = vld [vmem:[#allocation2 + $0x8a0] sm:$0xff]
    %v335 = vld [vmem:[#allocation2 + $0x8a8] sm:$0xff]
    %v336 = vld [vmem:[#allocation2 + $0x8b0] sm:$0xff]
    %v337 = vld [vmem:[#allocation2 + $0x8b8] sm:$0xff]
    %v338 = vld [vmem:[#allocation2 + $0x8c0] sm:$0xff]
    %v339 = vld [vmem:[#allocation2 + $0x8c8] sm:$0xff]
    %v340 = vld [vmem:[#allocation2 + $0x8d0] sm:$0xff]
    %v341 = vld [vmem:[#allocation2 + $0x8d8] sm:$0xff]
    %v342 = vld [vmem:[#allocation2 + $0x8e0] sm:$0xff]
    %v343 = vld [vmem:[#allocation2 + $0x8e8] sm:$0xff]
    %v344 = vld [vmem:[#allocation2 + $0x8f0] sm:$0xff]
    %v345 = vld [vmem:[#allocation2 + $0x8f8] sm:$0xff]
    %v346 = vld [vmem:[#allocation2 + $0x900] sm:$0xff]
    %v347 = vld [vmem:[#allocation2 + $0x908] sm:$0xff]
    %v348 = vld [vmem:[#allocation2 + $0x910] sm:$0xff]
    %v349 = vld [vmem:[#allocation2 + $0x918] sm:$0xff]
    %v350 = vld [vmem:[#allocation2 + $0x920] sm:$0xff]
    %v351 = vld [vmem:[#allocation2 + $0x928] sm:$0xff]
    %v352 = vld [vmem:[#allocation2 + $0x930] sm:$0xff]
    %v353 = vld [vmem:[#allocation2 + $0x938] sm:$0xff]
    %v354 = vld [vmem:[#allocation2 + $0x940] sm:$0xff]
    %v355 = vld [vmem:[#allocation2 + $0x948] sm:$0xff]
    %v356 = vld [vmem:[#allocation2 + $0x950] sm:$0xff]
    %v357 = vld [vmem:[#allocation2 + $0x958] sm:$0xff]
    %v358 = vld [vmem:[#allocation2 + $0x960] sm:$0xff]
    %v359 = vld [vmem:[#allocation2 + $0x968] sm:$0xff]
    %v360 = vld [vmem:[#allocation2 + $0x970] sm:$0xff]
    %v361 = vld [vmem:[#allocation2 + $0x978] sm:$0xff]
    %v362 = vld [vmem:[#allocation2 + $0x980] sm:$0xff]
    %v363 = vld [vmem:[#allocation2 + $0x988] sm:$0xff]
    %v364 = vld [vmem:[#allocation2 + $0x990] sm:$0xff]
    %v365 = vld [vmem:[#allocation2 + $0x998] sm:$0xff]
    %v366 = vld [vmem:[#allocation2 + $0x9a0] sm:$0xff]
    %v367 = vld [vmem:[#allocation2 + $0x9a8] sm:$0xff]
    %v368 = vld [vmem:[#allocation2 + $0x9b0] sm:$0xff]
    %v369 = vld [vmem:[#allocation2 + $0x9b8] sm:$0xff]
    %v370 = vld [vmem:[#allocation2 + $0x9c0] sm:$0xff]
    %v371 = vld [vmem:[#allocation2 + $0x9c8] sm:$0xff]
    %v372 = vld [vmem:[#allocation2 + $0x9d0] sm:$0xff]
    %v373 = vld [vmem:[#allocation2 + $0x9d8] sm:$0xff]
    %v374 = vld [vmem:[#allocation2 + $0x9e0] sm:$0xff]
    %v375 = vld [vmem:[#allocation2 + $0x9e8] sm:$0xff]
    %v376 = vld [vmem:[#allocation2 + $0x9f0] sm:$0xff]
    %v377 = vld [vmem:[#allocation2 + $0x9f8] sm:$0xff]
    %v378 = vld [vmem:[#allocation2 + $0xa00] sm:$0xff]
    %v379 = vld [vmem:[#allocation2 + $0xa08] sm:$0xff]
    %v380 = vld [vmem:[#allocation2 + $0xa10] sm:$0xff]
    %v381 = vld [vmem:[#allocation2 + $0xa18] sm:$0xff]
    %v382 = vld [vmem:[#allocation2 + $0xa20] sm:$0xff]
    %v383 = vld [vmem:[#allocation2 + $0xa28] sm:$0xff]
    %v384 = vld [vmem:[#allocation2 + $0xa30] sm:$0xff]
    %v385 = vld [vmem:[#allocation2 + $0xa38] sm:$0xff]
    %v386 = vld [vmem:[#allocation2 + $0xa40] sm:$0xff]
    %v387 = vld [vmem:[#allocation2 + $0xa48] sm:$0xff]
    %v388 = vld [vmem:[#allocation2 + $0xa50] sm:$0xff]
    %v389 = vld [vmem:[#allocation2 + $0xa58] sm:$0xff]
    %v390 = vld [vmem:[#allocation2 + $0xa60] sm:$0xff]
    %v391 = vld [vmem:[#allocation2 + $0xa68] sm:$0xff]
    %v392 = vld [vmem:[#allocation2 + $0xa70] sm:$0xff]
    %v393 = vld [vmem:[#allocation2 + $0xa78] sm:$0xff]
    %v394 = vld [vmem:[#allocation2 + $0xa80] sm:$0xff]
    %v395 = vld [vmem:[#allocation2 + $0xa88] sm:$0xff]
    %v396 = vld [vmem:[#allocation2 + $0xa90] sm:$0xff]
    %v397 = vld [vmem:[#allocation2 + $0xa98] sm:$0xff]
    %v398 = vld [vmem:[#allocation2 + $0xaa0] sm:$0xff]
    %v399 = vld [vmem:[#allocation2 + $0xaa8] sm:$0xff]
    %v400 = vld [vmem:[#allocation2 + $0xab0] sm:$0xff]
    %v401 = vld [vmem:[#allocation2 + $0xab8] sm:$0xff]
    %v402 = vld [vmem:[#allocation2 + $0xac0] sm:$0xff]
    %v403 = vld [vmem:[#allocation2 + $0xac8] sm:$0xff]
    %v404 = vld [vmem:[#allocation2 + $0xad0] sm:$0xff]
    %v405 = vld [vmem:[#allocation2 + $0xad8] sm:$0xff]
    %v406 = vld [vmem:[#allocation2 + $0xae0] sm:$0xff]
    %v407 = vld [vmem:[#allocation2 + $0xae8] sm:$0xff]
    %v408 = vld [vmem:[#allocation2 + $0xaf0] sm:$0xff]
    %v409 = vld [vmem:[#allocation2 + $0xaf8] sm:$0xff]
    %v410 = vld [vmem:[#allocation2 + $0xb00] sm:$0xff]
    %v411 = vld [vmem:[#allocation2 + $0xb08] sm:$0xff]
    %v412 = vld [vmem:[#allocation2 + $0xb10] sm:$0xff]
    %v413 = vld [vmem:[#allocation2 + $0xb18] sm:$0xff]
    %v414 = vld [vmem:[#allocation2 + $0xb20] sm:$0xff]
    %v415 = vld [vmem:[#allocation2 + $0xb28] sm:$0xff]
    %v416 = vld [vmem:[#allocation2 + $0xb30] sm:$0xff]
    %v417 = vld [vmem:[#allocation2 + $0xb38] sm:$0xff]
    %v418 = vld [vmem:[#allocation2 + $0xb40] sm:$0xff]
    %v419 = vld [vmem:[#allocation2 + $0xb48] sm:$0xff]
    %v420 = vld [vmem:[#allocation2 + $0xb50] sm:$0xff]
    %v421 = vld [vmem:[#allocation2 + $0xb58] sm:$0xff]
    %v422 = vld [vmem:[#allocation2 + $0xb60] sm:$0xff]
    %v423 = vld [vmem:[#allocation2 + $0xb68] sm:$0xff]
    %v424 = vld [vmem:[#allocation2 + $0xb70] sm:$0xff]
    %v425 = vld [vmem:[#allocation2 + $0xb78] sm:$0xff]
    %v426 = vld [vmem:[#allocation2 + $0xb80] sm:$0xff]
    %v427 = vld [vmem:[#allocation2 + $0xb88] sm:$0xff]
    %v428 = vld [vmem:[#allocation2 + $0xb90] sm:$0xff]
    %v429 = vld [vmem:[#allocation2 + $0xb98] sm:$0xff]
    %v430 = vld [vmem:[#allocation2 + $0xba0] sm:$0xff]
    %v431 = vld [vmem:[#allocation2 + $0xba8] sm:$0xff]
    %v432 = vld [vmem:[#allocation2 + $0xbb0] sm:$0xff]
    %v433 = vld [vmem:[#allocation2 + $0xbb8] sm:$0xff]
    %v434 = vld [vmem:[#allocation2 + $0xbc0] sm:$0xff]
    %v435 = vld [vmem:[#allocation2 + $0xbc8] sm:$0xff]
    %v436 = vld [vmem:[#allocation2 + $0xbd0] sm:$0xff]
    %v437 = vld [vmem:[#allocation2 + $0xbd8] sm:$0xff]
    %v438 = vld [vmem:[#allocation2 + $0xbe0] sm:$0xff]
    %v439 = vld [vmem:[#allocation2 + $0xbe8] sm:$0xff]
    %v440 = vld [vmem:[#allocation2 + $0xbf0] sm:$0xff]
    %v441 = vld [vmem:[#allocation2 + $0xbf8] sm:$0xff]
    %v442 = vld [vmem:[#allocation2 + $0xc00] sm:$0xff]
    %v443 = vld [vmem:[#allocation2 + $0xc08] sm:$0xff]
    %v444 = vld [vmem:[#allocation2 + $0xc10] sm:$0xff]
    %v445 = vld [vmem:[#allocation2 + $0xc18] sm:$0xff]
    %v446 = vld [vmem:[#allocation2 + $0xc20] sm:$0xff]
    %v447 = vld [vmem:[#allocation2 + $0xc28] sm:$0xff]
    %v448 = vld [vmem:[#allocation2 + $0xc30] sm:$0xff]
    %v449 = vld [vmem:[#allocation2 + $0xc38] sm:$0xff]
    %v450 = vld [vmem:[#allocation2 + $0xc40] sm:$0xff]
    %v451 = vld [vmem:[#allocation2 + $0xc48] sm:$0xff]
    %v452 = vld [vmem:[#allocation2 + $0xc50] sm:$0xff]
    %v453 = vld [vmem:[#allocation2 + $0xc58] sm:$0xff]
    %v454 = vld [vmem:[#allocation2 + $0xc60] sm:$0xff]
    %v455 = vld [vmem:[#allocation2 + $0xc68] sm:$0xff]
    %v456 = vld [vmem:[#allocation2 + $0xc70] sm:$0xff]
    %v457 = vld [vmem:[#allocation2 + $0xc78] sm:$0xff]
    %v458 = vld [vmem:[#allocation2 + $0xc80] sm:$0xff]
    %v459 = vld [vmem:[#allocation2 + $0xc88] sm:$0xff]
    %v460 = vld [vmem:[#allocation2 + $0xc90] sm:$0xff]
    %v461 = vld [vmem:[#allocation2 + $0xc98] sm:$0xff]
    %v462 = vld [vmem:[#allocation2 + $0xca0] sm:$0xff]
    %v463 = vld [vmem:[#allocation2 + $0xca8] sm:$0xff]
    %v464 = vld [vmem:[#allocation2 + $0xcb0] sm:$0xff]
    %v465 = vld [vmem:[#allocation2 + $0xcb8] sm:$0xff]
    %v466 = vld [vmem:[#allocation2 + $0xcc0] sm:$0xff]
    %v467 = vld [vmem:[#allocation2 + $0xcc8] sm:$0xff]
    %v468 = vld [vmem:[#allocation2 + $0xcd0] sm:$0xff]
    %v469 = vld [vmem:[#allocation2 + $0xcd8] sm:$0xff]
    %v470 = vld [vmem:[#allocation2 + $0xce0] sm:$0xff]
    %v471 = vld [vmem:[#allocation2 + $0xce8] sm:$0xff]
    %v472 = vld [vmem:[#allocation2 + $0xcf0] sm:$0xff]
    %v473 = vld [vmem:[#allocation2 + $0xcf8] sm:$0xff]
    %v474 = vld [vmem:[#allocation2 + $0xd00] sm:$0xff]
    %v475 = vld [vmem:[#allocation2 + $0xd08] sm:$0xff]
    %v476 = vld [vmem:[#allocation2 + $0xd10] sm:$0xff]
    %v477 = vld [vmem:[#allocation2 + $0xd18] sm:$0xff]
    %v478 = vld [vmem:[#allocation2 + $0xd20] sm:$0xff]
    %v479 = vld [vmem:[#allocation2 + $0xd28] sm:$0xff]
    %v480 = vld [vmem:[#allocation2 + $0xd30] sm:$0xff]
    %v481 = vld [vmem:[#allocation2 + $0xd38] sm:$0xff]
    %v482 = vld [vmem:[#allocation2 + $0xd40] sm:$0xff]
    %v483 = vld [vmem:[#allocation2 + $0xd48] sm:$0xff]
    %v484 = vld [vmem:[#allocation2 + $0xd50] sm:$0xff]
    %v485 = vld [vmem:[#allocation2 + $0xd58] sm:$0xff]
    %v486 = vld [vmem:[#allocation2 + $0xd60] sm:$0xff]
    %v487 = vld [vmem:[#allocation2 + $0xd68] sm:$0xff]
    %v488 = vld [vmem:[#allocation2 + $0xd70] sm:$0xff]
    %v489 = vld [vmem:[#allocation2 + $0xd78] sm:$0xff]
    %v490 = vld [vmem:[#allocation2 + $0xd80] sm:$0xff]
    %v491 = vld [vmem:[#allocation2 + $0xd88] sm:$0xff]
    %v492 = vld [vmem:[#allocation2 + $0xd90] sm:$0xff]
    %v493 = vld [vmem:[#allocation2 + $0xd98] sm:$0xff]
    %v494 = vld [vmem:[#allocation2 + $0xda0] sm:$0xff]
    %v495 = vld [vmem:[#allocation2 + $0xda8] sm:$0xff]
    %v496 = vld [vmem:[#allocation2 + $0xdb0] sm:$0xff]
    %v497 = vld [vmem:[#allocation2 + $0xdb8] sm:$0xff]
    %v498 = vld [vmem:[#allocation2 + $0xdc0] sm:$0xff]
    %v499 = vld [vmem:[#allocation2 + $0xdc8] sm:$0xff]
    %v500 = vld [vmem:[#allocation2 + $0xdd0] sm:$0xff]
    %v501 = vld [vmem:[#allocation2 + $0xdd8] sm:$0xff]
    %v502 = vld [vmem:[#allocation2 + $0xde0] sm:$0xff]
    %v503 = vld [vmem:[#allocation2 + $0xde8] sm:$0xff]
    %v504 = vld [vmem:[#allocation2 + $0xdf0] sm:$0xff]
    %v505 = vld [vmem:[#allocation2 + $0xdf8] sm:$0xff]
    %v506 = vld [vmem:[#allocation2 + $0xe00] sm:$0xff]
    %v507 = vld [vmem:[#allocation2 + $0xe08] sm:$0xff]
    %v508 = vld [vmem:[#allocation2 + $0xe10] sm:$0xff]
    %v509 = vld [vmem:[#allocation2 + $0xe18] sm:$0xff]
    %v510 = vld [vmem:[#allocation2 + $0xe20] sm:$0xff]
    %v511 = vld [vmem:[#allocation2 + $0xe28] sm:$0xff]
    %v512 = vld [vmem:[#allocation2 + $0xe30] sm:$0xff]
    %v513 = vld [vmem:[#allocation2 + $0xe38] sm:$0xff]
    %v514 = vld [vmem:[#allocation2 + $0xe40] sm:$0xff]
    %v515 = vld [vmem:[#allocation2 + $0xe48] sm:$0xff]
    %v516 = vld [vmem:[#allocation2 + $0xe50] sm:$0xff]
    %v517 = vld [vmem:[#allocation2 + $0xe58] sm:$0xff]
    %v518 = vld [vmem:[#allocation2 + $0xe60] sm:$0xff]
    %v519 = vld [vmem:[#allocation2 + $0xe68] sm:$0xff]
    %v520 = vld [vmem:[#allocation2 + $0xe70] sm:$0xff]
    %v521 = vld [vmem:[#allocation2 + $0xe78] sm:$0xff]
    %v522 = vld [vmem:[#allocation2 + $0xe80] sm:$0xff]
    %v523 = vld [vmem:[#allocation2 + $0xe88] sm:$0xff]
    %v524 = vld [vmem:[#allocation2 + $0xe90] sm:$0xff]
    %v525 = vld [vmem:[#allocation2 + $0xe98] sm:$0xff]
    %v526 = vld [vmem:[#allocation2 + $0xea0] sm:$0xff]
    %v527 = vld [vmem:[#allocation2 + $0xea8] sm:$0xff]
    %v528 = vld [vmem:[#allocation2 + $0xeb0] sm:$0xff]
    %v529 = vld [vmem:[#allocation2 + $0xeb8] sm:$0xff]
    %v530 = vld [vmem:[#allocation2 + $0xec0] sm:$0xff]
    %v531 = vld [vmem:[#allocation2 + $0xec8] sm:$0xff]
    %v532 = vld [vmem:[#allocation2 + $0xed0] sm:$0xff]
    %v533 = vld [vmem:[#allocation2 + $0xed8] sm:$0xff]
    %v534 = vld [vmem:[#allocation2 + $0xee0] sm:$0xff]
    %v535 = vld [vmem:[#allocation2 + $0xee8] sm:$0xff]
    %v536 = vld [vmem:[#allocation2 + $0xef0] sm:$0xff]
    %v537 = vld [vmem:[#allocation2 + $0xef8] sm:$0xff]
    %v538 = vld [vmem:[#allocation2 + $0xf00] sm:$0xff]
    %v539 = vld [vmem:[#allocation2 + $0xf08] sm:$0xff]
    %v540 = vld [vmem:[#allocation2 + $0xf10] sm:$0xff]
    %v541 = vld [vmem:[#allocation2 + $0xf18] sm:$0xff]
    %v542 = vld [vmem:[#allocation2 + $0xf20] sm:$0xff]
    %v543 = vld [vmem:[#allocation2 + $0xf28] sm:$0xff]
    %v544 = vld [vmem:[#allocation2 + $0xf30] sm:$0xff]
    %v545 = vld [vmem:[#allocation2 + $0xf38] sm:$0xff]
    %v546 = vld [vmem:[#allocation2 + $0xf40] sm:$0xff]
    %v547 = vld [vmem:[#allocation2 + $0xf48] sm:$0xff]
    %v548 = vld [vmem:[#allocation2 + $0xf50] sm:$0xff]
    %v549 = vld [vmem:[#allocation2 + $0xf58] sm:$0xff]
    %v550 = vld [vmem:[#allocation2 + $0xf60] sm:$0xff]
    %v551 = vld [vmem:[#allocation2 + $0xf68] sm:$0xff]
    %v552 = vld [vmem:[#allocation2 + $0xf70] sm:$0xff]
    %v553 = vld [vmem:[#allocation2 + $0xf78] sm:$0xff]
    %v554 = vld [vmem:[#allocation2 + $0xf80] sm:$0xff]
    %v555 = vld [vmem:[#allocation2 + $0xf88] sm:$0xff]
    %v556 = vld [vmem:[#allocation2 + $0xf90] sm:$0xff]
    %v557 = vld [vmem:[#allocation2 + $0xf98] sm:$0xff]
    %v558 = vld [vmem:[#allocation2 + $0xfa0] sm:$0xff]
    %v559 = vld [vmem:[#allocation2 + $0xfa8] sm:$0xff]
    %v560 = vld [vmem:[#allocation2 + $0xfb0] sm:$0xff]
    %v561 = vld [vmem:[#allocation2 + $0xfb8] sm:$0xff]
    %v562 = vld [vmem:[#allocation2 + $0xfc0] sm:$0xff]
    %v563 = vld [vmem:[#allocation2 + $0xfc8] sm:$0xff]
    %v564 = vld [vmem:[#allocation2 + $0xfd0] sm:$0xff]
    %v565 = vld [vmem:[#allocation2 + $0xfd8] sm:$0xff]
    %v566 = vld [vmem:[#allocation2 + $0xfe0] sm:$0xff]
    %v567 = vld [vmem:[#allocation2 + $0xfe8] sm:$0xff]
    %v568 = vld [vmem:[#allocation2 + $0xff0] sm:$0xff]
    %v569 = vld [vmem:[#allocation2 + $0xff8] sm:$0xff]
    %v570 = vld [vmem:[#allocation2 + $0x1000] sm:$0xff]
    %v571 = vld [vmem:[#allocation2 + $0x1008] sm:$0xff]
    %v572 = vld [vmem:[#allocation2 + $0x1010] sm:$0xff]
    %v573 = vld [vmem:[#allocation2 + $0x1018] sm:$0xff]
    %v574 = vld [vmem:[#allocation2 + $0x1020] sm:$0xff]
    %v575 = vld [vmem:[#allocation2 + $0x1028] sm:$0xff]
    %v576 = vld [vmem:[#allocation2 + $0x1030] sm:$0xff]
    %v577 = vld [vmem:[#allocation2 + $0x1038] sm:$0xff]
    %v578 = vld [vmem:[#allocation2 + $0x1040] sm:$0xff]
    %v579 = vld [vmem:[#allocation2 + $0x1048] sm:$0xff]
    %v580 = vld [vmem:[#allocation2 + $0x1050] sm:$0xff]
    %v581 = vld [vmem:[#allocation2 + $0x1058] sm:$0xff]
    %v582 = vld [vmem:[#allocation2 + $0x1060] sm:$0xff]
    %v583 = vld [vmem:[#allocation2 + $0x1068] sm:$0xff]
    %v584 = vld [vmem:[#allocation2 + $0x1070] sm:$0xff]
    %v585 = vld [vmem:[#allocation2 + $0x1078] sm:$0xff]
    %v586 = vld [vmem:[#allocation2 + $0x1080] sm:$0xff]
    %v587 = vld [vmem:[#allocation2 + $0x1088] sm:$0xff]
    %v588 = vld [vmem:[#allocation2 + $0x1090] sm:$0xff]
    %v589 = vld [vmem:[#allocation2 + $0x1098] sm:$0xff]
    %v590 = vld [vmem:[#allocation2 + $0x10a0] sm:$0xff]
    %v591 = vld [vmem:[#allocation2 + $0x10a8] sm:$0xff]
    %v592 = vld [vmem:[#allocation2 + $0x10b0] sm:$0xff]
    %v593 = vld [vmem:[#allocation2 + $0x10b8] sm:$0xff]
    %v594 = vld [vmem:[#allocation2 + $0x10c0] sm:$0xff]
    %v595 = vld [vmem:[#allocation2 + $0x10c8] sm:$0xff]
    %v596 = vld [vmem:[#allocation2 + $0x10d0] sm:$0xff]
    %v597 = vld [vmem:[#allocation2 + $0x10d8] sm:$0xff]
    %v598 = vld [vmem:[#allocation2 + $0x10e0] sm:$0xff]
    %v599 = vld [vmem:[#allocation2 + $0x10e8] sm:$0xff]
    %v600 = vld [vmem:[#allocation2 + $0x10f0] sm:$0xff]
    %v601 = vld [vmem:[#allocation2 + $0x10f8] sm:$0xff]
    %v602 = vld [vmem:[#allocation2 + $0x1100] sm:$0xff]
    %v603 = vld [vmem:[#allocation2 + $0x1108] sm:$0xff]
    %v604 = vld [vmem:[#allocation2 + $0x1110] sm:$0xff]
    %v605 = vld [vmem:[#allocation2 + $0x1118] sm:$0xff]
    %v606 = vld [vmem:[#allocation2 + $0x1120] sm:$0xff]
    %v607 = vld [vmem:[#allocation2 + $0x1128] sm:$0xff]
    %v608 = vld [vmem:[#allocation2 + $0x1130] sm:$0xff]
    %v609 = vld [vmem:[#allocation2 + $0x1138] sm:$0xff]
    %v610 = vld [vmem:[#allocation2 + $0x1140] sm:$0xff]
    %v611 = vld [vmem:[#allocation2 + $0x1148] sm:$0xff]
    %v612 = vld [vmem:[#allocation2 + $0x1150] sm:$0xff]
    %v613 = vld [vmem:[#allocation2 + $0x1158] sm:$0xff]
    %v614 = vld [vmem:[#allocation2 + $0x1160] sm:$0xff]
    %v615 = vld [vmem:[#allocation2 + $0x1168] sm:$0xff]
    %v616 = vld [vmem:[#allocation2 + $0x1170] sm:$0xff]
    %v617 = vld [vmem:[#allocation2 + $0x1178] sm:$0xff]
    %v618 = vld [vmem:[#allocation2 + $0x1180] sm:$0xff]
    %v619 = vld [vmem:[#allocation2 + $0x1188] sm:$0xff]
    %v620 = vld [vmem:[#allocation2 + $0x1190] sm:$0xff]
    %v621 = vld [vmem:[#allocation2 + $0x1198] sm:$0xff]
    %v622 = vld [vmem:[#allocation2 + $0x11a0] sm:$0xff]
    %v623 = vld [vmem:[#allocation2 + $0x11a8] sm:$0xff]
    %v624 = vld [vmem:[#allocation2 + $0x11b0] sm:$0xff]
    %v625 = vld [vmem:[#allocation2 + $0x11b8] sm:$0xff]
    %v626 = vld [vmem:[#allocation2 + $0x11c0] sm:$0xff]
    %v627 = vld [vmem:[#allocation2 + $0x11c8] sm:$0xff]
    %v628 = vld [vmem:[#allocation2 + $0x11d0] sm:$0xff]
    %v629 = vld [vmem:[#allocation2 + $0x11d8] sm:$0xff]
    %v630 = vld [vmem:[#allocation2 + $0x11e0] sm:$0xff]
    %v631 = vld [vmem:[#allocation2 + $0x11e8] sm:$0xff]
    %v632 = vld [vmem:[#allocation2 + $0x11f0] sm:$0xff]
    %v633 = vld [vmem:[#allocation2 + $0x11f8] sm:$0xff]
    %v634 = vld [vmem:[#allocation2 + $0x1200] sm:$0xff]
    %v635 = vld [vmem:[#allocation2 + $0x1208] sm:$0xff]
    %v636 = vld [vmem:[#allocation2 + $0x1210] sm:$0xff]
    %v637 = vld [vmem:[#allocation2 + $0x1218] sm:$0xff]
    %v638 = vld [vmem:[#allocation2 + $0x1220] sm:$0xff]
    %v639 = vld [vmem:[#allocation2 + $0x1228] sm:$0xff]
    %v640 = vld [vmem:[#allocation2 + $0x1230] sm:$0xff]
    %v641 = vld [vmem:[#allocation2 + $0x1238] sm:$0xff]
    %v642 = vld [vmem:[#allocation2 + $0x1240] sm:$0xff]
    %v643 = vld [vmem:[#allocation2 + $0x1248] sm:$0xff]
    %v644 = vld [vmem:[#allocation2 + $0x1250] sm:$0xff]
    %v645 = vld [vmem:[#allocation2 + $0x1258] sm:$0xff]
    %v646 = vld [vmem:[#allocation2 + $0x1260] sm:$0xff]
    %v647 = vld [vmem:[#allocation2 + $0x1268] sm:$0xff]
    %v648 = vld [vmem:[#allocation2 + $0x1270] sm:$0xff]
    %v649 = vld [vmem:[#allocation2 + $0x1278] sm:$0xff]
    %v650 = vld [vmem:[#allocation2 + $0x1280] sm:$0xff]
    %v651 = vld [vmem:[#allocation2 + $0x1288] sm:$0xff]
    %v652 = vld [vmem:[#allocation2 + $0x1290] sm:$0xff]
    %v653 = vld [vmem:[#allocation2 + $0x1298] sm:$0xff]
    %v654 = vld [vmem:[#allocation2 + $0x12a0] sm:$0xff]
    %v655 = vld [vmem:[#allocation2 + $0x12a8] sm:$0xff]
    %v656 = vld [vmem:[#allocation2 + $0x12b0] sm:$0xff]
    %v657 = vld [vmem:[#allocation2 + $0x12b8] sm:$0xff]
    %v658 = vld [vmem:[#allocation2 + $0x12c0] sm:$0xff]
    %v659 = vld [vmem:[#allocation2 + $0x12c8] sm:$0xff]
    %v660 = vld [vmem:[#allocation2 + $0x12d0] sm:$0xff]
    %v661 = vld [vmem:[#allocation2 + $0x12d8] sm:$0xff]
    %v662 = vld [vmem:[#allocation2 + $0x12e0] sm:$0xff]
    %v663 = vld [vmem:[#allocation2 + $0x12e8] sm:$0xff]
    %v664 = vld [vmem:[#allocation2 + $0x12f0] sm:$0xff]
    %v665 = vld [vmem:[#allocation2 + $0x12f8] sm:$0xff]
    %v666 = vld [vmem:[#allocation2 + $0x1300] sm:$0xff]
    %v667 = vld [vmem:[#allocation2 + $0x1308] sm:$0xff]
    %v668 = vld [vmem:[#allocation2 + $0x1310] sm:$0xff]
    %v669 = vld [vmem:[#allocation2 + $0x1318] sm:$0xff]
    %v670 = vld [vmem:[#allocation2 + $0x1320] sm:$0xff]
    %v671 = vld [vmem:[#allocation2 + $0x1328] sm:$0xff]
    %v672 = vld [vmem:[#allocation2 + $0x1330] sm:$0xff]
    %v673 = vld [vmem:[#allocation2 + $0x1338] sm:$0xff]
    %v674 = vld [vmem:[#allocation2 + $0x1340] sm:$0xff]
    %v675 = vld [vmem:[#allocation2 + $0x1348] sm:$0xff]
    %v676 = vld [vmem:[#allocation2 + $0x1350] sm:$0xff]
    %v677 = vld [vmem:[#allocation2 + $0x1358] sm:$0xff]
    %v678 = vld [vmem:[#allocation2 + $0x1360] sm:$0xff]
    %v679 = vld [vmem:[#allocation2 + $0x1368] sm:$0xff]
    %v680 = vld [vmem:[#allocation2 + $0x1370] sm:$0xff]
    %v681 = vld [vmem:[#allocation2 + $0x1378] sm:$0xff]
    %v682 = vld [vmem:[#allocation2 + $0x1380] sm:$0xff]
    %v683 = vld [vmem:[#allocation2 + $0x1388] sm:$0xff]
    %v684 = vld [vmem:[#allocation2 + $0x1390] sm:$0xff]
    %v685 = vld [vmem:[#allocation2 + $0x1398] sm:$0xff]
    %v686 = vld [vmem:[#allocation2 + $0x13a0] sm:$0xff]
    %v687 = vld [vmem:[#allocation2 + $0x13a8] sm:$0xff]
    %v688 = vld [vmem:[#allocation2 + $0x13b0] sm:$0xff]
    %v689 = vld [vmem:[#allocation2 + $0x13b8] sm:$0xff]
    %v690 = vld [vmem:[#allocation2 + $0x13c0] sm:$0xff]
    %v691 = vld [vmem:[#allocation2 + $0x13c8] sm:$0xff]
    %v692 = vld [vmem:[#allocation2 + $0x13d0] sm:$0xff]
    %v693 = vld [vmem:[#allocation2 + $0x13d8] sm:$0xff]
    %v694 = vld [vmem:[#allocation2 + $0x13e0] sm:$0xff]
    %v695 = vld [vmem:[#allocation2 + $0x13e8] sm:$0xff]
    %v696 = vld [vmem:[#allocation2 + $0x13f0] sm:$0xff]
    %v697 = vld [vmem:[#allocation2 + $0x13f8] sm:$0xff]
    %v698 = vld [vmem:[#allocation2 + $0x1400] sm:$0xff]
    %v699 = vld [vmem:[#allocation2 + $0x1408] sm:$0xff]
    %v700 = vld [vmem:[#allocation2 + $0x1410] sm:$0xff]
    %v701 = vld [vmem:[#allocation2 + $0x1418] sm:$0xff]
    %v702 = vld [vmem:[#allocation2 + $0x1420] sm:$0xff]
    %v703 = vld [vmem:[#allocation2 + $0x1428] sm:$0xff]
    %v704 = vld [vmem:[#allocation2 + $0x1430] sm:$0xff]
    %v705 = vld [vmem:[#allocation2 + $0x1438] sm:$0xff]
    %v706 = vld [vmem:[#allocation2 + $0x1440] sm:$0xff]
    %v707 = vld [vmem:[#allocation2 + $0x1448] sm:$0xff]
    %v708 = vld [vmem:[#allocation2 + $0x1450] sm:$0xff]
    %v709 = vld [vmem:[#allocation2 + $0x1458] sm:$0xff]
    %v710 = vld [vmem:[#allocation2 + $0x1460] sm:$0xff]
    %v711 = vld [vmem:[#allocation2 + $0x1468] sm:$0xff]
    %v712 = vld [vmem:[#allocation2 + $0x1470] sm:$0xff]
    %v713 = vld [vmem:[#allocation2 + $0x1478] sm:$0xff]
    %v714 = vld [vmem:[#allocation2 + $0x1480] sm:$0xff]
    %v715 = vld [vmem:[#allocation2 + $0x1488] sm:$0xff]
    %v716 = vld [vmem:[#allocation2 + $0x1490] sm:$0xff]
    %v717 = vld [vmem:[#allocation2 + $0x1498] sm:$0xff]
    %v718 = vld [vmem:[#allocation2 + $0x14a0] sm:$0xff]
    %v719 = vld [vmem:[#allocation2 + $0x14a8] sm:$0xff]
    %v720 = vld [vmem:[#allocation2 + $0x14b0] sm:$0xff]
    %v721 = vld [vmem:[#allocation2 + $0x14b8] sm:$0xff]
    %v722 = vld [vmem:[#allocation2 + $0x14c0] sm:$0xff]
    %v723 = vld [vmem:[#allocation2 + $0x14c8] sm:$0xff]
    %v724 = vld [vmem:[#allocation2 + $0x14d0] sm:$0xff]
    %v725 = vld [vmem:[#allocation2 + $0x14d8] sm:$0xff]
    %v726 = vld [vmem:[#allocation2 + $0x14e0] sm:$0xff]
    %v727 = vld [vmem:[#allocation2 + $0x14e8] sm:$0xff]
    %v728 = vld [vmem:[#allocation2 + $0x14f0] sm:$0xff]
    %v729 = vld [vmem:[#allocation2 + $0x14f8] sm:$0xff]
    %v730 = vld [vmem:[#allocation2 + $0x1500] sm:$0xff]
    %v731 = vld [vmem:[#allocation2 + $0x1508] sm:$0xff]
    %v732 = vld [vmem:[#allocation2 + $0x1510] sm:$0xff]
    %v733 = vld [vmem:[#allocation2 + $0x1518] sm:$0xff]
    %v734 = vld [vmem:[#allocation2 + $0x1520] sm:$0xff]
    %v735 = vld [vmem:[#allocation2 + $0x1528] sm:$0xff]
    %v736 = vld [vmem:[#allocation2 + $0x1530] sm:$0xff]
    %v737 = vld [vmem:[#allocation2 + $0x1538] sm:$0xff]
    %v738 = vld [vmem:[#allocation2 + $0x1540] sm:$0xff]
    %v739 = vld [vmem:[#allocation2 + $0x1548] sm:$0xff]
    %v740 = vld [vmem:[#allocation2 + $0x1550] sm:$0xff]
    %v741 = vld [vmem:[#allocation2 + $0x1558] sm:$0xff]
    %v742 = vld [vmem:[#allocation2 + $0x1560] sm:$0xff]
    %v743 = vld [vmem:[#allocation2 + $0x1568] sm:$0xff]
    %v744 = vld [vmem:[#allocation2 + $0x1570] sm:$0xff]
    %v745 = vld [vmem:[#allocation2 + $0x1578] sm:$0xff]
    %v746 = vld [vmem:[#allocation2 + $0x1580] sm:$0xff]
    %v747 = vld [vmem:[#allocation2 + $0x1588] sm:$0xff]
    %v748 = vld [vmem:[#allocation2 + $0x1590] sm:$0xff]
    %v749 = vld [vmem:[#allocation2 + $0x1598] sm:$0xff]
    %v750 = vld [vmem:[#allocation2 + $0x15a0] sm:$0xff]
    %v751 = vld [vmem:[#allocation2 + $0x15a8] sm:$0xff]
    %v752 = vld [vmem:[#allocation2 + $0x15b0] sm:$0xff]
    %v753 = vld [vmem:[#allocation2 + $0x15b8] sm:$0xff]
    %v754 = vld [vmem:[#allocation2 + $0x15c0] sm:$0xff]
    %v755 = vld [vmem:[#allocation2 + $0x15c8] sm:$0xff]
    %v756 = vld [vmem:[#allocation2 + $0x15d0] sm:$0xff]
    %v757 = vld [vmem:[#allocation2 + $0x15d8] sm:$0xff]
    %v758 = vld [vmem:[#allocation2 + $0x15e0] sm:$0xff]
    %v759 = vld [vmem:[#allocation2 + $0x15e8] sm:$0xff]
    %v760 = vld [vmem:[#allocation2 + $0x15f0] sm:$0xff]
    %v761 = vld [vmem:[#allocation2 + $0x15f8] sm:$0xff]
    %v762 = vld [vmem:[#allocation2 + $0x1600] sm:$0xff]
    %v763 = vld [vmem:[#allocation2 + $0x1608] sm:$0xff]
    %v764 = vld [vmem:[#allocation2 + $0x1610] sm:$0xff]
    %v765 = vld [vmem:[#allocation2 + $0x1618] sm:$0xff]
    %v766 = vld [vmem:[#allocation2 + $0x1620] sm:$0xff]
    %v767 = vld [vmem:[#allocation2 + $0x1628] sm:$0xff]
    %v768 = vld [vmem:[#allocation2 + $0x1630] sm:$0xff]
    %v769 = vld [vmem:[#allocation2 + $0x1638] sm:$0xff]
    %v770 = vld [vmem:[#allocation2 + $0x1640] sm:$0xff]
    %v771 = vld [vmem:[#allocation2 + $0x1648] sm:$0xff]
    %v772 = vld [vmem:[#allocation2 + $0x1650] sm:$0xff]
    %v773 = vld [vmem:[#allocation2 + $0x1658] sm:$0xff]
    %v774 = vld [vmem:[#allocation2 + $0x1660] sm:$0xff]
    %v775 = vld [vmem:[#allocation2 + $0x1668] sm:$0xff]
    %v776 = vld [vmem:[#allocation2 + $0x1670] sm:$0xff]
    %v777 = vld [vmem:[#allocation2 + $0x1678] sm:$0xff]
    %v778 = vld [vmem:[#allocation2 + $0x1680] sm:$0xff]
    %v779 = vld [vmem:[#allocation2 + $0x1688] sm:$0xff]
    %v780 = vld [vmem:[#allocation2 + $0x1690] sm:$0xff]
    %v781 = vld [vmem:[#allocation2 + $0x1698] sm:$0xff]
    %v782 = vld [vmem:[#allocation2 + $0x16a0] sm:$0xff]
    %v783 = vld [vmem:[#allocation2 + $0x16a8] sm:$0xff]
    %v784 = vld [vmem:[#allocation2 + $0x16b0] sm:$0xff]
    %v785 = vld [vmem:[#allocation2 + $0x16b8] sm:$0xff]
    %v786 = vld [vmem:[#allocation2 + $0x16c0] sm:$0xff]
    %v787 = vld [vmem:[#allocation2 + $0x16c8] sm:$0xff]
    %v788 = vld [vmem:[#allocation2 + $0x16d0] sm:$0xff]
    %v789 = vld [vmem:[#allocation2 + $0x16d8] sm:$0xff]
    %v790 = vld [vmem:[#allocation2 + $0x16e0] sm:$0xff]
    %v791 = vld [vmem:[#allocation2 + $0x16e8] sm:$0xff]
    %v792 = vld [vmem:[#allocation2 + $0x16f0] sm:$0xff]
    %v793 = vld [vmem:[#allocation2 + $0x16f8] sm:$0xff]
    %v794 = vld [vmem:[#allocation2 + $0x1700] sm:$0xff]
    %v795 = vld [vmem:[#allocation2 + $0x1708] sm:$0xff]
    %v796 = vld [vmem:[#allocation2 + $0x1710] sm:$0xff]
    %v797 = vld [vmem:[#allocation2 + $0x1718] sm:$0xff]
    %v798 = vld [vmem:[#allocation2 + $0x1720] sm:$0xff]
    %v799 = vld [vmem:[#allocation2 + $0x1728] sm:$0xff]
    %v800 = vld [vmem:[#allocation2 + $0x1730] sm:$0xff]
    %v801 = vld [vmem:[#allocation2 + $0x1738] sm:$0xff]
    %v802 = vld [vmem:[#allocation2 + $0x1740] sm:$0xff]
    %v803 = vld [vmem:[#allocation2 + $0x1748] sm:$0xff]
    %v804 = vld [vmem:[#allocation2 + $0x1750] sm:$0xff]
    %v805 = vld [vmem:[#allocation2 + $0x1758] sm:$0xff]
    %v806 = vld [vmem:[#allocation2 + $0x1760] sm:$0xff]
    %v807 = vld [vmem:[#allocation2 + $0x1768] sm:$0xff]
    %v808 = vld [vmem:[#allocation2 + $0x1770] sm:$0xff]
    %v809 = vld [vmem:[#allocation2 + $0x1778] sm:$0xff]
    %v810 = vld [vmem:[#allocation2 + $0x1780] sm:$0xff]
    %v811 = vld [vmem:[#allocation2 + $0x1788] sm:$0xff]
    %v812 = vld [vmem:[#allocation2 + $0x1790] sm:$0xff]
    %v813 = vld [vmem:[#allocation2 + $0x1798] sm:$0xff]
    %v814 = vld [vmem:[#allocation2 + $0x17a0] sm:$0xff]
    %v815 = vld [vmem:[#allocation2 + $0x17a8] sm:$0xff]
    %v816 = vld [vmem:[#allocation2 + $0x17b0] sm:$0xff]
    %v817 = vld [vmem:[#allocation2 + $0x17b8] sm:$0xff]
    %v818 = vld [vmem:[#allocation2 + $0x17c0] sm:$0xff]
    %v819 = vld [vmem:[#allocation2 + $0x17c8] sm:$0xff]
    %v820 = vld [vmem:[#allocation2 + $0x17d0] sm:$0xff]
    %v821 = vld [vmem:[#allocation2 + $0x17d8] sm:$0xff]
    %v822 = vld [vmem:[#allocation2 + $0x17e0] sm:$0xff]
    %v823 = vld [vmem:[#allocation2 + $0x17e8] sm:$0xff]
    %v824 = vld [vmem:[#allocation2 + $0x17f0] sm:$0xff]
    %v825 = vld [vmem:[#allocation2 + $0x17f8] sm:$0xff]
    %v826 = vld [vmem:[#allocation2 + $0x1800] sm:$0xff]
    %v827 = vld [vmem:[#allocation5] sm:$0x1]
    %v828 = vld [vmem:[#allocation7] sm:$0x1]
    %v829 = vrcp.pop %v828
    %v830 = vmul.f32 %v828, %v829
    %v831 = vsub.f32 1.0, %v830
    %v832 = vmul.f32 %v829, %v831
    %v833 = vadd.f32 %v829, %v832
    %vm834 = vweird.f32 %v828
    %vm835 = vweird.f32 %v829
    %vm836 = vmor %vm834, %vm835
    %v837 = vsel %vm836, %v829, %v833
    %v838 = vand.u32 2147483647, %v828
    %vm839 = vcmp.eq.f32.partialorder %v838, 8.507059e+37
    %v840 = vand.u32 %v828, 2147483648
    %v841 = vor.u32 1.1754944e-38, %v840
    %v842 = vsel %vm839, %v841, %v837
    %v843 = vmul.f32 1.0, %v842
    %v845 = vperm.slane %v827, 0
    %v847 = vsub.f32 %v58, %v845
    %v848 = vsub.f32 %v59, %v845
    %v849 = vsub.f32 %v60, %v845
    %v850 = vsub.f32 %v61, %v845
    %v851 = vsub.f32 %v62, %v845
    %v852 = vsub.f32 %v63, %v845
    %v853 = vsub.f32 %v64, %v845
    %v854 = vsub.f32 %v65, %v845
    %v855 = vsub.f32 %v66, %v845
    %v856 = vsub.f32 %v67, %v845
    %v857 = vsub.f32 %v68, %v845
    %v858 = vsub.f32 %v69, %v845
    %v859 = vsub.f32 %v70, %v845
    %v860 = vsub.f32 %v71, %v845
    %v861 = vsub.f32 %v72, %v845
    %v862 = vsub.f32 %v73, %v845
    %v863 = vsub.f32 %v74, %v845
    %v864 = vsub.f32 %v75, %v845
    %v865 = vsub.f32 %v76, %v845
    %v866 = vsub.f32 %v77, %v845
    %v867 = vsub.f32 %v78, %v845
    %v868 = vsub.f32 %v79, %v845
    %v869 = vsub.f32 %v80, %v845
    %v870 = vsub.f32 %v81, %v845
    %v871 = vsub.f32 %v82, %v845
    %v872 = vsub.f32 %v83, %v845
    %v873 = vsub.f32 %v84, %v845
    %v874 = vsub.f32 %v85, %v845
    %v875 = vsub.f32 %v86, %v845
    %v876 = vsub.f32 %v87, %v845
    %v877 = vsub.f32 %v88, %v845
    %v878 = vsub.f32 %v89, %v845
    %v879 = vsub.f32 %v90, %v845
    %v880 = vsub.f32 %v91, %v845
    %v881 = vsub.f32 %v92, %v845
    %v882 = vsub.f32 %v93, %v845
    %v883 = vsub.f32 %v94, %v845
    %v884 = vsub.f32 %v95, %v845
    %v885 = vsub.f32 %v96, %v845
    %v886 = vsub.f32 %v97, %v845
    %v887 = vsub.f32 %v98, %v845
    %v888 = vsub.f32 %v99, %v845
    %v889 = vsub.f32 %v100, %v845
    %v890 = vsub.f32 %v101, %v845
    %v891 = vsub.f32 %v102, %v845
    %v892 = vsub.f32 %v103, %v845
    %v893 = vsub.f32 %v104, %v845
    %v894 = vsub.f32 %v105, %v845
    %v895 = vsub.f32 %v106, %v845
    %v896 = vsub.f32 %v107, %v845
    %v897 = vsub.f32 %v108, %v845
    %v898 = vsub.f32 %v109, %v845
    %v899 = vsub.f32 %v110, %v845
    %v900 = vsub.f32 %v111, %v845
    %v901 = vsub.f32 %v112, %v845
    %v902 = vsub.f32 %v113, %v845
    %v903 = vsub.f32 %v114, %v845
    %v904 = vsub.f32 %v115, %v845
    %v905 = vsub.f32 %v116, %v845
    %v906 = vsub.f32 %v117, %v845
    %v907 = vsub.f32 %v118, %v845
    %v908 = vsub.f32 %v119, %v845
    %v909 = vsub.f32 %v120, %v845
    %v910 = vsub.f32 %v121, %v845
    %v911 = vsub.f32 %v122, %v845
    %v912 = vsub.f32 %v123, %v845
    %v913 = vsub.f32 %v124, %v845
    %v914 = vsub.f32 %v125, %v845
    %v915 = vsub.f32 %v126, %v845
    %v916 = vsub.f32 %v127, %v845
    %v917 = vsub.f32 %v128, %v845
    %v918 = vsub.f32 %v129, %v845
    %v919 = vsub.f32 %v130, %v845
    %v920 = vsub.f32 %v131, %v845
    %v921 = vsub.f32 %v132, %v845
    %v922 = vsub.f32 %v133, %v845
    %v923 = vsub.f32 %v134, %v845
    %v924 = vsub.f32 %v135, %v845
    %v925 = vsub.f32 %v136, %v845
    %v926 = vsub.f32 %v137, %v845
    %v927 = vsub.f32 %v138, %v845
    %v928 = vsub.f32 %v139, %v845
    %v929 = vsub.f32 %v140, %v845
    %v930 = vsub.f32 %v141, %v845
    %v931 = vsub.f32 %v142, %v845
    %v932 = vsub.f32 %v143, %v845
    %v933 = vsub.f32 %v144, %v845
    %v934 = vsub.f32 %v145, %v845
    %v935 = vsub.f32 %v146, %v845
    %v936 = vsub.f32 %v147, %v845
    %v937 = vsub.f32 %v148, %v845
    %v938 = vsub.f32 %v149, %v845
    %v939 = vsub.f32 %v150, %v845
    %v940 = vsub.f32 %v151, %v845
    %v941 = vsub.f32 %v152, %v845
    %v942 = vsub.f32 %v153, %v845
    %v943 = vsub.f32 %v154, %v845
    %v944 = vsub.f32 %v155, %v845
    %v945 = vsub.f32 %v156, %v845
    %v946 = vsub.f32 %v157, %v845
    %v947 = vsub.f32 %v158, %v845
    %v948 = vsub.f32 %v159, %v845
    %v949 = vsub.f32 %v160, %v845
    %v950 = vsub.f32 %v161, %v845
    %v951 = vsub.f32 %v162, %v845
    %v952 = vsub.f32 %v163, %v845
    %v953 = vsub.f32 %v164, %v845
    %v954 = vsub.f32 %v165, %v845
    %v955 = vsub.f32 %v166, %v845
    %v956 = vsub.f32 %v167, %v845
    %v957 = vsub.f32 %v168, %v845
    %v958 = vsub.f32 %v169, %v845
    %v959 = vsub.f32 %v170, %v845
    %v960 = vsub.f32 %v171, %v845
    %v961 = vsub.f32 %v172, %v845
    %v962 = vsub.f32 %v173, %v845
    %v963 = vsub.f32 %v174, %v845
    %v964 = vsub.f32 %v175, %v845
    %v965 = vsub.f32 %v176, %v845
    %v966 = vsub.f32 %v177, %v845
    %v967 = vsub.f32 %v178, %v845
    %v968 = vsub.f32 %v179, %v845
    %v969 = vsub.f32 %v180, %v845
    %v970 = vsub.f32 %v181, %v845
    %v971 = vsub.f32 %v182, %v845
    %v972 = vsub.f32 %v183, %v845
    %v973 = vsub.f32 %v184, %v845
    %v974 = vsub.f32 %v185, %v845
    %v975 = vsub.f32 %v186, %v845
    %v976 = vsub.f32 %v187, %v845
    %v977 = vsub.f32 %v188, %v845
    %v978 = vsub.f32 %v189, %v845
    %v979 = vsub.f32 %v190, %v845
    %v980 = vsub.f32 %v191, %v845
    %v981 = vsub.f32 %v192, %v845
    %v982 = vsub.f32 %v193, %v845
    %v983 = vsub.f32 %v194, %v845
    %v984 = vsub.f32 %v195, %v845
    %v985 = vsub.f32 %v196, %v845
    %v986 = vsub.f32 %v197, %v845
    %v987 = vsub.f32 %v198, %v845
    %v988 = vsub.f32 %v199, %v845
    %v989 = vsub.f32 %v200, %v845
    %v990 = vsub.f32 %v201, %v845
    %v991 = vsub.f32 %v202, %v845
    %v992 = vsub.f32 %v203, %v845
    %v993 = vsub.f32 %v204, %v845
    %v994 = vsub.f32 %v205, %v845
    %v995 = vsub.f32 %v206, %v845
    %v996 = vsub.f32 %v207, %v845
    %v997 = vsub.f32 %v208, %v845
    %v998 = vsub.f32 %v209, %v845
    %v999 = vsub.f32 %v210, %v845
    %v1000 = vsub.f32 %v211, %v845
    %v1001 = vsub.f32 %v212, %v845
    %v1002 = vsub.f32 %v213, %v845
    %v1003 = vsub.f32 %v214, %v845
    %v1004 = vsub.f32 %v215, %v845
    %v1005 = vsub.f32 %v216, %v845
    %v1006 = vsub.f32 %v217, %v845
    %v1007 = vsub.f32 %v218, %v845
    %v1008 = vsub.f32 %v219, %v845
    %v1009 = vsub.f32 %v220, %v845
    %v1010 = vsub.f32 %v221, %v845
    %v1011 = vsub.f32 %v222, %v845
    %v1012 = vsub.f32 %v223, %v845
    %v1013 = vsub.f32 %v224, %v845
    %v1014 = vsub.f32 %v225, %v845
    %v1015 = vsub.f32 %v226, %v845
    %v1016 = vsub.f32 %v227, %v845
    %v1017 = vsub.f32 %v228, %v845
    %v1018 = vsub.f32 %v229, %v845
    %v1019 = vsub.f32 %v230, %v845
    %v1020 = vsub.f32 %v231, %v845
    %v1021 = vsub.f32 %v232, %v845
    %v1022 = vsub.f32 %v233, %v845
    %v1023 = vsub.f32 %v234, %v845
    %v1024 = vsub.f32 %v235, %v845
    %v1025 = vsub.f32 %v236, %v845
    %v1026 = vsub.f32 %v237, %v845
    %v1027 = vsub.f32 %v238, %v845
    %v1028 = vsub.f32 %v239, %v845
    %v1029 = vsub.f32 %v240, %v845
    %v1030 = vsub.f32 %v241, %v845
    %v1031 = vsub.f32 %v242, %v845
    %v1032 = vsub.f32 %v243, %v845
    %v1033 = vsub.f32 %v244, %v845
    %v1034 = vsub.f32 %v245, %v845
    %v1035 = vsub.f32 %v246, %v845
    %v1036 = vsub.f32 %v247, %v845
    %v1037 = vsub.f32 %v248, %v845
    %v1038 = vsub.f32 %v249, %v845
    %v1039 = vsub.f32 %v250, %v845
    %v1040 = vsub.f32 %v251, %v845
    %v1041 = vsub.f32 %v252, %v845
    %v1042 = vsub.f32 %v253, %v845
    %v1043 = vsub.f32 %v254, %v845
    %v1044 = vsub.f32 %v255, %v845
    %v1045 = vsub.f32 %v256, %v845
    %v1046 = vsub.f32 %v257, %v845
    %v1047 = vsub.f32 %v258, %v845
    %v1048 = vsub.f32 %v259, %v845
    %v1049 = vsub.f32 %v260, %v845
    %v1050 = vsub.f32 %v261, %v845
    %v1051 = vsub.f32 %v262, %v845
    %v1052 = vsub.f32 %v263, %v845
    %v1053 = vsub.f32 %v264, %v845
    %v1054 = vsub.f32 %v265, %v845
    %v1055 = vsub.f32 %v266, %v845
    %v1056 = vsub.f32 %v267, %v845
    %v1057 = vsub.f32 %v268, %v845
    %v1058 = vsub.f32 %v269, %v845
    %v1059 = vsub.f32 %v270, %v845
    %v1060 = vsub.f32 %v271, %v845
    %v1061 = vsub.f32 %v272, %v845
    %v1062 = vsub.f32 %v273, %v845
    %v1063 = vsub.f32 %v274, %v845
    %v1064 = vsub.f32 %v275, %v845
    %v1065 = vsub.f32 %v276, %v845
    %v1066 = vsub.f32 %v277, %v845
    %v1067 = vsub.f32 %v278, %v845
    %v1068 = vsub.f32 %v279, %v845
    %v1069 = vsub.f32 %v280, %v845
    %v1070 = vsub.f32 %v281, %v845
    %v1071 = vsub.f32 %v282, %v845
    %v1072 = vsub.f32 %v283, %v845
    %v1073 = vsub.f32 %v284, %v845
    %v1074 = vsub.f32 %v285, %v845
    %v1075 = vsub.f32 %v286, %v845
    %v1076 = vsub.f32 %v287, %v845
    %v1077 = vsub.f32 %v288, %v845
    %v1078 = vsub.f32 %v289, %v845
    %v1079 = vsub.f32 %v290, %v845
    %v1080 = vsub.f32 %v291, %v845
    %v1081 = vsub.f32 %v292, %v845
    %v1082 = vsub.f32 %v293, %v845
    %v1083 = vsub.f32 %v294, %v845
    %v1084 = vsub.f32 %v295, %v845
    %v1085 = vsub.f32 %v296, %v845
    %v1086 = vsub.f32 %v297, %v845
    %v1087 = vsub.f32 %v298, %v845
    %v1088 = vsub.f32 %v299, %v845
    %v1089 = vsub.f32 %v300, %v845
    %v1090 = vsub.f32 %v301, %v845
    %v1091 = vsub.f32 %v302, %v845
    %v1092 = vsub.f32 %v303, %v845
    %v1093 = vsub.f32 %v304, %v845
    %v1094 = vsub.f32 %v305, %v845
    %v1095 = vsub.f32 %v306, %v845
    %v1096 = vsub.f32 %v307, %v845
    %v1097 = vsub.f32 %v308, %v845
    %v1098 = vsub.f32 %v309, %v845
    %v1099 = vsub.f32 %v310, %v845
    %v1100 = vsub.f32 %v311, %v845
    %v1101 = vsub.f32 %v312, %v845
    %v1102 = vsub.f32 %v313, %v845
    %v1103 = vsub.f32 %v314, %v845
    %v1104 = vsub.f32 %v315, %v845
    %v1105 = vsub.f32 %v316, %v845
    %v1106 = vsub.f32 %v317, %v845
    %v1107 = vsub.f32 %v318, %v845
    %v1108 = vsub.f32 %v319, %v845
    %v1109 = vsub.f32 %v320, %v845
    %v1110 = vsub.f32 %v321, %v845
    %v1111 = vsub.f32 %v322, %v845
    %v1112 = vsub.f32 %v323, %v845
    %v1113 = vsub.f32 %v324, %v845
    %v1114 = vsub.f32 %v325, %v845
    %v1115 = vsub.f32 %v326, %v845
    %v1116 = vsub.f32 %v327, %v845
    %v1117 = vsub.f32 %v328, %v845
    %v1118 = vsub.f32 %v329, %v845
    %v1119 = vsub.f32 %v330, %v845
    %v1120 = vsub.f32 %v331, %v845
    %v1121 = vsub.f32 %v332, %v845
    %v1122 = vsub.f32 %v333, %v845
    %v1123 = vsub.f32 %v334, %v845
    %v1124 = vsub.f32 %v335, %v845
    %v1125 = vsub.f32 %v336, %v845
    %v1126 = vsub.f32 %v337, %v845
    %v1127 = vsub.f32 %v338, %v845
    %v1128 = vsub.f32 %v339, %v845
    %v1129 = vsub.f32 %v340, %v845
    %v1130 = vsub.f32 %v341, %v845
    %v1131 = vsub.f32 %v342, %v845
    %v1132 = vsub.f32 %v343, %v845
    %v1133 = vsub.f32 %v344, %v845
    %v1134 = vsub.f32 %v345, %v845
    %v1135 = vsub.f32 %v346, %v845
    %v1136 = vsub.f32 %v347, %v845
    %v1137 = vsub.f32 %v348, %v845
    %v1138 = vsub.f32 %v349, %v845
    %v1139 = vsub.f32 %v350, %v845
    %v1140 = vsub.f32 %v351, %v845
    %v1141 = vsub.f32 %v352, %v845
    %v1142 = vsub.f32 %v353, %v845
    %v1143 = vsub.f32 %v354, %v845
    %v1144 = vsub.f32 %v355, %v845
    %v1145 = vsub.f32 %v356, %v845
    %v1146 = vsub.f32 %v357, %v845
    %v1147 = vsub.f32 %v358, %v845
    %v1148 = vsub.f32 %v359, %v845
    %v1149 = vsub.f32 %v360, %v845
    %v1150 = vsub.f32 %v361, %v845
    %v1151 = vsub.f32 %v362, %v845
    %v1152 = vsub.f32 %v363, %v845
    %v1153 = vsub.f32 %v364, %v845
    %v1154 = vsub.f32 %v365, %v845
    %v1155 = vsub.f32 %v366, %v845
    %v1156 = vsub.f32 %v367, %v845
    %v1157 = vsub.f32 %v368, %v845
    %v1158 = vsub.f32 %v369, %v845
    %v1159 = vsub.f32 %v370, %v845
    %v1160 = vsub.f32 %v371, %v845
    %v1161 = vsub.f32 %v372, %v845
    %v1162 = vsub.f32 %v373, %v845
    %v1163 = vsub.f32 %v374, %v845
    %v1164 = vsub.f32 %v375, %v845
    %v1165 = vsub.f32 %v376, %v845
    %v1166 = vsub.f32 %v377, %v845
    %v1167 = vsub.f32 %v378, %v845
    %v1168 = vsub.f32 %v379, %v845
    %v1169 = vsub.f32 %v380, %v845
    %v1170 = vsub.f32 %v381, %v845
    %v1171 = vsub.f32 %v382, %v845
    %v1172 = vsub.f32 %v383, %v845
    %v1173 = vsub.f32 %v384, %v845
    %v1174 = vsub.f32 %v385, %v845
    %v1175 = vsub.f32 %v386, %v845
    %v1176 = vsub.f32 %v387, %v845
    %v1177 = vsub.f32 %v388, %v845
    %v1178 = vsub.f32 %v389, %v845
    %v1179 = vsub.f32 %v390, %v845
    %v1180 = vsub.f32 %v391, %v845
    %v1181 = vsub.f32 %v392, %v845
    %v1182 = vsub.f32 %v393, %v845
    %v1183 = vsub.f32 %v394, %v845
    %v1184 = vsub.f32 %v395, %v845
    %v1185 = vsub.f32 %v396, %v845
    %v1186 = vsub.f32 %v397, %v845
    %v1187 = vsub.f32 %v398, %v845
    %v1188 = vsub.f32 %v399, %v845
    %v1189 = vsub.f32 %v400, %v845
    %v1190 = vsub.f32 %v401, %v845
    %v1191 = vsub.f32 %v402, %v845
    %v1192 = vsub.f32 %v403, %v845
    %v1193 = vsub.f32 %v404, %v845
    %v1194 = vsub.f32 %v405, %v845
    %v1195 = vsub.f32 %v406, %v845
    %v1196 = vsub.f32 %v407, %v845
    %v1197 = vsub.f32 %v408, %v845
    %v1198 = vsub.f32 %v409, %v845
    %v1199 = vsub.f32 %v410, %v845
    %v1200 = vsub.f32 %v411, %v845
    %v1201 = vsub.f32 %v412, %v845
    %v1202 = vsub.f32 %v413, %v845
    %v1203 = vsub.f32 %v414, %v845
    %v1204 = vsub.f32 %v415, %v845
    %v1205 = vsub.f32 %v416, %v845
    %v1206 = vsub.f32 %v417, %v845
    %v1207 = vsub.f32 %v418, %v845
    %v1208 = vsub.f32 %v419, %v845
    %v1209 = vsub.f32 %v420, %v845
    %v1210 = vsub.f32 %v421, %v845
    %v1211 = vsub.f32 %v422, %v845
    %v1212 = vsub.f32 %v423, %v845
    %v1213 = vsub.f32 %v424, %v845
    %v1214 = vsub.f32 %v425, %v845
    %v1215 = vsub.f32 %v426, %v845
    %v1216 = vsub.f32 %v427, %v845
    %v1217 = vsub.f32 %v428, %v845
    %v1218 = vsub.f32 %v429, %v845
    %v1219 = vsub.f32 %v430, %v845
    %v1220 = vsub.f32 %v431, %v845
    %v1221 = vsub.f32 %v432, %v845
    %v1222 = vsub.f32 %v433, %v845
    %v1223 = vsub.f32 %v434, %v845
    %v1224 = vsub.f32 %v435, %v845
    %v1225 = vsub.f32 %v436, %v845
    %v1226 = vsub.f32 %v437, %v845
    %v1227 = vsub.f32 %v438, %v845
    %v1228 = vsub.f32 %v439, %v845
    %v1229 = vsub.f32 %v440, %v845
    %v1230 = vsub.f32 %v441, %v845
    %v1231 = vsub.f32 %v442, %v845
    %v1232 = vsub.f32 %v443, %v845
    %v1233 = vsub.f32 %v444, %v845
    %v1234 = vsub.f32 %v445, %v845
    %v1235 = vsub.f32 %v446, %v845
    %v1236 = vsub.f32 %v447, %v845
    %v1237 = vsub.f32 %v448, %v845
    %v1238 = vsub.f32 %v449, %v845
    %v1239 = vsub.f32 %v450, %v845
    %v1240 = vsub.f32 %v451, %v845
    %v1241 = vsub.f32 %v452, %v845
    %v1242 = vsub.f32 %v453, %v845
    %v1243 = vsub.f32 %v454, %v845
    %v1244 = vsub.f32 %v455, %v845
    %v1245 = vsub.f32 %v456, %v845
    %v1246 = vsub.f32 %v457, %v845
    %v1247 = vsub.f32 %v458, %v845
    %v1248 = vsub.f32 %v459, %v845
    %v1249 = vsub.f32 %v460, %v845
    %v1250 = vsub.f32 %v461, %v845
    %v1251 = vsub.f32 %v462, %v845
    %v1252 = vsub.f32 %v463, %v845
    %v1253 = vsub.f32 %v464, %v845
    %v1254 = vsub.f32 %v465, %v845
    %v1255 = vsub.f32 %v466, %v845
    %v1256 = vsub.f32 %v467, %v845
    %v1257 = vsub.f32 %v468, %v845
    %v1258 = vsub.f32 %v469, %v845
    %v1259 = vsub.f32 %v470, %v845
    %v1260 = vsub.f32 %v471, %v845
    %v1261 = vsub.f32 %v472, %v845
    %v1262 = vsub.f32 %v473, %v845
    %v1263 = vsub.f32 %v474, %v845
    %v1264 = vsub.f32 %v475, %v845
    %v1265 = vsub.f32 %v476, %v845
    %v1266 = vsub.f32 %v477, %v845
    %v1267 = vsub.f32 %v478, %v845
    %v1268 = vsub.f32 %v479, %v845
    %v1269 = vsub.f32 %v480, %v845
    %v1270 = vsub.f32 %v481, %v845
    %v1271 = vsub.f32 %v482, %v845
    %v1272 = vsub.f32 %v483, %v845
    %v1273 = vsub.f32 %v484, %v845
    %v1274 = vsub.f32 %v485, %v845
    %v1275 = vsub.f32 %v486, %v845
    %v1276 = vsub.f32 %v487, %v845
    %v1277 = vsub.f32 %v488, %v845
    %v1278 = vsub.f32 %v489, %v845
    %v1279 = vsub.f32 %v490, %v845
    %v1280 = vsub.f32 %v491, %v845
    %v1281 = vsub.f32 %v492, %v845
    %v1282 = vsub.f32 %v493, %v845
    %v1283 = vsub.f32 %v494, %v845
    %v1284 = vsub.f32 %v495, %v845
    %v1285 = vsub.f32 %v496, %v845
    %v1286 = vsub.f32 %v497, %v845
    %v1287 = vsub.f32 %v498, %v845
    %v1288 = vsub.f32 %v499, %v845
    %v1289 = vsub.f32 %v500, %v845
    %v1290 = vsub.f32 %v501, %v845
    %v1291 = vsub.f32 %v502, %v845
    %v1292 = vsub.f32 %v503, %v845
    %v1293 = vsub.f32 %v504, %v845
    %v1294 = vsub.f32 %v505, %v845
    %v1295 = vsub.f32 %v506, %v845
    %v1296 = vsub.f32 %v507, %v845
    %v1297 = vsub.f32 %v508, %v845
    %v1298 = vsub.f32 %v509, %v845
    %v1299 = vsub.f32 %v510, %v845
    %v1300 = vsub.f32 %v511, %v845
    %v1301 = vsub.f32 %v512, %v845
    %v1302 = vsub.f32 %v513, %v845
    %v1303 = vsub.f32 %v514, %v845
    %v1304 = vsub.f32 %v515, %v845
    %v1305 = vsub.f32 %v516, %v845
    %v1306 = vsub.f32 %v517, %v845
    %v1307 = vsub.f32 %v518, %v845
    %v1308 = vsub.f32 %v519, %v845
    %v1309 = vsub.f32 %v520, %v845
    %v1310 = vsub.f32 %v521, %v845
    %v1311 = vsub.f32 %v522, %v845
    %v1312 = vsub.f32 %v523, %v845
    %v1313 = vsub.f32 %v524, %v845
    %v1314 = vsub.f32 %v525, %v845
    %v1315 = vsub.f32 %v526, %v845
    %v1316 = vsub.f32 %v527, %v845
    %v1317 = vsub.f32 %v528, %v845
    %v1318 = vsub.f32 %v529, %v845
    %v1319 = vsub.f32 %v530, %v845
    %v1320 = vsub.f32 %v531, %v845
    %v1321 = vsub.f32 %v532, %v845
    %v1322 = vsub.f32 %v533, %v845
    %v1323 = vsub.f32 %v534, %v845
    %v1324 = vsub.f32 %v535, %v845
    %v1325 = vsub.f32 %v536, %v845
    %v1326 = vsub.f32 %v537, %v845
    %v1327 = vsub.f32 %v538, %v845
    %v1328 = vsub.f32 %v539, %v845
    %v1329 = vsub.f32 %v540, %v845
    %v1330 = vsub.f32 %v541, %v845
    %v1331 = vsub.f32 %v542, %v845
    %v1332 = vsub.f32 %v543, %v845
    %v1333 = vsub.f32 %v544, %v845
    %v1334 = vsub.f32 %v545, %v845
    %v1335 = vsub.f32 %v546, %v845
    %v1336 = vsub.f32 %v547, %v845
    %v1337 = vsub.f32 %v548, %v845
    %v1338 = vsub.f32 %v549, %v845
    %v1339 = vsub.f32 %v550, %v845
    %v1340 = vsub.f32 %v551, %v845
    %v1341 = vsub.f32 %v552, %v845
    %v1342 = vsub.f32 %v553, %v845
    %v1343 = vsub.f32 %v554, %v845
    %v1344 = vsub.f32 %v555, %v845
    %v1345 = vsub.f32 %v556, %v845
    %v1346 = vsub.f32 %v557, %v845
    %v1347 = vsub.f32 %v558, %v845
    %v1348 = vsub.f32 %v559, %v845
    %v1349 = vsub.f32 %v560, %v845
    %v1350 = vsub.f32 %v561, %v845
    %v1351 = vsub.f32 %v562, %v845
    %v1352 = vsub.f32 %v563, %v845
    %v1353 = vsub.f32 %v564, %v845
    %v1354 = vsub.f32 %v565, %v845
    %v1355 = vsub.f32 %v566, %v845
    %v1356 = vsub.f32 %v567, %v845
    %v1357 = vsub.f32 %v568, %v845
    %v1358 = vsub.f32 %v569, %v845
    %v1359 = vsub.f32 %v570, %v845
    %v1360 = vsub.f32 %v571, %v845
    %v1361 = vsub.f32 %v572, %v845
    %v1362 = vsub.f32 %v573, %v845
    %v1363 = vsub.f32 %v574, %v845
    %v1364 = vsub.f32 %v575, %v845
    %v1365 = vsub.f32 %v576, %v845
    %v1366 = vsub.f32 %v577, %v845
    %v1367 = vsub.f32 %v578, %v845
    %v1368 = vsub.f32 %v579, %v845
    %v1369 = vsub.f32 %v580, %v845
    %v1370 = vsub.f32 %v581, %v845
    %v1371 = vsub.f32 %v582, %v845
    %v1372 = vsub.f32 %v583, %v845
    %v1373 = vsub.f32 %v584, %v845
    %v1374 = vsub.f32 %v585, %v845
    %v1375 = vsub.f32 %v586, %v845
    %v1376 = vsub.f32 %v587, %v845
    %v1377 = vsub.f32 %v588, %v845
    %v1378 = vsub.f32 %v589, %v845
    %v1379 = vsub.f32 %v590, %v845
    %v1380 = vsub.f32 %v591, %v845
    %v1381 = vsub.f32 %v592, %v845
    %v1382 = vsub.f32 %v593, %v845
    %v1383 = vsub.f32 %v594, %v845
    %v1384 = vsub.f32 %v595, %v845
    %v1385 = vsub.f32 %v596, %v845
    %v1386 = vsub.f32 %v597, %v845
    %v1387 = vsub.f32 %v598, %v845
    %v1388 = vsub.f32 %v599, %v845
    %v1389 = vsub.f32 %v600, %v845
    %v1390 = vsub.f32 %v601, %v845
    %v1391 = vsub.f32 %v602, %v845
    %v1392 = vsub.f32 %v603, %v845
    %v1393 = vsub.f32 %v604, %v845
    %v1394 = vsub.f32 %v605, %v845
    %v1395 = vsub.f32 %v606, %v845
    %v1396 = vsub.f32 %v607, %v845
    %v1397 = vsub.f32 %v608, %v845
    %v1398 = vsub.f32 %v609, %v845
    %v1399 = vsub.f32 %v610, %v845
    %v1400 = vsub.f32 %v611, %v845
    %v1401 = vsub.f32 %v612, %v845
    %v1402 = vsub.f32 %v613, %v845
    %v1403 = vsub.f32 %v614, %v845
    %v1404 = vsub.f32 %v615, %v845
    %v1405 = vsub.f32 %v616, %v845
    %v1406 = vsub.f32 %v617, %v845
    %v1407 = vsub.f32 %v618, %v845
    %v1408 = vsub.f32 %v619, %v845
    %v1409 = vsub.f32 %v620, %v845
    %v1410 = vsub.f32 %v621, %v845
    %v1411 = vsub.f32 %v622, %v845
    %v1412 = vsub.f32 %v623, %v845
    %v1413 = vsub.f32 %v624, %v845
    %v1414 = vsub.f32 %v625, %v845
    %v1415 = vsub.f32 %v626, %v845
    %v1416 = vsub.f32 %v627, %v845
    %v1417 = vsub.f32 %v628, %v845
    %v1418 = vsub.f32 %v629, %v845
    %v1419 = vsub.f32 %v630, %v845
    %v1420 = vsub.f32 %v631, %v845
    %v1421 = vsub.f32 %v632, %v845
    %v1422 = vsub.f32 %v633, %v845
    %v1423 = vsub.f32 %v634, %v845
    %v1424 = vsub.f32 %v635, %v845
    %v1425 = vsub.f32 %v636, %v845
    %v1426 = vsub.f32 %v637, %v845
    %v1427 = vsub.f32 %v638, %v845
    %v1428 = vsub.f32 %v639, %v845
    %v1429 = vsub.f32 %v640, %v845
    %v1430 = vsub.f32 %v641, %v845
    %v1431 = vsub.f32 %v642, %v845
    %v1432 = vsub.f32 %v643, %v845
    %v1433 = vsub.f32 %v644, %v845
    %v1434 = vsub.f32 %v645, %v845
    %v1435 = vsub.f32 %v646, %v845
    %v1436 = vsub.f32 %v647, %v845
    %v1437 = vsub.f32 %v648, %v845
    %v1438 = vsub.f32 %v649, %v845
    %v1439 = vsub.f32 %v650, %v845
    %v1440 = vsub.f32 %v651, %v845
    %v1441 = vsub.f32 %v652, %v845
    %v1442 = vsub.f32 %v653, %v845
    %v1443 = vsub.f32 %v654, %v845
    %v1444 = vsub.f32 %v655, %v845
    %v1445 = vsub.f32 %v656, %v845
    %v1446 = vsub.f32 %v657, %v845
    %v1447 = vsub.f32 %v658, %v845
    %v1448 = vsub.f32 %v659, %v845
    %v1449 = vsub.f32 %v660, %v845
    %v1450 = vsub.f32 %v661, %v845
    %v1451 = vsub.f32 %v662, %v845
    %v1452 = vsub.f32 %v663, %v845
    %v1453 = vsub.f32 %v664, %v845
    %v1454 = vsub.f32 %v665, %v845
    %v1455 = vsub.f32 %v666, %v845
    %v1456 = vsub.f32 %v667, %v845
    %v1457 = vsub.f32 %v668, %v845
    %v1458 = vsub.f32 %v669, %v845
    %v1459 = vsub.f32 %v670, %v845
    %v1460 = vsub.f32 %v671, %v845
    %v1461 = vsub.f32 %v672, %v845
    %v1462 = vsub.f32 %v673, %v845
    %v1463 = vsub.f32 %v674, %v845
    %v1464 = vsub.f32 %v675, %v845
    %v1465 = vsub.f32 %v676, %v845
    %v1466 = vsub.f32 %v677, %v845
    %v1467 = vsub.f32 %v678, %v845
    %v1468 = vsub.f32 %v679, %v845
    %v1469 = vsub.f32 %v680, %v845
    %v1470 = vsub.f32 %v681, %v845
    %v1471 = vsub.f32 %v682, %v845
    %v1472 = vsub.f32 %v683, %v845
    %v1473 = vsub.f32 %v684, %v845
    %v1474 = vsub.f32 %v685, %v845
    %v1475 = vsub.f32 %v686, %v845
    %v1476 = vsub.f32 %v687, %v845
    %v1477 = vsub.f32 %v688, %v845
    %v1478 = vsub.f32 %v689, %v845
    %v1479 = vsub.f32 %v690, %v845
    %v1480 = vsub.f32 %v691, %v845
    %v1481 = vsub.f32 %v692, %v845
    %v1482 = vsub.f32 %v693, %v845
    %v1483 = vsub.f32 %v694, %v845
    %v1484 = vsub.f32 %v695, %v845
    %v1485 = vsub.f32 %v696, %v845
    %v1486 = vsub.f32 %v697, %v845
    %v1487 = vsub.f32 %v698, %v845
    %v1488 = vsub.f32 %v699, %v845
    %v1489 = vsub.f32 %v700, %v845
    %v1490 = vsub.f32 %v701, %v845
    %v1491 = vsub.f32 %v702, %v845
    %v1492 = vsub.f32 %v703, %v845
    %v1493 = vsub.f32 %v704, %v845
    %v1494 = vsub.f32 %v705, %v845
    %v1495 = vsub.f32 %v706, %v845
    %v1496 = vsub.f32 %v707, %v845
    %v1497 = vsub.f32 %v708, %v845
    %v1498 = vsub.f32 %v709, %v845
    %v1499 = vsub.f32 %v710, %v845
    %v1500 = vsub.f32 %v711, %v845
    %v1501 = vsub.f32 %v712, %v845
    %v1502 = vsub.f32 %v713, %v845
    %v1503 = vsub.f32 %v714, %v845
    %v1504 = vsub.f32 %v715, %v845
    %v1505 = vsub.f32 %v716, %v845
    %v1506 = vsub.f32 %v717, %v845
    %v1507 = vsub.f32 %v718, %v845
    %v1508 = vsub.f32 %v719, %v845
    %v1509 = vsub.f32 %v720, %v845
    %v1510 = vsub.f32 %v721, %v845
    %v1511 = vsub.f32 %v722, %v845
    %v1512 = vsub.f32 %v723, %v845
    %v1513 = vsub.f32 %v724, %v845
    %v1514 = vsub.f32 %v725, %v845
    %v1515 = vsub.f32 %v726, %v845
    %v1516 = vsub.f32 %v727, %v845
    %v1517 = vsub.f32 %v728, %v845
    %v1518 = vsub.f32 %v729, %v845
    %v1519 = vsub.f32 %v730, %v845
    %v1520 = vsub.f32 %v731, %v845
    %v1521 = vsub.f32 %v732, %v845
    %v1522 = vsub.f32 %v733, %v845
    %v1523 = vsub.f32 %v734, %v845
    %v1524 = vsub.f32 %v735, %v845
    %v1525 = vsub.f32 %v736, %v845
    %v1526 = vsub.f32 %v737, %v845
    %v1527 = vsub.f32 %v738, %v845
    %v1528 = vsub.f32 %v739, %v845
    %v1529 = vsub.f32 %v740, %v845
    %v1530 = vsub.f32 %v741, %v845
    %v1531 = vsub.f32 %v742, %v845
    %v1532 = vsub.f32 %v743, %v845
    %v1533 = vsub.f32 %v744, %v845
    %v1534 = vsub.f32 %v745, %v845
    %v1535 = vsub.f32 %v746, %v845
    %v1536 = vsub.f32 %v747, %v845
    %v1537 = vsub.f32 %v748, %v845
    %v1538 = vsub.f32 %v749, %v845
    %v1539 = vsub.f32 %v750, %v845
    %v1540 = vsub.f32 %v751, %v845
    %v1541 = vsub.f32 %v752, %v845
    %v1542 = vsub.f32 %v753, %v845
    %v1543 = vsub.f32 %v754, %v845
    %v1544 = vsub.f32 %v755, %v845
    %v1545 = vsub.f32 %v756, %v845
    %v1546 = vsub.f32 %v757, %v845
    %v1547 = vsub.f32 %v758, %v845
    %v1548 = vsub.f32 %v759, %v845
    %v1549 = vsub.f32 %v760, %v845
    %v1550 = vsub.f32 %v761, %v845
    %v1551 = vsub.f32 %v762, %v845
    %v1552 = vsub.f32 %v763, %v845
    %v1553 = vsub.f32 %v764, %v845
    %v1554 = vsub.f32 %v765, %v845
    %v1555 = vsub.f32 %v766, %v845
    %v1556 = vsub.f32 %v767, %v845
    %v1557 = vsub.f32 %v768, %v845
    %v1558 = vsub.f32 %v769, %v845
    %v1559 = vsub.f32 %v770, %v845
    %v1560 = vsub.f32 %v771, %v845
    %v1561 = vsub.f32 %v772, %v845
    %v1562 = vsub.f32 %v773, %v845
    %v1563 = vsub.f32 %v774, %v845
    %v1564 = vsub.f32 %v775, %v845
    %v1565 = vsub.f32 %v776, %v845
    %v1566 = vsub.f32 %v777, %v845
    %v1567 = vsub.f32 %v778, %v845
    %v1568 = vsub.f32 %v779, %v845
    %v1569 = vsub.f32 %v780, %v845
    %v1570 = vsub.f32 %v781, %v845
    %v1571 = vsub.f32 %v782, %v845
    %v1572 = vsub.f32 %v783, %v845
    %v1573 = vsub.f32 %v784, %v845
    %v1574 = vsub.f32 %v785, %v845
    %v1575 = vsub.f32 %v786, %v845
    %v1576 = vsub.f32 %v787, %v845
    %v1577 = vsub.f32 %v788, %v845
    %v1578 = vsub.f32 %v789, %v845
    %v1579 = vsub.f32 %v790, %v845
    %v1580 = vsub.f32 %v791, %v845
    %v1581 = vsub.f32 %v792, %v845
    %v1582 = vsub.f32 %v793, %v845
    %v1583 = vsub.f32 %v794, %v845
    %v1584 = vsub.f32 %v795, %v845
    %v1585 = vsub.f32 %v796, %v845
    %v1586 = vsub.f32 %v797, %v845
    %v1587 = vsub.f32 %v798, %v845
    %v1588 = vsub.f32 %v799, %v845
    %v1589 = vsub.f32 %v800, %v845
    %v1590 = vsub.f32 %v801, %v845
    %v1591 = vsub.f32 %v802, %v845
    %v1592 = vsub.f32 %v803, %v845
    %v1593 = vsub.f32 %v804, %v845
    %v1594 = vsub.f32 %v805, %v845
    %v1595 = vsub.f32 %v806, %v845
    %v1596 = vsub.f32 %v807, %v845
    %v1597 = vsub.f32 %v808, %v845
    %v1598 = vsub.f32 %v809, %v845
    %v1599 = vsub.f32 %v810, %v845
    %v1600 = vsub.f32 %v811, %v845
    %v1601 = vsub.f32 %v812, %v845
    %v1602 = vsub.f32 %v813, %v845
    %v1603 = vsub.f32 %v814, %v845
    %v1604 = vsub.f32 %v815, %v845
    %v1605 = vsub.f32 %v816, %v845
    %v1606 = vsub.f32 %v817, %v845
    %v1607 = vsub.f32 %v818, %v845
    %v1608 = vsub.f32 %v819, %v845
    %v1609 = vsub.f32 %v820, %v845
    %v1610 = vsub.f32 %v821, %v845
    %v1611 = vsub.f32 %v822, %v845
    %v1612 = vsub.f32 %v823, %v845
    %v1613 = vsub.f32 %v824, %v845
    %v1614 = vsub.f32 %v825, %v845
    %v1615 = vsub.f32 %v826, %v845
    %v1617 = vperm.slane %v843, 0
    %v1619 = vmul.f32 %v847, %v1617
    %v1620 = vmul.f32 %v848, %v1617
    %v1621 = vmul.f32 %v849, %v1617
    %v1622 = vmul.f32 %v850, %v1617
    %v1623 = vmul.f32 %v851, %v1617
    %v1624 = vmul.f32 %v852, %v1617
    %v1625 = vmul.f32 %v853, %v1617
    %v1626 = vmul.f32 %v854, %v1617
    %v1627 = vmul.f32 %v855, %v1617
    %v1628 = vmul.f32 %v856, %v1617
    %v1629 = vmul.f32 %v857, %v1617
    %v1630 = vmul.f32 %v858, %v1617
    %v1631 = vmul.f32 %v859, %v1617
    %v1632 = vmul.f32 %v860, %v1617
    %v1633 = vmul.f32 %v861, %v1617
    %v1634 = vmul.f32 %v862, %v1617
    %v1635 = vmul.f32 %v863, %v1617
    %v1636 = vmul.f32 %v864, %v1617
    %v1637 = vmul.f32 %v865, %v1617
    %v1638 = vmul.f32 %v866, %v1617
    %v1639 = vmul.f32 %v867, %v1617
    %v1640 = vmul.f32 %v868, %v1617
    %v1641 = vmul.f32 %v869, %v1617
    %v1642 = vmul.f32 %v870, %v1617
    %v1643 = vmul.f32 %v871, %v1617
    %v1644 = vmul.f32 %v872, %v1617
    %v1645 = vmul.f32 %v873, %v1617
    %v1646 = vmul.f32 %v874, %v1617
    %v1647 = vmul.f32 %v875, %v1617
    %v1648 = vmul.f32 %v876, %v1617
    %v1649 = vmul.f32 %v877, %v1617
    %v1650 = vmul.f32 %v878, %v1617
    %v1651 = vmul.f32 %v879, %v1617
    %v1652 = vmul.f32 %v880, %v1617
    %v1653 = vmul.f32 %v881, %v1617
    %v1654 = vmul.f32 %v882, %v1617
    %v1655 = vmul.f32 %v883, %v1617
    %v1656 = vmul.f32 %v884, %v1617
    %v1657 = vmul.f32 %v885, %v1617
    %v1658 = vmul.f32 %v886, %v1617
    %v1659 = vmul.f32 %v887, %v1617
    %v1660 = vmul.f32 %v888, %v1617
    %v1661 = vmul.f32 %v889, %v1617
    %v1662 = vmul.f32 %v890, %v1617
    %v1663 = vmul.f32 %v891, %v1617
    %v1664 = vmul.f32 %v892, %v1617
    %v1665 = vmul.f32 %v893, %v1617
    %v1666 = vmul.f32 %v894, %v1617
    %v1667 = vmul.f32 %v895, %v1617
    %v1668 = vmul.f32 %v896, %v1617
    %v1669 = vmul.f32 %v897, %v1617
    %v1670 = vmul.f32 %v898, %v1617
    %v1671 = vmul.f32 %v899, %v1617
    %v1672 = vmul.f32 %v900, %v1617
    %v1673 = vmul.f32 %v901, %v1617
    %v1674 = vmul.f32 %v902, %v1617
    %v1675 = vmul.f32 %v903, %v1617
    %v1676 = vmul.f32 %v904, %v1617
    %v1677 = vmul.f32 %v905, %v1617
    %v1678 = vmul.f32 %v906, %v1617
    %v1679 = vmul.f32 %v907, %v1617
    %v1680 = vmul.f32 %v908, %v1617
    %v1681 = vmul.f32 %v909, %v1617
    %v1682 = vmul.f32 %v910, %v1617
    %v1683 = vmul.f32 %v911, %v1617
    %v1684 = vmul.f32 %v912, %v1617
    %v1685 = vmul.f32 %v913, %v1617
    %v1686 = vmul.f32 %v914, %v1617
    %v1687 = vmul.f32 %v915, %v1617
    %v1688 = vmul.f32 %v916, %v1617
    %v1689 = vmul.f32 %v917, %v1617
    %v1690 = vmul.f32 %v918, %v1617
    %v1691 = vmul.f32 %v919, %v1617
    %v1692 = vmul.f32 %v920, %v1617
    %v1693 = vmul.f32 %v921, %v1617
    %v1694 = vmul.f32 %v922, %v1617
    %v1695 = vmul.f32 %v923, %v1617
    %v1696 = vmul.f32 %v924, %v1617
    %v1697 = vmul.f32 %v925, %v1617
    %v1698 = vmul.f32 %v926, %v1617
    %v1699 = vmul.f32 %v927, %v1617
    %v1700 = vmul.f32 %v928, %v1617
    %v1701 = vmul.f32 %v929, %v1617
    %v1702 = vmul.f32 %v930, %v1617
    %v1703 = vmul.f32 %v931, %v1617
    %v1704 = vmul.f32 %v932, %v1617
    %v1705 = vmul.f32 %v933, %v1617
    %v1706 = vmul.f32 %v934, %v1617
    %v1707 = vmul.f32 %v935, %v1617
    %v1708 = vmul.f32 %v936, %v1617
    %v1709 = vmul.f32 %v937, %v1617
    %v1710 = vmul.f32 %v938, %v1617
    %v1711 = vmul.f32 %v939, %v1617
    %v1712 = vmul.f32 %v940, %v1617
    %v1713 = vmul.f32 %v941, %v1617
    %v1714 = vmul.f32 %v942, %v1617
    %v1715 = vmul.f32 %v943, %v1617
    %v1716 = vmul.f32 %v944, %v1617
    %v1717 = vmul.f32 %v945, %v1617
    %v1718 = vmul.f32 %v946, %v1617
    %v1719 = vmul.f32 %v947, %v1617
    %v1720 = vmul.f32 %v948, %v1617
    %v1721 = vmul.f32 %v949, %v1617
    %v1722 = vmul.f32 %v950, %v1617
    %v1723 = vmul.f32 %v951, %v1617
    %v1724 = vmul.f32 %v952, %v1617
    %v1725 = vmul.f32 %v953, %v1617
    %v1726 = vmul.f32 %v954, %v1617
    %v1727 = vmul.f32 %v955, %v1617
    %v1728 = vmul.f32 %v956, %v1617
    %v1729 = vmul.f32 %v957, %v1617
    %v1730 = vmul.f32 %v958, %v1617
    %v1731 = vmul.f32 %v959, %v1617
    %v1732 = vmul.f32 %v960, %v1617
    %v1733 = vmul.f32 %v961, %v1617
    %v1734 = vmul.f32 %v962, %v1617
    %v1735 = vmul.f32 %v963, %v1617
    %v1736 = vmul.f32 %v964, %v1617
    %v1737 = vmul.f32 %v965, %v1617
    %v1738 = vmul.f32 %v966, %v1617
    %v1739 = vmul.f32 %v967, %v1617
    %v1740 = vmul.f32 %v968, %v1617
    %v1741 = vmul.f32 %v969, %v1617
    %v1742 = vmul.f32 %v970, %v1617
    %v1743 = vmul.f32 %v971, %v1617
    %v1744 = vmul.f32 %v972, %v1617
    %v1745 = vmul.f32 %v973, %v1617
    %v1746 = vmul.f32 %v974, %v1617
    %v1747 = vmul.f32 %v975, %v1617
    %v1748 = vmul.f32 %v976, %v1617
    %v1749 = vmul.f32 %v977, %v1617
    %v1750 = vmul.f32 %v978, %v1617
    %v1751 = vmul.f32 %v979, %v1617
    %v1752 = vmul.f32 %v980, %v1617
    %v1753 = vmul.f32 %v981, %v1617
    %v1754 = vmul.f32 %v982, %v1617
    %v1755 = vmul.f32 %v983, %v1617
    %v1756 = vmul.f32 %v984, %v1617
    %v1757 = vmul.f32 %v985, %v1617
    %v1758 = vmul.f32 %v986, %v1617
    %v1759 = vmul.f32 %v987, %v1617
    %v1760 = vmul.f32 %v988, %v1617
    %v1761 = vmul.f32 %v989, %v1617
    %v1762 = vmul.f32 %v990, %v1617
    %v1763 = vmul.f32 %v991, %v1617
    %v1764 = vmul.f32 %v992, %v1617
    %v1765 = vmul.f32 %v993, %v1617
    %v1766 = vmul.f32 %v994, %v1617
    %v1767 = vmul.f32 %v995, %v1617
    %v1768 = vmul.f32 %v996, %v1617
    %v1769 = vmul.f32 %v997, %v1617
    %v1770 = vmul.f32 %v998, %v1617
    %v1771 = vmul.f32 %v999, %v1617
    %v1772 = vmul.f32 %v1000, %v1617
    %v1773 = vmul.f32 %v1001, %v1617
    %v1774 = vmul.f32 %v1002, %v1617
    %v1775 = vmul.f32 %v1003, %v1617
    %v1776 = vmul.f32 %v1004, %v1617
    %v1777 = vmul.f32 %v1005, %v1617
    %v1778 = vmul.f32 %v1006, %v1617
    %v1779 = vmul.f32 %v1007, %v1617
    %v1780 = vmul.f32 %v1008, %v1617
    %v1781 = vmul.f32 %v1009, %v1617
    %v1782 = vmul.f32 %v1010, %v1617
    %v1783 = vmul.f32 %v1011, %v1617
    %v1784 = vmul.f32 %v1012, %v1617
    %v1785 = vmul.f32 %v1013, %v1617
    %v1786 = vmul.f32 %v1014, %v1617
    %v1787 = vmul.f32 %v1015, %v1617
    %v1788 = vmul.f32 %v1016, %v1617
    %v1789 = vmul.f32 %v1017, %v1617
    %v1790 = vmul.f32 %v1018, %v1617
    %v1791 = vmul.f32 %v1019, %v1617
    %v1792 = vmul.f32 %v1020, %v1617
    %v1793 = vmul.f32 %v1021, %v1617
    %v1794 = vmul.f32 %v1022, %v1617
    %v1795 = vmul.f32 %v1023, %v1617
    %v1796 = vmul.f32 %v1024, %v1617
    %v1797 = vmul.f32 %v1025, %v1617
    %v1798 = vmul.f32 %v1026, %v1617
    %v1799 = vmul.f32 %v1027, %v1617
    %v1800 = vmul.f32 %v1028, %v1617
    %v1801 = vmul.f32 %v1029, %v1617
    %v1802 = vmul.f32 %v1030, %v1617
    %v1803 = vmul.f32 %v1031, %v1617
    %v1804 = vmul.f32 %v1032, %v1617
    %v1805 = vmul.f32 %v1033, %v1617
    %v1806 = vmul.f32 %v1034, %v1617
    %v1807 = vmul.f32 %v1035, %v1617
    %v1808 = vmul.f32 %v1036, %v1617
    %v1809 = vmul.f32 %v1037, %v1617
    %v1810 = vmul.f32 %v1038, %v1617
    %v1811 = vmul.f32 %v1039, %v1617
    %v1812 = vmul.f32 %v1040, %v1617
    %v1813 = vmul.f32 %v1041, %v1617
    %v1814 = vmul.f32 %v1042, %v1617
    %v1815 = vmul.f32 %v1043, %v1617
    %v1816 = vmul.f32 %v1044, %v1617
    %v1817 = vmul.f32 %v1045, %v1617
    %v1818 = vmul.f32 %v1046, %v1617
    %v1819 = vmul.f32 %v1047, %v1617
    %v1820 = vmul.f32 %v1048, %v1617
    %v1821 = vmul.f32 %v1049, %v1617
    %v1822 = vmul.f32 %v1050, %v1617
    %v1823 = vmul.f32 %v1051, %v1617
    %v1824 = vmul.f32 %v1052, %v1617
    %v1825 = vmul.f32 %v1053, %v1617
    %v1826 = vmul.f32 %v1054, %v1617
    %v1827 = vmul.f32 %v1055, %v1617
    %v1828 = vmul.f32 %v1056, %v1617
    %v1829 = vmul.f32 %v1057, %v1617
    %v1830 = vmul.f32 %v1058, %v1617
    %v1831 = vmul.f32 %v1059, %v1617
    %v1832 = vmul.f32 %v1060, %v1617
    %v1833 = vmul.f32 %v1061, %v1617
    %v1834 = vmul.f32 %v1062, %v1617
    %v1835 = vmul.f32 %v1063, %v1617
    %v1836 = vmul.f32 %v1064, %v1617
    %v1837 = vmul.f32 %v1065, %v1617
    %v1838 = vmul.f32 %v1066, %v1617
    %v1839 = vmul.f32 %v1067, %v1617
    %v1840 = vmul.f32 %v1068, %v1617
    %v1841 = vmul.f32 %v1069, %v1617
    %v1842 = vmul.f32 %v1070, %v1617
    %v1843 = vmul.f32 %v1071, %v1617
    %v1844 = vmul.f32 %v1072, %v1617
    %v1845 = vmul.f32 %v1073, %v1617
    %v1846 = vmul.f32 %v1074, %v1617
    %v1847 = vmul.f32 %v1075, %v1617
    %v1848 = vmul.f32 %v1076, %v1617
    %v1849 = vmul.f32 %v1077, %v1617
    %v1850 = vmul.f32 %v1078, %v1617
    %v1851 = vmul.f32 %v1079, %v1617
    %v1852 = vmul.f32 %v1080, %v1617
    %v1853 = vmul.f32 %v1081, %v1617
    %v1854 = vmul.f32 %v1082, %v1617
    %v1855 = vmul.f32 %v1083, %v1617
    %v1856 = vmul.f32 %v1084, %v1617
    %v1857 = vmul.f32 %v1085, %v1617
    %v1858 = vmul.f32 %v1086, %v1617
    %v1859 = vmul.f32 %v1087, %v1617
    %v1860 = vmul.f32 %v1088, %v1617
    %v1861 = vmul.f32 %v1089, %v1617
    %v1862 = vmul.f32 %v1090, %v1617
    %v1863 = vmul.f32 %v1091, %v1617
    %v1864 = vmul.f32 %v1092, %v1617
    %v1865 = vmul.f32 %v1093, %v1617
    %v1866 = vmul.f32 %v1094, %v1617
    %v1867 = vmul.f32 %v1095, %v1617
    %v1868 = vmul.f32 %v1096, %v1617
    %v1869 = vmul.f32 %v1097, %v1617
    %v1870 = vmul.f32 %v1098, %v1617
    %v1871 = vmul.f32 %v1099, %v1617
    %v1872 = vmul.f32 %v1100, %v1617
    %v1873 = vmul.f32 %v1101, %v1617
    %v1874 = vmul.f32 %v1102, %v1617
    %v1875 = vmul.f32 %v1103, %v1617
    %v1876 = vmul.f32 %v1104, %v1617
    %v1877 = vmul.f32 %v1105, %v1617
    %v1878 = vmul.f32 %v1106, %v1617
    %v1879 = vmul.f32 %v1107, %v1617
    %v1880 = vmul.f32 %v1108, %v1617
    %v1881 = vmul.f32 %v1109, %v1617
    %v1882 = vmul.f32 %v1110, %v1617
    %v1883 = vmul.f32 %v1111, %v1617
    %v1884 = vmul.f32 %v1112, %v1617
    %v1885 = vmul.f32 %v1113, %v1617
    %v1886 = vmul.f32 %v1114, %v1617
    %v1887 = vmul.f32 %v1115, %v1617
    %v1888 = vmul.f32 %v1116, %v1617
    %v1889 = vmul.f32 %v1117, %v1617
    %v1890 = vmul.f32 %v1118, %v1617
    %v1891 = vmul.f32 %v1119, %v1617
    %v1892 = vmul.f32 %v1120, %v1617
    %v1893 = vmul.f32 %v1121, %v1617
    %v1894 = vmul.f32 %v1122, %v1617
    %v1895 = vmul.f32 %v1123, %v1617
    %v1896 = vmul.f32 %v1124, %v1617
    %v1897 = vmul.f32 %v1125, %v1617
    %v1898 = vmul.f32 %v1126, %v1617
    %v1899 = vmul.f32 %v1127, %v1617
    %v1900 = vmul.f32 %v1128, %v1617
    %v1901 = vmul.f32 %v1129, %v1617
    %v1902 = vmul.f32 %v1130, %v1617
    %v1903 = vmul.f32 %v1131, %v1617
    %v1904 = vmul.f32 %v1132, %v1617
    %v1905 = vmul.f32 %v1133, %v1617
    %v1906 = vmul.f32 %v1134, %v1617
    %v1907 = vmul.f32 %v1135, %v1617
    %v1908 = vmul.f32 %v1136, %v1617
    %v1909 = vmul.f32 %v1137, %v1617
    %v1910 = vmul.f32 %v1138, %v1617
    %v1911 = vmul.f32 %v1139, %v1617
    %v1912 = vmul.f32 %v1140, %v1617
    %v1913 = vmul.f32 %v1141, %v1617
    %v1914 = vmul.f32 %v1142, %v1617
    %v1915 = vmul.f32 %v1143, %v1617
    %v1916 = vmul.f32 %v1144, %v1617
    %v1917 = vmul.f32 %v1145, %v1617
    %v1918 = vmul.f32 %v1146, %v1617
    %v1919 = vmul.f32 %v1147, %v1617
    %v1920 = vmul.f32 %v1148, %v1617
    %v1921 = vmul.f32 %v1149, %v1617
    %v1922 = vmul.f32 %v1150, %v1617
    %v1923 = vmul.f32 %v1151, %v1617
    %v1924 = vmul.f32 %v1152, %v1617
    %v1925 = vmul.f32 %v1153, %v1617
    %v1926 = vmul.f32 %v1154, %v1617
    %v1927 = vmul.f32 %v1155, %v1617
    %v1928 = vmul.f32 %v1156, %v1617
    %v1929 = vmul.f32 %v1157, %v1617
    %v1930 = vmul.f32 %v1158, %v1617
    %v1931 = vmul.f32 %v1159, %v1617
    %v1932 = vmul.f32 %v1160, %v1617
    %v1933 = vmul.f32 %v1161, %v1617
    %v1934 = vmul.f32 %v1162, %v1617
    %v1935 = vmul.f32 %v1163, %v1617
    %v1936 = vmul.f32 %v1164, %v1617
    %v1937 = vmul.f32 %v1165, %v1617
    %v1938 = vmul.f32 %v1166, %v1617
    %v1939 = vmul.f32 %v1167, %v1617
    %v1940 = vmul.f32 %v1168, %v1617
    %v1941 = vmul.f32 %v1169, %v1617
    %v1942 = vmul.f32 %v1170, %v1617
    %v1943 = vmul.f32 %v1171, %v1617
    %v1944 = vmul.f32 %v1172, %v1617
    %v1945 = vmul.f32 %v1173, %v1617
    %v1946 = vmul.f32 %v1174, %v1617
    %v1947 = vmul.f32 %v1175, %v1617
    %v1948 = vmul.f32 %v1176, %v1617
    %v1949 = vmul.f32 %v1177, %v1617
    %v1950 = vmul.f32 %v1178, %v1617
    %v1951 = vmul.f32 %v1179, %v1617
    %v1952 = vmul.f32 %v1180, %v1617
    %v1953 = vmul.f32 %v1181, %v1617
    %v1954 = vmul.f32 %v1182, %v1617
    %v1955 = vmul.f32 %v1183, %v1617
    %v1956 = vmul.f32 %v1184, %v1617
    %v1957 = vmul.f32 %v1185, %v1617
    %v1958 = vmul.f32 %v1186, %v1617
    %v1959 = vmul.f32 %v1187, %v1617
    %v1960 = vmul.f32 %v1188, %v1617
    %v1961 = vmul.f32 %v1189, %v1617
    %v1962 = vmul.f32 %v1190, %v1617
    %v1963 = vmul.f32 %v1191, %v1617
    %v1964 = vmul.f32 %v1192, %v1617
    %v1965 = vmul.f32 %v1193, %v1617
    %v1966 = vmul.f32 %v1194, %v1617
    %v1967 = vmul.f32 %v1195, %v1617
    %v1968 = vmul.f32 %v1196, %v1617
    %v1969 = vmul.f32 %v1197, %v1617
    %v1970 = vmul.f32 %v1198, %v1617
    %v1971 = vmul.f32 %v1199, %v1617
    %v1972 = vmul.f32 %v1200, %v1617
    %v1973 = vmul.f32 %v1201, %v1617
    %v1974 = vmul.f32 %v1202, %v1617
    %v1975 = vmul.f32 %v1203, %v1617
    %v1976 = vmul.f32 %v1204, %v1617
    %v1977 = vmul.f32 %v1205, %v1617
    %v1978 = vmul.f32 %v1206, %v1617
    %v1979 = vmul.f32 %v1207, %v1617
    %v1980 = vmul.f32 %v1208, %v1617
    %v1981 = vmul.f32 %v1209, %v1617
    %v1982 = vmul.f32 %v1210, %v1617
    %v1983 = vmul.f32 %v1211, %v1617
    %v1984 = vmul.f32 %v1212, %v1617
    %v1985 = vmul.f32 %v1213, %v1617
    %v1986 = vmul.f32 %v1214, %v1617
    %v1987 = vmul.f32 %v1215, %v1617
    %v1988 = vmul.f32 %v1216, %v1617
    %v1989 = vmul.f32 %v1217, %v1617
    %v1990 = vmul.f32 %v1218, %v1617
    %v1991 = vmul.f32 %v1219, %v1617
    %v1992 = vmul.f32 %v1220, %v1617
    %v1993 = vmul.f32 %v1221, %v1617
    %v1994 = vmul.f32 %v1222, %v1617
    %v1995 = vmul.f32 %v1223, %v1617
    %v1996 = vmul.f32 %v1224, %v1617
    %v1997 = vmul.f32 %v1225, %v1617
    %v1998 = vmul.f32 %v1226, %v1617
    %v1999 = vmul.f32 %v1227, %v1617
    %v2000 = vmul.f32 %v1228, %v1617
    %v2001 = vmul.f32 %v1229, %v1617
    %v2002 = vmul.f32 %v1230, %v1617
    %v2003 = vmul.f32 %v1231, %v1617
    %v2004 = vmul.f32 %v1232, %v1617
    %v2005 = vmul.f32 %v1233, %v1617
    %v2006 = vmul.f32 %v1234, %v1617
    %v2007 = vmul.f32 %v1235, %v1617
    %v2008 = vmul.f32 %v1236, %v1617
    %v2009 = vmul.f32 %v1237, %v1617
    %v2010 = vmul.f32 %v1238, %v1617
    %v2011 = vmul.f32 %v1239, %v1617
    %v2012 = vmul.f32 %v1240, %v1617
    %v2013 = vmul.f32 %v1241, %v1617
    %v2014 = vmul.f32 %v1242, %v1617
    %v2015 = vmul.f32 %v1243, %v1617
    %v2016 = vmul.f32 %v1244, %v1617
    %v2017 = vmul.f32 %v1245, %v1617
    %v2018 = vmul.f32 %v1246, %v1617
    %v2019 = vmul.f32 %v1247, %v1617
    %v2020 = vmul.f32 %v1248, %v1617
    %v2021 = vmul.f32 %v1249, %v1617
    %v2022 = vmul.f32 %v1250, %v1617
    %v2023 = vmul.f32 %v1251, %v1617
    %v2024 = vmul.f32 %v1252, %v1617
    %v2025 = vmul.f32 %v1253, %v1617
    %v2026 = vmul.f32 %v1254, %v1617
    %v2027 = vmul.f32 %v1255, %v1617
    %v2028 = vmul.f32 %v1256, %v1617
    %v2029 = vmul.f32 %v1257, %v1617
    %v2030 = vmul.f32 %v1258, %v1617
    %v2031 = vmul.f32 %v1259, %v1617
    %v2032 = vmul.f32 %v1260, %v1617
    %v2033 = vmul.f32 %v1261, %v1617
    %v2034 = vmul.f32 %v1262, %v1617
    %v2035 = vmul.f32 %v1263, %v1617
    %v2036 = vmul.f32 %v1264, %v1617
    %v2037 = vmul.f32 %v1265, %v1617
    %v2038 = vmul.f32 %v1266, %v1617
    %v2039 = vmul.f32 %v1267, %v1617
    %v2040 = vmul.f32 %v1268, %v1617
    %v2041 = vmul.f32 %v1269, %v1617
    %v2042 = vmul.f32 %v1270, %v1617
    %v2043 = vmul.f32 %v1271, %v1617
    %v2044 = vmul.f32 %v1272, %v1617
    %v2045 = vmul.f32 %v1273, %v1617
    %v2046 = vmul.f32 %v1274, %v1617
    %v2047 = vmul.f32 %v1275, %v1617
    %v2048 = vmul.f32 %v1276, %v1617
    %v2049 = vmul.f32 %v1277, %v1617
    %v2050 = vmul.f32 %v1278, %v1617
    %v2051 = vmul.f32 %v1279, %v1617
    %v2052 = vmul.f32 %v1280, %v1617
    %v2053 = vmul.f32 %v1281, %v1617
    %v2054 = vmul.f32 %v1282, %v1617
    %v2055 = vmul.f32 %v1283, %v1617
    %v2056 = vmul.f32 %v1284, %v1617
    %v2057 = vmul.f32 %v1285, %v1617
    %v2058 = vmul.f32 %v1286, %v1617
    %v2059 = vmul.f32 %v1287, %v1617
    %v2060 = vmul.f32 %v1288, %v1617
    %v2061 = vmul.f32 %v1289, %v1617
    %v2062 = vmul.f32 %v1290, %v1617
    %v2063 = vmul.f32 %v1291, %v1617
    %v2064 = vmul.f32 %v1292, %v1617
    %v2065 = vmul.f32 %v1293, %v1617
    %v2066 = vmul.f32 %v1294, %v1617
    %v2067 = vmul.f32 %v1295, %v1617
    %v2068 = vmul.f32 %v1296, %v1617
    %v2069 = vmul.f32 %v1297, %v1617
    %v2070 = vmul.f32 %v1298, %v1617
    %v2071 = vmul.f32 %v1299, %v1617
    %v2072 = vmul.f32 %v1300, %v1617
    %v2073 = vmul.f32 %v1301, %v1617
    %v2074 = vmul.f32 %v1302, %v1617
    %v2075 = vmul.f32 %v1303, %v1617
    %v2076 = vmul.f32 %v1304, %v1617
    %v2077 = vmul.f32 %v1305, %v1617
    %v2078 = vmul.f32 %v1306, %v1617
    %v2079 = vmul.f32 %v1307, %v1617
    %v2080 = vmul.f32 %v1308, %v1617
    %v2081 = vmul.f32 %v1309, %v1617
    %v2082 = vmul.f32 %v1310, %v1617
    %v2083 = vmul.f32 %v1311, %v1617
    %v2084 = vmul.f32 %v1312, %v1617
    %v2085 = vmul.f32 %v1313, %v1617
    %v2086 = vmul.f32 %v1314, %v1617
    %v2087 = vmul.f32 %v1315, %v1617
    %v2088 = vmul.f32 %v1316, %v1617
    %v2089 = vmul.f32 %v1317, %v1617
    %v2090 = vmul.f32 %v1318, %v1617
    %v2091 = vmul.f32 %v1319, %v1617
    %v2092 = vmul.f32 %v1320, %v1617
    %v2093 = vmul.f32 %v1321, %v1617
    %v2094 = vmul.f32 %v1322, %v1617
    %v2095 = vmul.f32 %v1323, %v1617
    %v2096 = vmul.f32 %v1324, %v1617
    %v2097 = vmul.f32 %v1325, %v1617
    %v2098 = vmul.f32 %v1326, %v1617
    %v2099 = vmul.f32 %v1327, %v1617
    %v2100 = vmul.f32 %v1328, %v1617
    %v2101 = vmul.f32 %v1329, %v1617
    %v2102 = vmul.f32 %v1330, %v1617
    %v2103 = vmul.f32 %v1331, %v1617
    %v2104 = vmul.f32 %v1332, %v1617
    %v2105 = vmul.f32 %v1333, %v1617
    %v2106 = vmul.f32 %v1334, %v1617
    %v2107 = vmul.f32 %v1335, %v1617
    %v2108 = vmul.f32 %v1336, %v1617
    %v2109 = vmul.f32 %v1337, %v1617
    %v2110 = vmul.f32 %v1338, %v1617
    %v2111 = vmul.f32 %v1339, %v1617
    %v2112 = vmul.f32 %v1340, %v1617
    %v2113 = vmul.f32 %v1341, %v1617
    %v2114 = vmul.f32 %v1342, %v1617
    %v2115 = vmul.f32 %v1343, %v1617
    %v2116 = vmul.f32 %v1344, %v1617
    %v2117 = vmul.f32 %v1345, %v1617
    %v2118 = vmul.f32 %v1346, %v1617
    %v2119 = vmul.f32 %v1347, %v1617
    %v2120 = vmul.f32 %v1348, %v1617
    %v2121 = vmul.f32 %v1349, %v1617
    %v2122 = vmul.f32 %v1350, %v1617
    %v2123 = vmul.f32 %v1351, %v1617
    %v2124 = vmul.f32 %v1352, %v1617
    %v2125 = vmul.f32 %v1353, %v1617
    %v2126 = vmul.f32 %v1354, %v1617
    %v2127 = vmul.f32 %v1355, %v1617
    %v2128 = vmul.f32 %v1356, %v1617
    %v2129 = vmul.f32 %v1357, %v1617
    %v2130 = vmul.f32 %v1358, %v1617
    %v2131 = vmul.f32 %v1359, %v1617
    %v2132 = vmul.f32 %v1360, %v1617
    %v2133 = vmul.f32 %v1361, %v1617
    %v2134 = vmul.f32 %v1362, %v1617
    %v2135 = vmul.f32 %v1363, %v1617
    %v2136 = vmul.f32 %v1364, %v1617
    %v2137 = vmul.f32 %v1365, %v1617
    %v2138 = vmul.f32 %v1366, %v1617
    %v2139 = vmul.f32 %v1367, %v1617
    %v2140 = vmul.f32 %v1368, %v1617
    %v2141 = vmul.f32 %v1369, %v1617
    %v2142 = vmul.f32 %v1370, %v1617
    %v2143 = vmul.f32 %v1371, %v1617
    %v2144 = vmul.f32 %v1372, %v1617
    %v2145 = vmul.f32 %v1373, %v1617
    %v2146 = vmul.f32 %v1374, %v1617
    %v2147 = vmul.f32 %v1375, %v1617
    %v2148 = vmul.f32 %v1376, %v1617
    %v2149 = vmul.f32 %v1377, %v1617
    %v2150 = vmul.f32 %v1378, %v1617
    %v2151 = vmul.f32 %v1379, %v1617
    %v2152 = vmul.f32 %v1380, %v1617
    %v2153 = vmul.f32 %v1381, %v1617
    %v2154 = vmul.f32 %v1382, %v1617
    %v2155 = vmul.f32 %v1383, %v1617
    %v2156 = vmul.f32 %v1384, %v1617
    %v2157 = vmul.f32 %v1385, %v1617
    %v2158 = vmul.f32 %v1386, %v1617
    %v2159 = vmul.f32 %v1387, %v1617
    %v2160 = vmul.f32 %v1388, %v1617
    %v2161 = vmul.f32 %v1389, %v1617
    %v2162 = vmul.f32 %v1390, %v1617
    %v2163 = vmul.f32 %v1391, %v1617
    %v2164 = vmul.f32 %v1392, %v1617
    %v2165 = vmul.f32 %v1393, %v1617
    %v2166 = vmul.f32 %v1394, %v1617
    %v2167 = vmul.f32 %v1395, %v1617
    %v2168 = vmul.f32 %v1396, %v1617
    %v2169 = vmul.f32 %v1397, %v1617
    %v2170 = vmul.f32 %v1398, %v1617
    %v2171 = vmul.f32 %v1399, %v1617
    %v2172 = vmul.f32 %v1400, %v1617
    %v2173 = vmul.f32 %v1401, %v1617
    %v2174 = vmul.f32 %v1402, %v1617
    %v2175 = vmul.f32 %v1403, %v1617
    %v2176 = vmul.f32 %v1404, %v1617
    %v2177 = vmul.f32 %v1405, %v1617
    %v2178 = vmul.f32 %v1406, %v1617
    %v2179 = vmul.f32 %v1407, %v1617
    %v2180 = vmul.f32 %v1408, %v1617
    %v2181 = vmul.f32 %v1409, %v1617
    %v2182 = vmul.f32 %v1410, %v1617
    %v2183 = vmul.f32 %v1411, %v1617
    %v2184 = vmul.f32 %v1412, %v1617
    %v2185 = vmul.f32 %v1413, %v1617
    %v2186 = vmul.f32 %v1414, %v1617
    %v2187 = vmul.f32 %v1415, %v1617
    %v2188 = vmul.f32 %v1416, %v1617
    %v2189 = vmul.f32 %v1417, %v1617
    %v2190 = vmul.f32 %v1418, %v1617
    %v2191 = vmul.f32 %v1419, %v1617
    %v2192 = vmul.f32 %v1420, %v1617
    %v2193 = vmul.f32 %v1421, %v1617
    %v2194 = vmul.f32 %v1422, %v1617
    %v2195 = vmul.f32 %v1423, %v1617
    %v2196 = vmul.f32 %v1424, %v1617
    %v2197 = vmul.f32 %v1425, %v1617
    %v2198 = vmul.f32 %v1426, %v1617
    %v2199 = vmul.f32 %v1427, %v1617
    %v2200 = vmul.f32 %v1428, %v1617
    %v2201 = vmul.f32 %v1429, %v1617
    %v2202 = vmul.f32 %v1430, %v1617
    %v2203 = vmul.f32 %v1431, %v1617
    %v2204 = vmul.f32 %v1432, %v1617
    %v2205 = vmul.f32 %v1433, %v1617
    %v2206 = vmul.f32 %v1434, %v1617
    %v2207 = vmul.f32 %v1435, %v1617
    %v2208 = vmul.f32 %v1436, %v1617
    %v2209 = vmul.f32 %v1437, %v1617
    %v2210 = vmul.f32 %v1438, %v1617
    %v2211 = vmul.f32 %v1439, %v1617
    %v2212 = vmul.f32 %v1440, %v1617
    %v2213 = vmul.f32 %v1441, %v1617
    %v2214 = vmul.f32 %v1442, %v1617
    %v2215 = vmul.f32 %v1443, %v1617
    %v2216 = vmul.f32 %v1444, %v1617
    %v2217 = vmul.f32 %v1445, %v1617
    %v2218 = vmul.f32 %v1446, %v1617
    %v2219 = vmul.f32 %v1447, %v1617
    %v2220 = vmul.f32 %v1448, %v1617
    %v2221 = vmul.f32 %v1449, %v1617
    %v2222 = vmul.f32 %v1450, %v1617
    %v2223 = vmul.f32 %v1451, %v1617
    %v2224 = vmul.f32 %v1452, %v1617
    %v2225 = vmul.f32 %v1453, %v1617
    %v2226 = vmul.f32 %v1454, %v1617
    %v2227 = vmul.f32 %v1455, %v1617
    %v2228 = vmul.f32 %v1456, %v1617
    %v2229 = vmul.f32 %v1457, %v1617
    %v2230 = vmul.f32 %v1458, %v1617
    %v2231 = vmul.f32 %v1459, %v1617
    %v2232 = vmul.f32 %v1460, %v1617
    %v2233 = vmul.f32 %v1461, %v1617
    %v2234 = vmul.f32 %v1462, %v1617
    %v2235 = vmul.f32 %v1463, %v1617
    %v2236 = vmul.f32 %v1464, %v1617
    %v2237 = vmul.f32 %v1465, %v1617
    %v2238 = vmul.f32 %v1466, %v1617
    %v2239 = vmul.f32 %v1467, %v1617
    %v2240 = vmul.f32 %v1468, %v1617
    %v2241 = vmul.f32 %v1469, %v1617
    %v2242 = vmul.f32 %v1470, %v1617
    %v2243 = vmul.f32 %v1471, %v1617
    %v2244 = vmul.f32 %v1472, %v1617
    %v2245 = vmul.f32 %v1473, %v1617
    %v2246 = vmul.f32 %v1474, %v1617
    %v2247 = vmul.f32 %v1475, %v1617
    %v2248 = vmul.f32 %v1476, %v1617
    %v2249 = vmul.f32 %v1477, %v1617
    %v2250 = vmul.f32 %v1478, %v1617
    %v2251 = vmul.f32 %v1479, %v1617
    %v2252 = vmul.f32 %v1480, %v1617
    %v2253 = vmul.f32 %v1481, %v1617
    %v2254 = vmul.f32 %v1482, %v1617
    %v2255 = vmul.f32 %v1483, %v1617
    %v2256 = vmul.f32 %v1484, %v1617
    %v2257 = vmul.f32 %v1485, %v1617
    %v2258 = vmul.f32 %v1486, %v1617
    %v2259 = vmul.f32 %v1487, %v1617
    %v2260 = vmul.f32 %v1488, %v1617
    %v2261 = vmul.f32 %v1489, %v1617
    %v2262 = vmul.f32 %v1490, %v1617
    %v2263 = vmul.f32 %v1491, %v1617
    %v2264 = vmul.f32 %v1492, %v1617
    %v2265 = vmul.f32 %v1493, %v1617
    %v2266 = vmul.f32 %v1494, %v1617
    %v2267 = vmul.f32 %v1495, %v1617
    %v2268 = vmul.f32 %v1496, %v1617
    %v2269 = vmul.f32 %v1497, %v1617
    %v2270 = vmul.f32 %v1498, %v1617
    %v2271 = vmul.f32 %v1499, %v1617
    %v2272 = vmul.f32 %v1500, %v1617
    %v2273 = vmul.f32 %v1501, %v1617
    %v2274 = vmul.f32 %v1502, %v1617
    %v2275 = vmul.f32 %v1503, %v1617
    %v2276 = vmul.f32 %v1504, %v1617
    %v2277 = vmul.f32 %v1505, %v1617
    %v2278 = vmul.f32 %v1506, %v1617
    %v2279 = vmul.f32 %v1507, %v1617
    %v2280 = vmul.f32 %v1508, %v1617
    %v2281 = vmul.f32 %v1509, %v1617
    %v2282 = vmul.f32 %v1510, %v1617
    %v2283 = vmul.f32 %v1511, %v1617
    %v2284 = vmul.f32 %v1512, %v1617
    %v2285 = vmul.f32 %v1513, %v1617
    %v2286 = vmul.f32 %v1514, %v1617
    %v2287 = vmul.f32 %v1515, %v1617
    %v2288 = vmul.f32 %v1516, %v1617
    %v2289 = vmul.f32 %v1517, %v1617
    %v2290 = vmul.f32 %v1518, %v1617
    %v2291 = vmul.f32 %v1519, %v1617
    %v2292 = vmul.f32 %v1520, %v1617
    %v2293 = vmul.f32 %v1521, %v1617
    %v2294 = vmul.f32 %v1522, %v1617
    %v2295 = vmul.f32 %v1523, %v1617
    %v2296 = vmul.f32 %v1524, %v1617
    %v2297 = vmul.f32 %v1525, %v1617
    %v2298 = vmul.f32 %v1526, %v1617
    %v2299 = vmul.f32 %v1527, %v1617
    %v2300 = vmul.f32 %v1528, %v1617
    %v2301 = vmul.f32 %v1529, %v1617
    %v2302 = vmul.f32 %v1530, %v1617
    %v2303 = vmul.f32 %v1531, %v1617
    %v2304 = vmul.f32 %v1532, %v1617
    %v2305 = vmul.f32 %v1533, %v1617
    %v2306 = vmul.f32 %v1534, %v1617
    %v2307 = vmul.f32 %v1535, %v1617
    %v2308 = vmul.f32 %v1536, %v1617
    %v2309 = vmul.f32 %v1537, %v1617
    %v2310 = vmul.f32 %v1538, %v1617
    %v2311 = vmul.f32 %v1539, %v1617
    %v2312 = vmul.f32 %v1540, %v1617
    %v2313 = vmul.f32 %v1541, %v1617
    %v2314 = vmul.f32 %v1542, %v1617
    %v2315 = vmul.f32 %v1543, %v1617
    %v2316 = vmul.f32 %v1544, %v1617
    %v2317 = vmul.f32 %v1545, %v1617
    %v2318 = vmul.f32 %v1546, %v1617
    %v2319 = vmul.f32 %v1547, %v1617
    %v2320 = vmul.f32 %v1548, %v1617
    %v2321 = vmul.f32 %v1549, %v1617
    %v2322 = vmul.f32 %v1550, %v1617
    %v2323 = vmul.f32 %v1551, %v1617
    %v2324 = vmul.f32 %v1552, %v1617
    %v2325 = vmul.f32 %v1553, %v1617
    %v2326 = vmul.f32 %v1554, %v1617
    %v2327 = vmul.f32 %v1555, %v1617
    %v2328 = vmul.f32 %v1556, %v1617
    %v2329 = vmul.f32 %v1557, %v1617
    %v2330 = vmul.f32 %v1558, %v1617
    %v2331 = vmul.f32 %v1559, %v1617
    %v2332 = vmul.f32 %v1560, %v1617
    %v2333 = vmul.f32 %v1561, %v1617
    %v2334 = vmul.f32 %v1562, %v1617
    %v2335 = vmul.f32 %v1563, %v1617
    %v2336 = vmul.f32 %v1564, %v1617
    %v2337 = vmul.f32 %v1565, %v1617
    %v2338 = vmul.f32 %v1566, %v1617
    %v2339 = vmul.f32 %v1567, %v1617
    %v2340 = vmul.f32 %v1568, %v1617
    %v2341 = vmul.f32 %v1569, %v1617
    %v2342 = vmul.f32 %v1570, %v1617
    %v2343 = vmul.f32 %v1571, %v1617
    %v2344 = vmul.f32 %v1572, %v1617
    %v2345 = vmul.f32 %v1573, %v1617
    %v2346 = vmul.f32 %v1574, %v1617
    %v2347 = vmul.f32 %v1575, %v1617
    %v2348 = vmul.f32 %v1576, %v1617
    %v2349 = vmul.f32 %v1577, %v1617
    %v2350 = vmul.f32 %v1578, %v1617
    %v2351 = vmul.f32 %v1579, %v1617
    %v2352 = vmul.f32 %v1580, %v1617
    %v2353 = vmul.f32 %v1581, %v1617
    %v2354 = vmul.f32 %v1582, %v1617
    %v2355 = vmul.f32 %v1583, %v1617
    %v2356 = vmul.f32 %v1584, %v1617
    %v2357 = vmul.f32 %v1585, %v1617
    %v2358 = vmul.f32 %v1586, %v1617
    %v2359 = vmul.f32 %v1587, %v1617
    %v2360 = vmul.f32 %v1588, %v1617
    %v2361 = vmul.f32 %v1589, %v1617
    %v2362 = vmul.f32 %v1590, %v1617
    %v2363 = vmul.f32 %v1591, %v1617
    %v2364 = vmul.f32 %v1592, %v1617
    %v2365 = vmul.f32 %v1593, %v1617
    %v2366 = vmul.f32 %v1594, %v1617
    %v2367 = vmul.f32 %v1595, %v1617
    %v2368 = vmul.f32 %v1596, %v1617
    %v2369 = vmul.f32 %v1597, %v1617
    %v2370 = vmul.f32 %v1598, %v1617
    %v2371 = vmul.f32 %v1599, %v1617
    %v2372 = vmul.f32 %v1600, %v1617
    %v2373 = vmul.f32 %v1601, %v1617
    %v2374 = vmul.f32 %v1602, %v1617
    %v2375 = vmul.f32 %v1603, %v1617
    %v2376 = vmul.f32 %v1604, %v1617
    %v2377 = vmul.f32 %v1605, %v1617
    %v2378 = vmul.f32 %v1606, %v1617
    %v2379 = vmul.f32 %v1607, %v1617
    %v2380 = vmul.f32 %v1608, %v1617
    %v2381 = vmul.f32 %v1609, %v1617
    %v2382 = vmul.f32 %v1610, %v1617
    %v2383 = vmul.f32 %v1611, %v1617
    %v2384 = vmul.f32 %v1612, %v1617
    %v2385 = vmul.f32 %v1613, %v1617
    %v2386 = vmul.f32 %v1614, %v1617
    %v2387 = vmul.f32 %v1615, %v1617
    %2388 = vst [vmem:[#allocation8] sm:$0xff] %v1619
    %2389 = vst [vmem:[#allocation8 + $0x8] sm:$0xff] %v1620
    %2390 = vst [vmem:[#allocation8 + $0x10] sm:$0xff] %v1621
    %2391 = vst [vmem:[#allocation8 + $0x18] sm:$0xff] %v1622
    %2392 = vst [vmem:[#allocation8 + $0x20] sm:$0xff] %v1623
    %2393 = vst [vmem:[#allocation8 + $0x28] sm:$0xff] %v1624
    %2394 = vst [vmem:[#allocation8 + $0x30] sm:$0xff] %v1625
    %2395 = vst [vmem:[#allocation8 + $0x38] sm:$0xff] %v1626
    %2396 = vst [vmem:[#allocation8 + $0x40] sm:$0xff] %v1627
    %2397 = vst [vmem:[#allocation8 + $0x48] sm:$0xff] %v1628
    %2398 = vst [vmem:[#allocation8 + $0x50] sm:$0xff] %v1629
    %2399 = vst [vmem:[#allocation8 + $0x58] sm:$0xff] %v1630
    %2400 = vst [vmem:[#allocation8 + $0x60] sm:$0xff] %v1631
    %2401 = vst [vmem:[#allocation8 + $0x68] sm:$0xff] %v1632
    %2402 = vst [vmem:[#allocation8 + $0x70] sm:$0xff] %v1633
    %2403 = vst [vmem:[#allocation8 + $0x78] sm:$0xff] %v1634
    %2404 = vst [vmem:[#allocation8 + $0x80] sm:$0xff] %v1635
    %2405 = vst [vmem:[#allocation8 + $0x88] sm:$0xff] %v1636
    %2406 = vst [vmem:[#allocation8 + $0x90] sm:$0xff] %v1637
    %2407 = vst [vmem:[#allocation8 + $0x98] sm:$0xff] %v1638
    %2408 = vst [vmem:[#allocation8 + $0xa0] sm:$0xff] %v1639
    %2409 = vst [vmem:[#allocation8 + $0xa8] sm:$0xff] %v1640
    %2410 = vst [vmem:[#allocation8 + $0xb0] sm:$0xff] %v1641
    %2411 = vst [vmem:[#allocation8 + $0xb8] sm:$0xff] %v1642
    %2412 = vst [vmem:[#allocation8 + $0xc0] sm:$0xff] %v1643
    %2413 = vst [vmem:[#allocation8 + $0xc8] sm:$0xff] %v1644
    %2414 = vst [vmem:[#allocation8 + $0xd0] sm:$0xff] %v1645
    %2415 = vst [vmem:[#allocation8 + $0xd8] sm:$0xff] %v1646
    %2416 = vst [vmem:[#allocation8 + $0xe0] sm:$0xff] %v1647
    %2417 = vst [vmem:[#allocation8 + $0xe8] sm:$0xff] %v1648
    %2418 = vst [vmem:[#allocation8 + $0xf0] sm:$0xff] %v1649
    %2419 = vst [vmem:[#allocation8 + $0xf8] sm:$0xff] %v1650
    %2420 = vst [vmem:[#allocation8 + $0x100] sm:$0xff] %v1651
    %2421 = vst [vmem:[#allocation8 + $0x108] sm:$0xff] %v1652
    %2422 = vst [vmem:[#allocation8 + $0x110] sm:$0xff] %v1653
    %2423 = vst [vmem:[#allocation8 + $0x118] sm:$0xff] %v1654
    %2424 = vst [vmem:[#allocation8 + $0x120] sm:$0xff] %v1655
    %2425 = vst [vmem:[#allocation8 + $0x128] sm:$0xff] %v1656
    %2426 = vst [vmem:[#allocation8 + $0x130] sm:$0xff] %v1657
    %2427 = vst [vmem:[#allocation8 + $0x138] sm:$0xff] %v1658
    %2428 = vst [vmem:[#allocation8 + $0x140] sm:$0xff] %v1659
    %2429 = vst [vmem:[#allocation8 + $0x148] sm:$0xff] %v1660
    %2430 = vst [vmem:[#allocation8 + $0x150] sm:$0xff] %v1661
    %2431 = vst [vmem:[#allocation8 + $0x158] sm:$0xff] %v1662
    %2432 = vst [vmem:[#allocation8 + $0x160] sm:$0xff] %v1663
    %2433 = vst [vmem:[#allocation8 + $0x168] sm:$0xff] %v1664
    %2434 = vst [vmem:[#allocation8 + $0x170] sm:$0xff] %v1665
    %2435 = vst [vmem:[#allocation8 + $0x178] sm:$0xff] %v1666
    %2436 = vst [vmem:[#allocation8 + $0x180] sm:$0xff] %v1667
    %2437 = vst [vmem:[#allocation8 + $0x188] sm:$0xff] %v1668
    %2438 = vst [vmem:[#allocation8 + $0x190] sm:$0xff] %v1669
    %2439 = vst [vmem:[#allocation8 + $0x198] sm:$0xff] %v1670
    %2440 = vst [vmem:[#allocation8 + $0x1a0] sm:$0xff] %v1671
    %2441 = vst [vmem:[#allocation8 + $0x1a8] sm:$0xff] %v1672
    %2442 = vst [vmem:[#allocation8 + $0x1b0] sm:$0xff] %v1673
    %2443 = vst [vmem:[#allocation8 + $0x1b8] sm:$0xff] %v1674
    %2444 = vst [vmem:[#allocation8 + $0x1c0] sm:$0xff] %v1675
    %2445 = vst [vmem:[#allocation8 + $0x1c8] sm:$0xff] %v1676
    %2446 = vst [vmem:[#allocation8 + $0x1d0] sm:$0xff] %v1677
    %2447 = vst [vmem:[#allocation8 + $0x1d8] sm:$0xff] %v1678
    %2448 = vst [vmem:[#allocation8 + $0x1e0] sm:$0xff] %v1679
    %2449 = vst [vmem:[#allocation8 + $0x1e8] sm:$0xff] %v1680
    %2450 = vst [vmem:[#allocation8 + $0x1f0] sm:$0xff] %v1681
    %2451 = vst [vmem:[#allocation8 + $0x1f8] sm:$0xff] %v1682
    %2452 = vst [vmem:[#allocation8 + $0x200] sm:$0xff] %v1683
    %2453 = vst [vmem:[#allocation8 + $0x208] sm:$0xff] %v1684
    %2454 = vst [vmem:[#allocation8 + $0x210] sm:$0xff] %v1685
    %2455 = vst [vmem:[#allocation8 + $0x218] sm:$0xff] %v1686
    %2456 = vst [vmem:[#allocation8 + $0x220] sm:$0xff] %v1687
    %2457 = vst [vmem:[#allocation8 + $0x228] sm:$0xff] %v1688
    %2458 = vst [vmem:[#allocation8 + $0x230] sm:$0xff] %v1689
    %2459 = vst [vmem:[#allocation8 + $0x238] sm:$0xff] %v1690
    %2460 = vst [vmem:[#allocation8 + $0x240] sm:$0xff] %v1691
    %2461 = vst [vmem:[#allocation8 + $0x248] sm:$0xff] %v1692
    %2462 = vst [vmem:[#allocation8 + $0x250] sm:$0xff] %v1693
    %2463 = vst [vmem:[#allocation8 + $0x258] sm:$0xff] %v1694
    %2464 = vst [vmem:[#allocation8 + $0x260] sm:$0xff] %v1695
    %2465 = vst [vmem:[#allocation8 + $0x268] sm:$0xff] %v1696
    %2466 = vst [vmem:[#allocation8 + $0x270] sm:$0xff] %v1697
    %2467 = vst [vmem:[#allocation8 + $0x278] sm:$0xff] %v1698
    %2468 = vst [vmem:[#allocation8 + $0x280] sm:$0xff] %v1699
    %2469 = vst [vmem:[#allocation8 + $0x288] sm:$0xff] %v1700
    %2470 = vst [vmem:[#allocation8 + $0x290] sm:$0xff] %v1701
    %2471 = vst [vmem:[#allocation8 + $0x298] sm:$0xff] %v1702
    %2472 = vst [vmem:[#allocation8 + $0x2a0] sm:$0xff] %v1703
    %2473 = vst [vmem:[#allocation8 + $0x2a8] sm:$0xff] %v1704
    %2474 = vst [vmem:[#allocation8 + $0x2b0] sm:$0xff] %v1705
    %2475 = vst [vmem:[#allocation8 + $0x2b8] sm:$0xff] %v1706
    %2476 = vst [vmem:[#allocation8 + $0x2c0] sm:$0xff] %v1707
    %2477 = vst [vmem:[#allocation8 + $0x2c8] sm:$0xff] %v1708
    %2478 = vst [vmem:[#allocation8 + $0x2d0] sm:$0xff] %v1709
    %2479 = vst [vmem:[#allocation8 + $0x2d8] sm:$0xff] %v1710
    %2480 = vst [vmem:[#allocation8 + $0x2e0] sm:$0xff] %v1711
    %2481 = vst [vmem:[#allocation8 + $0x2e8] sm:$0xff] %v1712
    %2482 = vst [vmem:[#allocation8 + $0x2f0] sm:$0xff] %v1713
    %2483 = vst [vmem:[#allocation8 + $0x2f8] sm:$0xff] %v1714
    %2484 = vst [vmem:[#allocation8 + $0x300] sm:$0xff] %v1715
    %2485 = vst [vmem:[#allocation8 + $0x308] sm:$0xff] %v1716
    %2486 = vst [vmem:[#allocation8 + $0x310] sm:$0xff] %v1717
    %2487 = vst [vmem:[#allocation8 + $0x318] sm:$0xff] %v1718
    %2488 = vst [vmem:[#allocation8 + $0x320] sm:$0xff] %v1719
    %2489 = vst [vmem:[#allocation8 + $0x328] sm:$0xff] %v1720
    %2490 = vst [vmem:[#allocation8 + $0x330] sm:$0xff] %v1721
    %2491 = vst [vmem:[#allocation8 + $0x338] sm:$0xff] %v1722
    %2492 = vst [vmem:[#allocation8 + $0x340] sm:$0xff] %v1723
    %2493 = vst [vmem:[#allocation8 + $0x348] sm:$0xff] %v1724
    %2494 = vst [vmem:[#allocation8 + $0x350] sm:$0xff] %v1725
    %2495 = vst [vmem:[#allocation8 + $0x358] sm:$0xff] %v1726
    %2496 = vst [vmem:[#allocation8 + $0x360] sm:$0xff] %v1727
    %2497 = vst [vmem:[#allocation8 + $0x368] sm:$0xff] %v1728
    %2498 = vst [vmem:[#allocation8 + $0x370] sm:$0xff] %v1729
    %2499 = vst [vmem:[#allocation8 + $0x378] sm:$0xff] %v1730
    %2500 = vst [vmem:[#allocation8 + $0x380] sm:$0xff] %v1731
    %2501 = vst [vmem:[#allocation8 + $0x388] sm:$0xff] %v1732
    %2502 = vst [vmem:[#allocation8 + $0x390] sm:$0xff] %v1733
    %2503 = vst [vmem:[#allocation8 + $0x398] sm:$0xff] %v1734
    %2504 = vst [vmem:[#allocation8 + $0x3a0] sm:$0xff] %v1735
    %2505 = vst [vmem:[#allocation8 + $0x3a8] sm:$0xff] %v1736
    %2506 = vst [vmem:[#allocation8 + $0x3b0] sm:$0xff] %v1737
    %2507 = vst [vmem:[#allocation8 + $0x3b8] sm:$0xff] %v1738
    %2508 = vst [vmem:[#allocation8 + $0x3c0] sm:$0xff] %v1739
    %2509 = vst [vmem:[#allocation8 + $0x3c8] sm:$0xff] %v1740
    %2510 = vst [vmem:[#allocation8 + $0x3d0] sm:$0xff] %v1741
    %2511 = vst [vmem:[#allocation8 + $0x3d8] sm:$0xff] %v1742
    %2512 = vst [vmem:[#allocation8 + $0x3e0] sm:$0xff] %v1743
    %2513 = vst [vmem:[#allocation8 + $0x3e8] sm:$0xff] %v1744
    %2514 = vst [vmem:[#allocation8 + $0x3f0] sm:$0xff] %v1745
    %2515 = vst [vmem:[#allocation8 + $0x3f8] sm:$0xff] %v1746
    %2516 = vst [vmem:[#allocation8 + $0x400] sm:$0xff] %v1747
    %2517 = vst [vmem:[#allocation8 + $0x408] sm:$0xff] %v1748
    %2518 = vst [vmem:[#allocation8 + $0x410] sm:$0xff] %v1749
    %2519 = vst [vmem:[#allocation8 + $0x418] sm:$0xff] %v1750
    %2520 = vst [vmem:[#allocation8 + $0x420] sm:$0xff] %v1751
    %2521 = vst [vmem:[#allocation8 + $0x428] sm:$0xff] %v1752
    %2522 = vst [vmem:[#allocation8 + $0x430] sm:$0xff] %v1753
    %2523 = vst [vmem:[#allocation8 + $0x438] sm:$0xff] %v1754
    %2524 = vst [vmem:[#allocation8 + $0x440] sm:$0xff] %v1755
    %2525 = vst [vmem:[#allocation8 + $0x448] sm:$0xff] %v1756
    %2526 = vst [vmem:[#allocation8 + $0x450] sm:$0xff] %v1757
    %2527 = vst [vmem:[#allocation8 + $0x458] sm:$0xff] %v1758
    %2528 = vst [vmem:[#allocation8 + $0x460] sm:$0xff] %v1759
    %2529 = vst [vmem:[#allocation8 + $0x468] sm:$0xff] %v1760
    %2530 = vst [vmem:[#allocation8 + $0x470] sm:$0xff] %v1761
    %2531 = vst [vmem:[#allocation8 + $0x478] sm:$0xff] %v1762
    %2532 = vst [vmem:[#allocation8 + $0x480] sm:$0xff] %v1763
    %2533 = vst [vmem:[#allocation8 + $0x488] sm:$0xff] %v1764
    %2534 = vst [vmem:[#allocation8 + $0x490] sm:$0xff] %v1765
    %2535 = vst [vmem:[#allocation8 + $0x498] sm:$0xff] %v1766
    %2536 = vst [vmem:[#allocation8 + $0x4a0] sm:$0xff] %v1767
    %2537 = vst [vmem:[#allocation8 + $0x4a8] sm:$0xff] %v1768
    %2538 = vst [vmem:[#allocation8 + $0x4b0] sm:$0xff] %v1769
    %2539 = vst [vmem:[#allocation8 + $0x4b8] sm:$0xff] %v1770
    %2540 = vst [vmem:[#allocation8 + $0x4c0] sm:$0xff] %v1771
    %2541 = vst [vmem:[#allocation8 + $0x4c8] sm:$0xff] %v1772
    %2542 = vst [vmem:[#allocation8 + $0x4d0] sm:$0xff] %v1773
    %2543 = vst [vmem:[#allocation8 + $0x4d8] sm:$0xff] %v1774
    %2544 = vst [vmem:[#allocation8 + $0x4e0] sm:$0xff] %v1775
    %2545 = vst [vmem:[#allocation8 + $0x4e8] sm:$0xff] %v1776
    %2546 = vst [vmem:[#allocation8 + $0x4f0] sm:$0xff] %v1777
    %2547 = vst [vmem:[#allocation8 + $0x4f8] sm:$0xff] %v1778
    %2548 = vst [vmem:[#allocation8 + $0x500] sm:$0xff] %v1779
    %2549 = vst [vmem:[#allocation8 + $0x508] sm:$0xff] %v1780
    %2550 = vst [vmem:[#allocation8 + $0x510] sm:$0xff] %v1781
    %2551 = vst [vmem:[#allocation8 + $0x518] sm:$0xff] %v1782
    %2552 = vst [vmem:[#allocation8 + $0x520] sm:$0xff] %v1783
    %2553 = vst [vmem:[#allocation8 + $0x528] sm:$0xff] %v1784
    %2554 = vst [vmem:[#allocation8 + $0x530] sm:$0xff] %v1785
    %2555 = vst [vmem:[#allocation8 + $0x538] sm:$0xff] %v1786
    %2556 = vst [vmem:[#allocation8 + $0x540] sm:$0xff] %v1787
    %2557 = vst [vmem:[#allocation8 + $0x548] sm:$0xff] %v1788
    %2558 = vst [vmem:[#allocation8 + $0x550] sm:$0xff] %v1789
    %2559 = vst [vmem:[#allocation8 + $0x558] sm:$0xff] %v1790
    %2560 = vst [vmem:[#allocation8 + $0x560] sm:$0xff] %v1791
    %2561 = vst [vmem:[#allocation8 + $0x568] sm:$0xff] %v1792
    %2562 = vst [vmem:[#allocation8 + $0x570] sm:$0xff] %v1793
    %2563 = vst [vmem:[#allocation8 + $0x578] sm:$0xff] %v1794
    %2564 = vst [vmem:[#allocation8 + $0x580] sm:$0xff] %v1795
    %2565 = vst [vmem:[#allocation8 + $0x588] sm:$0xff] %v1796
    %2566 = vst [vmem:[#allocation8 + $0x590] sm:$0xff] %v1797
    %2567 = vst [vmem:[#allocation8 + $0x598] sm:$0xff] %v1798
    %2568 = vst [vmem:[#allocation8 + $0x5a0] sm:$0xff] %v1799
    %2569 = vst [vmem:[#allocation8 + $0x5a8] sm:$0xff] %v1800
    %2570 = vst [vmem:[#allocation8 + $0x5b0] sm:$0xff] %v1801
    %2571 = vst [vmem:[#allocation8 + $0x5b8] sm:$0xff] %v1802
    %2572 = vst [vmem:[#allocation8 + $0x5c0] sm:$0xff] %v1803
    %2573 = vst [vmem:[#allocation8 + $0x5c8] sm:$0xff] %v1804
    %2574 = vst [vmem:[#allocation8 + $0x5d0] sm:$0xff] %v1805
    %2575 = vst [vmem:[#allocation8 + $0x5d8] sm:$0xff] %v1806
    %2576 = vst [vmem:[#allocation8 + $0x5e0] sm:$0xff] %v1807
    %2577 = vst [vmem:[#allocation8 + $0x5e8] sm:$0xff] %v1808
    %2578 = vst [vmem:[#allocation8 + $0x5f0] sm:$0xff] %v1809
    %2579 = vst [vmem:[#allocation8 + $0x5f8] sm:$0xff] %v1810
    %2580 = vst [vmem:[#allocation8 + $0x600] sm:$0xff] %v1811
    %2581 = vst [vmem:[#allocation8 + $0x608] sm:$0xff] %v1812
    %2582 = vst [vmem:[#allocation8 + $0x610] sm:$0xff] %v1813
    %2583 = vst [vmem:[#allocation8 + $0x618] sm:$0xff] %v1814
    %2584 = vst [vmem:[#allocation8 + $0x620] sm:$0xff] %v1815
    %2585 = vst [vmem:[#allocation8 + $0x628] sm:$0xff] %v1816
    %2586 = vst [vmem:[#allocation8 + $0x630] sm:$0xff] %v1817
    %2587 = vst [vmem:[#allocation8 + $0x638] sm:$0xff] %v1818
    %2588 = vst [vmem:[#allocation8 + $0x640] sm:$0xff] %v1819
    %2589 = vst [vmem:[#allocation8 + $0x648] sm:$0xff] %v1820
    %2590 = vst [vmem:[#allocation8 + $0x650] sm:$0xff] %v1821
    %2591 = vst [vmem:[#allocation8 + $0x658] sm:$0xff] %v1822
    %2592 = vst [vmem:[#allocation8 + $0x660] sm:$0xff] %v1823
    %2593 = vst [vmem:[#allocation8 + $0x668] sm:$0xff] %v1824
    %2594 = vst [vmem:[#allocation8 + $0x670] sm:$0xff] %v1825
    %2595 = vst [vmem:[#allocation8 + $0x678] sm:$0xff] %v1826
    %2596 = vst [vmem:[#allocation8 + $0x680] sm:$0xff] %v1827
    %2597 = vst [vmem:[#allocation8 + $0x688] sm:$0xff] %v1828
    %2598 = vst [vmem:[#allocation8 + $0x690] sm:$0xff] %v1829
    %2599 = vst [vmem:[#allocation8 + $0x698] sm:$0xff] %v1830
    %2600 = vst [vmem:[#allocation8 + $0x6a0] sm:$0xff] %v1831
    %2601 = vst [vmem:[#allocation8 + $0x6a8] sm:$0xff] %v1832
    %2602 = vst [vmem:[#allocation8 + $0x6b0] sm:$0xff] %v1833
    %2603 = vst [vmem:[#allocation8 + $0x6b8] sm:$0xff] %v1834
    %2604 = vst [vmem:[#allocation8 + $0x6c0] sm:$0xff] %v1835
    %2605 = vst [vmem:[#allocation8 + $0x6c8] sm:$0xff] %v1836
    %2606 = vst [vmem:[#allocation8 + $0x6d0] sm:$0xff] %v1837
    %2607 = vst [vmem:[#allocation8 + $0x6d8] sm:$0xff] %v1838
    %2608 = vst [vmem:[#allocation8 + $0x6e0] sm:$0xff] %v1839
    %2609 = vst [vmem:[#allocation8 + $0x6e8] sm:$0xff] %v1840
    %2610 = vst [vmem:[#allocation8 + $0x6f0] sm:$0xff] %v1841
    %2611 = vst [vmem:[#allocation8 + $0x6f8] sm:$0xff] %v1842
    %2612 = vst [vmem:[#allocation8 + $0x700] sm:$0xff] %v1843
    %2613 = vst [vmem:[#allocation8 + $0x708] sm:$0xff] %v1844
    %2614 = vst [vmem:[#allocation8 + $0x710] sm:$0xff] %v1845
    %2615 = vst [vmem:[#allocation8 + $0x718] sm:$0xff] %v1846
    %2616 = vst [vmem:[#allocation8 + $0x720] sm:$0xff] %v1847
    %2617 = vst [vmem:[#allocation8 + $0x728] sm:$0xff] %v1848
    %2618 = vst [vmem:[#allocation8 + $0x730] sm:$0xff] %v1849
    %2619 = vst [vmem:[#allocation8 + $0x738] sm:$0xff] %v1850
    %2620 = vst [vmem:[#allocation8 + $0x740] sm:$0xff] %v1851
    %2621 = vst [vmem:[#allocation8 + $0x748] sm:$0xff] %v1852
    %2622 = vst [vmem:[#allocation8 + $0x750] sm:$0xff] %v1853
    %2623 = vst [vmem:[#allocation8 + $0x758] sm:$0xff] %v1854
    %2624 = vst [vmem:[#allocation8 + $0x760] sm:$0xff] %v1855
    %2625 = vst [vmem:[#allocation8 + $0x768] sm:$0xff] %v1856
    %2626 = vst [vmem:[#allocation8 + $0x770] sm:$0xff] %v1857
    %2627 = vst [vmem:[#allocation8 + $0x778] sm:$0xff] %v1858
    %2628 = vst [vmem:[#allocation8 + $0x780] sm:$0xff] %v1859
    %2629 = vst [vmem:[#allocation8 + $0x788] sm:$0xff] %v1860
    %2630 = vst [vmem:[#allocation8 + $0x790] sm:$0xff] %v1861
    %2631 = vst [vmem:[#allocation8 + $0x798] sm:$0xff] %v1862
    %2632 = vst [vmem:[#allocation8 + $0x7a0] sm:$0xff] %v1863
    %2633 = vst [vmem:[#allocation8 + $0x7a8] sm:$0xff] %v1864
    %2634 = vst [vmem:[#allocation8 + $0x7b0] sm:$0xff] %v1865
    %2635 = vst [vmem:[#allocation8 + $0x7b8] sm:$0xff] %v1866
    %2636 = vst [vmem:[#allocation8 + $0x7c0] sm:$0xff] %v1867
    %2637 = vst [vmem:[#allocation8 + $0x7c8] sm:$0xff] %v1868
    %2638 = vst [vmem:[#allocation8 + $0x7d0] sm:$0xff] %v1869
    %2639 = vst [vmem:[#allocation8 + $0x7d8] sm:$0xff] %v1870
    %2640 = vst [vmem:[#allocation8 + $0x7e0] sm:$0xff] %v1871
    %2641 = vst [vmem:[#allocation8 + $0x7e8] sm:$0xff] %v1872
    %2642 = vst [vmem:[#allocation8 + $0x7f0] sm:$0xff] %v1873
    %2643 = vst [vmem:[#allocation8 + $0x7f8] sm:$0xff] %v1874
    %2644 = vst [vmem:[#allocation8 + $0x800] sm:$0xff] %v1875
    %2645 = vst [vmem:[#allocation8 + $0x808] sm:$0xff] %v1876
    %2646 = vst [vmem:[#allocation8 + $0x810] sm:$0xff] %v1877
    %2647 = vst [vmem:[#allocation8 + $0x818] sm:$0xff] %v1878
    %2648 = vst [vmem:[#allocation8 + $0x820] sm:$0xff] %v1879
    %2649 = vst [vmem:[#allocation8 + $0x828] sm:$0xff] %v1880
    %2650 = vst [vmem:[#allocation8 + $0x830] sm:$0xff] %v1881
    %2651 = vst [vmem:[#allocation8 + $0x838] sm:$0xff] %v1882
    %2652 = vst [vmem:[#allocation8 + $0x840] sm:$0xff] %v1883
    %2653 = vst [vmem:[#allocation8 + $0x848] sm:$0xff] %v1884
    %2654 = vst [vmem:[#allocation8 + $0x850] sm:$0xff] %v1885
    %2655 = vst [vmem:[#allocation8 + $0x858] sm:$0xff] %v1886
    %2656 = vst [vmem:[#allocation8 + $0x860] sm:$0xff] %v1887
    %2657 = vst [vmem:[#allocation8 + $0x868] sm:$0xff] %v1888
    %2658 = vst [vmem:[#allocation8 + $0x870] sm:$0xff] %v1889
    %2659 = vst [vmem:[#allocation8 + $0x878] sm:$0xff] %v1890
    %2660 = vst [vmem:[#allocation8 + $0x880] sm:$0xff] %v1891
    %2661 = vst [vmem:[#allocation8 + $0x888] sm:$0xff] %v1892
    %2662 = vst [vmem:[#allocation8 + $0x890] sm:$0xff] %v1893
    %2663 = vst [vmem:[#allocation8 + $0x898] sm:$0xff] %v1894
    %2664 = vst [vmem:[#allocation8 + $0x8a0] sm:$0xff] %v1895
    %2665 = vst [vmem:[#allocation8 + $0x8a8] sm:$0xff] %v1896
    %2666 = vst [vmem:[#allocation8 + $0x8b0] sm:$0xff] %v1897
    %2667 = vst [vmem:[#allocation8 + $0x8b8] sm:$0xff] %v1898
    %2668 = vst [vmem:[#allocation8 + $0x8c0] sm:$0xff] %v1899
    %2669 = vst [vmem:[#allocation8 + $0x8c8] sm:$0xff] %v1900
    %2670 = vst [vmem:[#allocation8 + $0x8d0] sm:$0xff] %v1901
    %2671 = vst [vmem:[#allocation8 + $0x8d8] sm:$0xff] %v1902
    %2672 = vst [vmem:[#allocation8 + $0x8e0] sm:$0xff] %v1903
    %2673 = vst [vmem:[#allocation8 + $0x8e8] sm:$0xff] %v1904
    %2674 = vst [vmem:[#allocation8 + $0x8f0] sm:$0xff] %v1905
    %2675 = vst [vmem:[#allocation8 + $0x8f8] sm:$0xff] %v1906
    %2676 = vst [vmem:[#allocation8 + $0x900] sm:$0xff] %v1907
    %2677 = vst [vmem:[#allocation8 + $0x908] sm:$0xff] %v1908
    %2678 = vst [vmem:[#allocation8 + $0x910] sm:$0xff] %v1909
    %2679 = vst [vmem:[#allocation8 + $0x918] sm:$0xff] %v1910
    %2680 = vst [vmem:[#allocation8 + $0x920] sm:$0xff] %v1911
    %2681 = vst [vmem:[#allocation8 + $0x928] sm:$0xff] %v1912
    %2682 = vst [vmem:[#allocation8 + $0x930] sm:$0xff] %v1913
    %2683 = vst [vmem:[#allocation8 + $0x938] sm:$0xff] %v1914
    %2684 = vst [vmem:[#allocation8 + $0x940] sm:$0xff] %v1915
    %2685 = vst [vmem:[#allocation8 + $0x948] sm:$0xff] %v1916
    %2686 = vst [vmem:[#allocation8 + $0x950] sm:$0xff] %v1917
    %2687 = vst [vmem:[#allocation8 + $0x958] sm:$0xff] %v1918
    %2688 = vst [vmem:[#allocation8 + $0x960] sm:$0xff] %v1919
    %2689 = vst [vmem:[#allocation8 + $0x968] sm:$0xff] %v1920
    %2690 = vst [vmem:[#allocation8 + $0x970] sm:$0xff] %v1921
    %2691 = vst [vmem:[#allocation8 + $0x978] sm:$0xff] %v1922
    %2692 = vst [vmem:[#allocation8 + $0x980] sm:$0xff] %v1923
    %2693 = vst [vmem:[#allocation8 + $0x988] sm:$0xff] %v1924
    %2694 = vst [vmem:[#allocation8 + $0x990] sm:$0xff] %v1925
    %2695 = vst [vmem:[#allocation8 + $0x998] sm:$0xff] %v1926
    %2696 = vst [vmem:[#allocation8 + $0x9a0] sm:$0xff] %v1927
    %2697 = vst [vmem:[#allocation8 + $0x9a8] sm:$0xff] %v1928
    %2698 = vst [vmem:[#allocation8 + $0x9b0] sm:$0xff] %v1929
    %2699 = vst [vmem:[#allocation8 + $0x9b8] sm:$0xff] %v1930
    %2700 = vst [vmem:[#allocation8 + $0x9c0] sm:$0xff] %v1931
    %2701 = vst [vmem:[#allocation8 + $0x9c8] sm:$0xff] %v1932
    %2702 = vst [vmem:[#allocation8 + $0x9d0] sm:$0xff] %v1933
    %2703 = vst [vmem:[#allocation8 + $0x9d8] sm:$0xff] %v1934
    %2704 = vst [vmem:[#allocation8 + $0x9e0] sm:$0xff] %v1935
    %2705 = vst [vmem:[#allocation8 + $0x9e8] sm:$0xff] %v1936
    %2706 = vst [vmem:[#allocation8 + $0x9f0] sm:$0xff] %v1937
    %2707 = vst [vmem:[#allocation8 + $0x9f8] sm:$0xff] %v1938
    %2708 = vst [vmem:[#allocation8 + $0xa00] sm:$0xff] %v1939
    %2709 = vst [vmem:[#allocation8 + $0xa08] sm:$0xff] %v1940
    %2710 = vst [vmem:[#allocation8 + $0xa10] sm:$0xff] %v1941
    %2711 = vst [vmem:[#allocation8 + $0xa18] sm:$0xff] %v1942
    %2712 = vst [vmem:[#allocation8 + $0xa20] sm:$0xff] %v1943
    %2713 = vst [vmem:[#allocation8 + $0xa28] sm:$0xff] %v1944
    %2714 = vst [vmem:[#allocation8 + $0xa30] sm:$0xff] %v1945
    %2715 = vst [vmem:[#allocation8 + $0xa38] sm:$0xff] %v1946
    %2716 = vst [vmem:[#allocation8 + $0xa40] sm:$0xff] %v1947
    %2717 = vst [vmem:[#allocation8 + $0xa48] sm:$0xff] %v1948
    %2718 = vst [vmem:[#allocation8 + $0xa50] sm:$0xff] %v1949
    %2719 = vst [vmem:[#allocation8 + $0xa58] sm:$0xff] %v1950
    %2720 = vst [vmem:[#allocation8 + $0xa60] sm:$0xff] %v1951
    %2721 = vst [vmem:[#allocation8 + $0xa68] sm:$0xff] %v1952
    %2722 = vst [vmem:[#allocation8 + $0xa70] sm:$0xff] %v1953
    %2723 = vst [vmem:[#allocation8 + $0xa78] sm:$0xff] %v1954
    %2724 = vst [vmem:[#allocation8 + $0xa80] sm:$0xff] %v1955
    %2725 = vst [vmem:[#allocation8 + $0xa88] sm:$0xff] %v1956
    %2726 = vst [vmem:[#allocation8 + $0xa90] sm:$0xff] %v1957
    %2727 = vst [vmem:[#allocation8 + $0xa98] sm:$0xff] %v1958
    %2728 = vst [vmem:[#allocation8 + $0xaa0] sm:$0xff] %v1959
    %2729 = vst [vmem:[#allocation8 + $0xaa8] sm:$0xff] %v1960
    %2730 = vst [vmem:[#allocation8 + $0xab0] sm:$0xff] %v1961
    %2731 = vst [vmem:[#allocation8 + $0xab8] sm:$0xff] %v1962
    %2732 = vst [vmem:[#allocation8 + $0xac0] sm:$0xff] %v1963
    %2733 = vst [vmem:[#allocation8 + $0xac8] sm:$0xff] %v1964
    %2734 = vst [vmem:[#allocation8 + $0xad0] sm:$0xff] %v1965
    %2735 = vst [vmem:[#allocation8 + $0xad8] sm:$0xff] %v1966
    %2736 = vst [vmem:[#allocation8 + $0xae0] sm:$0xff] %v1967
    %2737 = vst [vmem:[#allocation8 + $0xae8] sm:$0xff] %v1968
    %2738 = vst [vmem:[#allocation8 + $0xaf0] sm:$0xff] %v1969
    %2739 = vst [vmem:[#allocation8 + $0xaf8] sm:$0xff] %v1970
    %2740 = vst [vmem:[#allocation8 + $0xb00] sm:$0xff] %v1971
    %2741 = vst [vmem:[#allocation8 + $0xb08] sm:$0xff] %v1972
    %2742 = vst [vmem:[#allocation8 + $0xb10] sm:$0xff] %v1973
    %2743 = vst [vmem:[#allocation8 + $0xb18] sm:$0xff] %v1974
    %2744 = vst [vmem:[#allocation8 + $0xb20] sm:$0xff] %v1975
    %2745 = vst [vmem:[#allocation8 + $0xb28] sm:$0xff] %v1976
    %2746 = vst [vmem:[#allocation8 + $0xb30] sm:$0xff] %v1977
    %2747 = vst [vmem:[#allocation8 + $0xb38] sm:$0xff] %v1978
    %2748 = vst [vmem:[#allocation8 + $0xb40] sm:$0xff] %v1979
    %2749 = vst [vmem:[#allocation8 + $0xb48] sm:$0xff] %v1980
    %2750 = vst [vmem:[#allocation8 + $0xb50] sm:$0xff] %v1981
    %2751 = vst [vmem:[#allocation8 + $0xb58] sm:$0xff] %v1982
    %2752 = vst [vmem:[#allocation8 + $0xb60] sm:$0xff] %v1983
    %2753 = vst [vmem:[#allocation8 + $0xb68] sm:$0xff] %v1984
    %2754 = vst [vmem:[#allocation8 + $0xb70] sm:$0xff] %v1985
    %2755 = vst [vmem:[#allocation8 + $0xb78] sm:$0xff] %v1986
    %2756 = vst [vmem:[#allocation8 + $0xb80] sm:$0xff] %v1987
    %2757 = vst [vmem:[#allocation8 + $0xb88] sm:$0xff] %v1988
    %2758 = vst [vmem:[#allocation8 + $0xb90] sm:$0xff] %v1989
    %2759 = vst [vmem:[#allocation8 + $0xb98] sm:$0xff] %v1990
    %2760 = vst [vmem:[#allocation8 + $0xba0] sm:$0xff] %v1991
    %2761 = vst [vmem:[#allocation8 + $0xba8] sm:$0xff] %v1992
    %2762 = vst [vmem:[#allocation8 + $0xbb0] sm:$0xff] %v1993
    %2763 = vst [vmem:[#allocation8 + $0xbb8] sm:$0xff] %v1994
    %2764 = vst [vmem:[#allocation8 + $0xbc0] sm:$0xff] %v1995
    %2765 = vst [vmem:[#allocation8 + $0xbc8] sm:$0xff] %v1996
    %2766 = vst [vmem:[#allocation8 + $0xbd0] sm:$0xff] %v1997
    %2767 = vst [vmem:[#allocation8 + $0xbd8] sm:$0xff] %v1998
    %2768 = vst [vmem:[#allocation8 + $0xbe0] sm:$0xff] %v1999
    %2769 = vst [vmem:[#allocation8 + $0xbe8] sm:$0xff] %v2000
    %2770 = vst [vmem:[#allocation8 + $0xbf0] sm:$0xff] %v2001
    %2771 = vst [vmem:[#allocation8 + $0xbf8] sm:$0xff] %v2002
    %2772 = vst [vmem:[#allocation8 + $0xc00] sm:$0xff] %v2003
    %2773 = vst [vmem:[#allocation8 + $0xc08] sm:$0xff] %v2004
    %2774 = vst [vmem:[#allocation8 + $0xc10] sm:$0xff] %v2005
    %2775 = vst [vmem:[#allocation8 + $0xc18] sm:$0xff] %v2006
    %2776 = vst [vmem:[#allocation8 + $0xc20] sm:$0xff] %v2007
    %2777 = vst [vmem:[#allocation8 + $0xc28] sm:$0xff] %v2008
    %2778 = vst [vmem:[#allocation8 + $0xc30] sm:$0xff] %v2009
    %2779 = vst [vmem:[#allocation8 + $0xc38] sm:$0xff] %v2010
    %2780 = vst [vmem:[#allocation8 + $0xc40] sm:$0xff] %v2011
    %2781 = vst [vmem:[#allocation8 + $0xc48] sm:$0xff] %v2012
    %2782 = vst [vmem:[#allocation8 + $0xc50] sm:$0xff] %v2013
    %2783 = vst [vmem:[#allocation8 + $0xc58] sm:$0xff] %v2014
    %2784 = vst [vmem:[#allocation8 + $0xc60] sm:$0xff] %v2015
    %2785 = vst [vmem:[#allocation8 + $0xc68] sm:$0xff] %v2016
    %2786 = vst [vmem:[#allocation8 + $0xc70] sm:$0xff] %v2017
    %2787 = vst [vmem:[#allocation8 + $0xc78] sm:$0xff] %v2018
    %2788 = vst [vmem:[#allocation8 + $0xc80] sm:$0xff] %v2019
    %2789 = vst [vmem:[#allocation8 + $0xc88] sm:$0xff] %v2020
    %2790 = vst [vmem:[#allocation8 + $0xc90] sm:$0xff] %v2021
    %2791 = vst [vmem:[#allocation8 + $0xc98] sm:$0xff] %v2022
    %2792 = vst [vmem:[#allocation8 + $0xca0] sm:$0xff] %v2023
    %2793 = vst [vmem:[#allocation8 + $0xca8] sm:$0xff] %v2024
    %2794 = vst [vmem:[#allocation8 + $0xcb0] sm:$0xff] %v2025
    %2795 = vst [vmem:[#allocation8 + $0xcb8] sm:$0xff] %v2026
    %2796 = vst [vmem:[#allocation8 + $0xcc0] sm:$0xff] %v2027
    %2797 = vst [vmem:[#allocation8 + $0xcc8] sm:$0xff] %v2028
    %2798 = vst [vmem:[#allocation8 + $0xcd0] sm:$0xff] %v2029
    %2799 = vst [vmem:[#allocation8 + $0xcd8] sm:$0xff] %v2030
    %2800 = vst [vmem:[#allocation8 + $0xce0] sm:$0xff] %v2031
    %2801 = vst [vmem:[#allocation8 + $0xce8] sm:$0xff] %v2032
    %2802 = vst [vmem:[#allocation8 + $0xcf0] sm:$0xff] %v2033
    %2803 = vst [vmem:[#allocation8 + $0xcf8] sm:$0xff] %v2034
    %2804 = vst [vmem:[#allocation8 + $0xd00] sm:$0xff] %v2035
    %2805 = vst [vmem:[#allocation8 + $0xd08] sm:$0xff] %v2036
    %2806 = vst [vmem:[#allocation8 + $0xd10] sm:$0xff] %v2037
    %2807 = vst [vmem:[#allocation8 + $0xd18] sm:$0xff] %v2038
    %2808 = vst [vmem:[#allocation8 + $0xd20] sm:$0xff] %v2039
    %2809 = vst [vmem:[#allocation8 + $0xd28] sm:$0xff] %v2040
    %2810 = vst [vmem:[#allocation8 + $0xd30] sm:$0xff] %v2041
    %2811 = vst [vmem:[#allocation8 + $0xd38] sm:$0xff] %v2042
    %2812 = vst [vmem:[#allocation8 + $0xd40] sm:$0xff] %v2043
    %2813 = vst [vmem:[#allocation8 + $0xd48] sm:$0xff] %v2044
    %2814 = vst [vmem:[#allocation8 + $0xd50] sm:$0xff] %v2045
    %2815 = vst [vmem:[#allocation8 + $0xd58] sm:$0xff] %v2046
    %2816 = vst [vmem:[#allocation8 + $0xd60] sm:$0xff] %v2047
    %2817 = vst [vmem:[#allocation8 + $0xd68] sm:$0xff] %v2048
    %2818 = vst [vmem:[#allocation8 + $0xd70] sm:$0xff] %v2049
    %2819 = vst [vmem:[#allocation8 + $0xd78] sm:$0xff] %v2050
    %2820 = vst [vmem:[#allocation8 + $0xd80] sm:$0xff] %v2051
    %2821 = vst [vmem:[#allocation8 + $0xd88] sm:$0xff] %v2052
    %2822 = vst [vmem:[#allocation8 + $0xd90] sm:$0xff] %v2053
    %2823 = vst [vmem:[#allocation8 + $0xd98] sm:$0xff] %v2054
    %2824 = vst [vmem:[#allocation8 + $0xda0] sm:$0xff] %v2055
    %2825 = vst [vmem:[#allocation8 + $0xda8] sm:$0xff] %v2056
    %2826 = vst [vmem:[#allocation8 + $0xdb0] sm:$0xff] %v2057
    %2827 = vst [vmem:[#allocation8 + $0xdb8] sm:$0xff] %v2058
    %2828 = vst [vmem:[#allocation8 + $0xdc0] sm:$0xff] %v2059
    %2829 = vst [vmem:[#allocation8 + $0xdc8] sm:$0xff] %v2060
    %2830 = vst [vmem:[#allocation8 + $0xdd0] sm:$0xff] %v2061
    %2831 = vst [vmem:[#allocation8 + $0xdd8] sm:$0xff] %v2062
    %2832 = vst [vmem:[#allocation8 + $0xde0] sm:$0xff] %v2063
    %2833 = vst [vmem:[#allocation8 + $0xde8] sm:$0xff] %v2064
    %2834 = vst [vmem:[#allocation8 + $0xdf0] sm:$0xff] %v2065
    %2835 = vst [vmem:[#allocation8 + $0xdf8] sm:$0xff] %v2066
    %2836 = vst [vmem:[#allocation8 + $0xe00] sm:$0xff] %v2067
    %2837 = vst [vmem:[#allocation8 + $0xe08] sm:$0xff] %v2068
    %2838 = vst [vmem:[#allocation8 + $0xe10] sm:$0xff] %v2069
    %2839 = vst [vmem:[#allocation8 + $0xe18] sm:$0xff] %v2070
    %2840 = vst [vmem:[#allocation8 + $0xe20] sm:$0xff] %v2071
    %2841 = vst [vmem:[#allocation8 + $0xe28] sm:$0xff] %v2072
    %2842 = vst [vmem:[#allocation8 + $0xe30] sm:$0xff] %v2073
    %2843 = vst [vmem:[#allocation8 + $0xe38] sm:$0xff] %v2074
    %2844 = vst [vmem:[#allocation8 + $0xe40] sm:$0xff] %v2075
    %2845 = vst [vmem:[#allocation8 + $0xe48] sm:$0xff] %v2076
    %2846 = vst [vmem:[#allocation8 + $0xe50] sm:$0xff] %v2077
    %2847 = vst [vmem:[#allocation8 + $0xe58] sm:$0xff] %v2078
    %2848 = vst [vmem:[#allocation8 + $0xe60] sm:$0xff] %v2079
    %2849 = vst [vmem:[#allocation8 + $0xe68] sm:$0xff] %v2080
    %2850 = vst [vmem:[#allocation8 + $0xe70] sm:$0xff] %v2081
    %2851 = vst [vmem:[#allocation8 + $0xe78] sm:$0xff] %v2082
    %2852 = vst [vmem:[#allocation8 + $0xe80] sm:$0xff] %v2083
    %2853 = vst [vmem:[#allocation8 + $0xe88] sm:$0xff] %v2084
    %2854 = vst [vmem:[#allocation8 + $0xe90] sm:$0xff] %v2085
    %2855 = vst [vmem:[#allocation8 + $0xe98] sm:$0xff] %v2086
    %2856 = vst [vmem:[#allocation8 + $0xea0] sm:$0xff] %v2087
    %2857 = vst [vmem:[#allocation8 + $0xea8] sm:$0xff] %v2088
    %2858 = vst [vmem:[#allocation8 + $0xeb0] sm:$0xff] %v2089
    %2859 = vst [vmem:[#allocation8 + $0xeb8] sm:$0xff] %v2090
    %2860 = vst [vmem:[#allocation8 + $0xec0] sm:$0xff] %v2091
    %2861 = vst [vmem:[#allocation8 + $0xec8] sm:$0xff] %v2092
    %2862 = vst [vmem:[#allocation8 + $0xed0] sm:$0xff] %v2093
    %2863 = vst [vmem:[#allocation8 + $0xed8] sm:$0xff] %v2094
    %2864 = vst [vmem:[#allocation8 + $0xee0] sm:$0xff] %v2095
    %2865 = vst [vmem:[#allocation8 + $0xee8] sm:$0xff] %v2096
    %2866 = vst [vmem:[#allocation8 + $0xef0] sm:$0xff] %v2097
    %2867 = vst [vmem:[#allocation8 + $0xef8] sm:$0xff] %v2098
    %2868 = vst [vmem:[#allocation8 + $0xf00] sm:$0xff] %v2099
    %2869 = vst [vmem:[#allocation8 + $0xf08] sm:$0xff] %v2100
    %2870 = vst [vmem:[#allocation8 + $0xf10] sm:$0xff] %v2101
    %2871 = vst [vmem:[#allocation8 + $0xf18] sm:$0xff] %v2102
    %2872 = vst [vmem:[#allocation8 + $0xf20] sm:$0xff] %v2103
    %2873 = vst [vmem:[#allocation8 + $0xf28] sm:$0xff] %v2104
    %2874 = vst [vmem:[#allocation8 + $0xf30] sm:$0xff] %v2105
    %2875 = vst [vmem:[#allocation8 + $0xf38] sm:$0xff] %v2106
    %2876 = vst [vmem:[#allocation8 + $0xf40] sm:$0xff] %v2107
    %2877 = vst [vmem:[#allocation8 + $0xf48] sm:$0xff] %v2108
    %2878 = vst [vmem:[#allocation8 + $0xf50] sm:$0xff] %v2109
    %2879 = vst [vmem:[#allocation8 + $0xf58] sm:$0xff] %v2110
    %2880 = vst [vmem:[#allocation8 + $0xf60] sm:$0xff] %v2111
    %2881 = vst [vmem:[#allocation8 + $0xf68] sm:$0xff] %v2112
    %2882 = vst [vmem:[#allocation8 + $0xf70] sm:$0xff] %v2113
    %2883 = vst [vmem:[#allocation8 + $0xf78] sm:$0xff] %v2114
    %2884 = vst [vmem:[#allocation8 + $0xf80] sm:$0xff] %v2115
    %2885 = vst [vmem:[#allocation8 + $0xf88] sm:$0xff] %v2116
    %2886 = vst [vmem:[#allocation8 + $0xf90] sm:$0xff] %v2117
    %2887 = vst [vmem:[#allocation8 + $0xf98] sm:$0xff] %v2118
    %2888 = vst [vmem:[#allocation8 + $0xfa0] sm:$0xff] %v2119
    %2889 = vst [vmem:[#allocation8 + $0xfa8] sm:$0xff] %v2120
    %2890 = vst [vmem:[#allocation8 + $0xfb0] sm:$0xff] %v2121
    %2891 = vst [vmem:[#allocation8 + $0xfb8] sm:$0xff] %v2122
    %2892 = vst [vmem:[#allocation8 + $0xfc0] sm:$0xff] %v2123
    %2893 = vst [vmem:[#allocation8 + $0xfc8] sm:$0xff] %v2124
    %2894 = vst [vmem:[#allocation8 + $0xfd0] sm:$0xff] %v2125
    %2895 = vst [vmem:[#allocation8 + $0xfd8] sm:$0xff] %v2126
    %2896 = vst [vmem:[#allocation8 + $0xfe0] sm:$0xff] %v2127
    %2897 = vst [vmem:[#allocation8 + $0xfe8] sm:$0xff] %v2128
    %2898 = vst [vmem:[#allocation8 + $0xff0] sm:$0xff] %v2129
    %2899 = vst [vmem:[#allocation8 + $0xff8] sm:$0xff] %v2130
    %2900 = vst [vmem:[#allocation8 + $0x1000] sm:$0xff] %v2131
    %2901 = vst [vmem:[#allocation8 + $0x1008] sm:$0xff] %v2132
    %2902 = vst [vmem:[#allocation8 + $0x1010] sm:$0xff] %v2133
    %2903 = vst [vmem:[#allocation8 + $0x1018] sm:$0xff] %v2134
    %2904 = vst [vmem:[#allocation8 + $0x1020] sm:$0xff] %v2135
    %2905 = vst [vmem:[#allocation8 + $0x1028] sm:$0xff] %v2136
    %2906 = vst [vmem:[#allocation8 + $0x1030] sm:$0xff] %v2137
    %2907 = vst [vmem:[#allocation8 + $0x1038] sm:$0xff] %v2138
    %2908 = vst [vmem:[#allocation8 + $0x1040] sm:$0xff] %v2139
    %2909 = vst [vmem:[#allocation8 + $0x1048] sm:$0xff] %v2140
    %2910 = vst [vmem:[#allocation8 + $0x1050] sm:$0xff] %v2141
    %2911 = vst [vmem:[#allocation8 + $0x1058] sm:$0xff] %v2142
    %2912 = vst [vmem:[#allocation8 + $0x1060] sm:$0xff] %v2143
    %2913 = vst [vmem:[#allocation8 + $0x1068] sm:$0xff] %v2144
    %2914 = vst [vmem:[#allocation8 + $0x1070] sm:$0xff] %v2145
    %2915 = vst [vmem:[#allocation8 + $0x1078] sm:$0xff] %v2146
    %2916 = vst [vmem:[#allocation8 + $0x1080] sm:$0xff] %v2147
    %2917 = vst [vmem:[#allocation8 + $0x1088] sm:$0xff] %v2148
    %2918 = vst [vmem:[#allocation8 + $0x1090] sm:$0xff] %v2149
    %2919 = vst [vmem:[#allocation8 + $0x1098] sm:$0xff] %v2150
    %2920 = vst [vmem:[#allocation8 + $0x10a0] sm:$0xff] %v2151
    %2921 = vst [vmem:[#allocation8 + $0x10a8] sm:$0xff] %v2152
    %2922 = vst [vmem:[#allocation8 + $0x10b0] sm:$0xff] %v2153
    %2923 = vst [vmem:[#allocation8 + $0x10b8] sm:$0xff] %v2154
    %2924 = vst [vmem:[#allocation8 + $0x10c0] sm:$0xff] %v2155
    %2925 = vst [vmem:[#allocation8 + $0x10c8] sm:$0xff] %v2156
    %2926 = vst [vmem:[#allocation8 + $0x10d0] sm:$0xff] %v2157
    %2927 = vst [vmem:[#allocation8 + $0x10d8] sm:$0xff] %v2158
    %2928 = vst [vmem:[#allocation8 + $0x10e0] sm:$0xff] %v2159
    %2929 = vst [vmem:[#allocation8 + $0x10e8] sm:$0xff] %v2160
    %2930 = vst [vmem:[#allocation8 + $0x10f0] sm:$0xff] %v2161
    %2931 = vst [vmem:[#allocation8 + $0x10f8] sm:$0xff] %v2162
    %2932 = vst [vmem:[#allocation8 + $0x1100] sm:$0xff] %v2163
    %2933 = vst [vmem:[#allocation8 + $0x1108] sm:$0xff] %v2164
    %2934 = vst [vmem:[#allocation8 + $0x1110] sm:$0xff] %v2165
    %2935 = vst [vmem:[#allocation8 + $0x1118] sm:$0xff] %v2166
    %2936 = vst [vmem:[#allocation8 + $0x1120] sm:$0xff] %v2167
    %2937 = vst [vmem:[#allocation8 + $0x1128] sm:$0xff] %v2168
    %2938 = vst [vmem:[#allocation8 + $0x1130] sm:$0xff] %v2169
    %2939 = vst [vmem:[#allocation8 + $0x1138] sm:$0xff] %v2170
    %2940 = vst [vmem:[#allocation8 + $0x1140] sm:$0xff] %v2171
    %2941 = vst [vmem:[#allocation8 + $0x1148] sm:$0xff] %v2172
    %2942 = vst [vmem:[#allocation8 + $0x1150] sm:$0xff] %v2173
    %2943 = vst [vmem:[#allocation8 + $0x1158] sm:$0xff] %v2174
    %2944 = vst [vmem:[#allocation8 + $0x1160] sm:$0xff] %v2175
    %2945 = vst [vmem:[#allocation8 + $0x1168] sm:$0xff] %v2176
    %2946 = vst [vmem:[#allocation8 + $0x1170] sm:$0xff] %v2177
    %2947 = vst [vmem:[#allocation8 + $0x1178] sm:$0xff] %v2178
    %2948 = vst [vmem:[#allocation8 + $0x1180] sm:$0xff] %v2179
    %2949 = vst [vmem:[#allocation8 + $0x1188] sm:$0xff] %v2180
    %2950 = vst [vmem:[#allocation8 + $0x1190] sm:$0xff] %v2181
    %2951 = vst [vmem:[#allocation8 + $0x1198] sm:$0xff] %v2182
    %2952 = vst [vmem:[#allocation8 + $0x11a0] sm:$0xff] %v2183
    %2953 = vst [vmem:[#allocation8 + $0x11a8] sm:$0xff] %v2184
    %2954 = vst [vmem:[#allocation8 + $0x11b0] sm:$0xff] %v2185
    %2955 = vst [vmem:[#allocation8 + $0x11b8] sm:$0xff] %v2186
    %2956 = vst [vmem:[#allocation8 + $0x11c0] sm:$0xff] %v2187
    %2957 = vst [vmem:[#allocation8 + $0x11c8] sm:$0xff] %v2188
    %2958 = vst [vmem:[#allocation8 + $0x11d0] sm:$0xff] %v2189
    %2959 = vst [vmem:[#allocation8 + $0x11d8] sm:$0xff] %v2190
    %2960 = vst [vmem:[#allocation8 + $0x11e0] sm:$0xff] %v2191
    %2961 = vst [vmem:[#allocation8 + $0x11e8] sm:$0xff] %v2192
    %2962 = vst [vmem:[#allocation8 + $0x11f0] sm:$0xff] %v2193
    %2963 = vst [vmem:[#allocation8 + $0x11f8] sm:$0xff] %v2194
    %2964 = vst [vmem:[#allocation8 + $0x1200] sm:$0xff] %v2195
    %2965 = vst [vmem:[#allocation8 + $0x1208] sm:$0xff] %v2196
    %2966 = vst [vmem:[#allocation8 + $0x1210] sm:$0xff] %v2197
    %2967 = vst [vmem:[#allocation8 + $0x1218] sm:$0xff] %v2198
    %2968 = vst [vmem:[#allocation8 + $0x1220] sm:$0xff] %v2199
    %2969 = vst [vmem:[#allocation8 + $0x1228] sm:$0xff] %v2200
    %2970 = vst [vmem:[#allocation8 + $0x1230] sm:$0xff] %v2201
    %2971 = vst [vmem:[#allocation8 + $0x1238] sm:$0xff] %v2202
    %2972 = vst [vmem:[#allocation8 + $0x1240] sm:$0xff] %v2203
    %2973 = vst [vmem:[#allocation8 + $0x1248] sm:$0xff] %v2204
    %2974 = vst [vmem:[#allocation8 + $0x1250] sm:$0xff] %v2205
    %2975 = vst [vmem:[#allocation8 + $0x1258] sm:$0xff] %v2206
    %2976 = vst [vmem:[#allocation8 + $0x1260] sm:$0xff] %v2207
    %2977 = vst [vmem:[#allocation8 + $0x1268] sm:$0xff] %v2208
    %2978 = vst [vmem:[#allocation8 + $0x1270] sm:$0xff] %v2209
    %2979 = vst [vmem:[#allocation8 + $0x1278] sm:$0xff] %v2210
    %2980 = vst [vmem:[#allocation8 + $0x1280] sm:$0xff] %v2211
    %2981 = vst [vmem:[#allocation8 + $0x1288] sm:$0xff] %v2212
    %2982 = vst [vmem:[#allocation8 + $0x1290] sm:$0xff] %v2213
    %2983 = vst [vmem:[#allocation8 + $0x1298] sm:$0xff] %v2214
    %2984 = vst [vmem:[#allocation8 + $0x12a0] sm:$0xff] %v2215
    %2985 = vst [vmem:[#allocation8 + $0x12a8] sm:$0xff] %v2216
    %2986 = vst [vmem:[#allocation8 + $0x12b0] sm:$0xff] %v2217
    %2987 = vst [vmem:[#allocation8 + $0x12b8] sm:$0xff] %v2218
    %2988 = vst [vmem:[#allocation8 + $0x12c0] sm:$0xff] %v2219
    %2989 = vst [vmem:[#allocation8 + $0x12c8] sm:$0xff] %v2220
    %2990 = vst [vmem:[#allocation8 + $0x12d0] sm:$0xff] %v2221
    %2991 = vst [vmem:[#allocation8 + $0x12d8] sm:$0xff] %v2222
    %2992 = vst [vmem:[#allocation8 + $0x12e0] sm:$0xff] %v2223
    %2993 = vst [vmem:[#allocation8 + $0x12e8] sm:$0xff] %v2224
    %2994 = vst [vmem:[#allocation8 + $0x12f0] sm:$0xff] %v2225
    %2995 = vst [vmem:[#allocation8 + $0x12f8] sm:$0xff] %v2226
    %2996 = vst [vmem:[#allocation8 + $0x1300] sm:$0xff] %v2227
    %2997 = vst [vmem:[#allocation8 + $0x1308] sm:$0xff] %v2228
    %2998 = vst [vmem:[#allocation8 + $0x1310] sm:$0xff] %v2229
    %2999 = vst [vmem:[#allocation8 + $0x1318] sm:$0xff] %v2230
    %3000 = vst [vmem:[#allocation8 + $0x1320] sm:$0xff] %v2231
    %3001 = vst [vmem:[#allocation8 + $0x1328] sm:$0xff] %v2232
    %3002 = vst [vmem:[#allocation8 + $0x1330] sm:$0xff] %v2233
    %3003 = vst [vmem:[#allocation8 + $0x1338] sm:$0xff] %v2234
    %3004 = vst [vmem:[#allocation8 + $0x1340] sm:$0xff] %v2235
    %3005 = vst [vmem:[#allocation8 + $0x1348] sm:$0xff] %v2236
    %3006 = vst [vmem:[#allocation8 + $0x1350] sm:$0xff] %v2237
    %3007 = vst [vmem:[#allocation8 + $0x1358] sm:$0xff] %v2238
    %3008 = vst [vmem:[#allocation8 + $0x1360] sm:$0xff] %v2239
    %3009 = vst [vmem:[#allocation8 + $0x1368] sm:$0xff] %v2240
    %3010 = vst [vmem:[#allocation8 + $0x1370] sm:$0xff] %v2241
    %3011 = vst [vmem:[#allocation8 + $0x1378] sm:$0xff] %v2242
    %3012 = vst [vmem:[#allocation8 + $0x1380] sm:$0xff] %v2243
    %3013 = vst [vmem:[#allocation8 + $0x1388] sm:$0xff] %v2244
    %3014 = vst [vmem:[#allocation8 + $0x1390] sm:$0xff] %v2245
    %3015 = vst [vmem:[#allocation8 + $0x1398] sm:$0xff] %v2246
    %3016 = vst [vmem:[#allocation8 + $0x13a0] sm:$0xff] %v2247
    %3017 = vst [vmem:[#allocation8 + $0x13a8] sm:$0xff] %v2248
    %3018 = vst [vmem:[#allocation8 + $0x13b0] sm:$0xff] %v2249
    %3019 = vst [vmem:[#allocation8 + $0x13b8] sm:$0xff] %v2250
    %3020 = vst [vmem:[#allocation8 + $0x13c0] sm:$0xff] %v2251
    %3021 = vst [vmem:[#allocation8 + $0x13c8] sm:$0xff] %v2252
    %3022 = vst [vmem:[#allocation8 + $0x13d0] sm:$0xff] %v2253
    %3023 = vst [vmem:[#allocation8 + $0x13d8] sm:$0xff] %v2254
    %3024 = vst [vmem:[#allocation8 + $0x13e0] sm:$0xff] %v2255
    %3025 = vst [vmem:[#allocation8 + $0x13e8] sm:$0xff] %v2256
    %3026 = vst [vmem:[#allocation8 + $0x13f0] sm:$0xff] %v2257
    %3027 = vst [vmem:[#allocation8 + $0x13f8] sm:$0xff] %v2258
    %3028 = vst [vmem:[#allocation8 + $0x1400] sm:$0xff] %v2259
    %3029 = vst [vmem:[#allocation8 + $0x1408] sm:$0xff] %v2260
    %3030 = vst [vmem:[#allocation8 + $0x1410] sm:$0xff] %v2261
    %3031 = vst [vmem:[#allocation8 + $0x1418] sm:$0xff] %v2262
    %3032 = vst [vmem:[#allocation8 + $0x1420] sm:$0xff] %v2263
    %3033 = vst [vmem:[#allocation8 + $0x1428] sm:$0xff] %v2264
    %3034 = vst [vmem:[#allocation8 + $0x1430] sm:$0xff] %v2265
    %3035 = vst [vmem:[#allocation8 + $0x1438] sm:$0xff] %v2266
    %3036 = vst [vmem:[#allocation8 + $0x1440] sm:$0xff] %v2267
    %3037 = vst [vmem:[#allocation8 + $0x1448] sm:$0xff] %v2268
    %3038 = vst [vmem:[#allocation8 + $0x1450] sm:$0xff] %v2269
    %3039 = vst [vmem:[#allocation8 + $0x1458] sm:$0xff] %v2270
    %3040 = vst [vmem:[#allocation8 + $0x1460] sm:$0xff] %v2271
    %3041 = vst [vmem:[#allocation8 + $0x1468] sm:$0xff] %v2272
    %3042 = vst [vmem:[#allocation8 + $0x1470] sm:$0xff] %v2273
    %3043 = vst [vmem:[#allocation8 + $0x1478] sm:$0xff] %v2274
    %3044 = vst [vmem:[#allocation8 + $0x1480] sm:$0xff] %v2275
    %3045 = vst [vmem:[#allocation8 + $0x1488] sm:$0xff] %v2276
    %3046 = vst [vmem:[#allocation8 + $0x1490] sm:$0xff] %v2277
    %3047 = vst [vmem:[#allocation8 + $0x1498] sm:$0xff] %v2278
    %3048 = vst [vmem:[#allocation8 + $0x14a0] sm:$0xff] %v2279
    %3049 = vst [vmem:[#allocation8 + $0x14a8] sm:$0xff] %v2280
    %3050 = vst [vmem:[#allocation8 + $0x14b0] sm:$0xff] %v2281
    %3051 = vst [vmem:[#allocation8 + $0x14b8] sm:$0xff] %v2282
    %3052 = vst [vmem:[#allocation8 + $0x14c0] sm:$0xff] %v2283
    %3053 = vst [vmem:[#allocation8 + $0x14c8] sm:$0xff] %v2284
    %3054 = vst [vmem:[#allocation8 + $0x14d0] sm:$0xff] %v2285
    %3055 = vst [vmem:[#allocation8 + $0x14d8] sm:$0xff] %v2286
    %3056 = vst [vmem:[#allocation8 + $0x14e0] sm:$0xff] %v2287
    %3057 = vst [vmem:[#allocation8 + $0x14e8] sm:$0xff] %v2288
    %3058 = vst [vmem:[#allocation8 + $0x14f0] sm:$0xff] %v2289
    %3059 = vst [vmem:[#allocation8 + $0x14f8] sm:$0xff] %v2290
    %3060 = vst [vmem:[#allocation8 + $0x1500] sm:$0xff] %v2291
    %3061 = vst [vmem:[#allocation8 + $0x1508] sm:$0xff] %v2292
    %3062 = vst [vmem:[#allocation8 + $0x1510] sm:$0xff] %v2293
    %3063 = vst [vmem:[#allocation8 + $0x1518] sm:$0xff] %v2294
    %3064 = vst [vmem:[#allocation8 + $0x1520] sm:$0xff] %v2295
    %3065 = vst [vmem:[#allocation8 + $0x1528] sm:$0xff] %v2296
    %3066 = vst [vmem:[#allocation8 + $0x1530] sm:$0xff] %v2297
    %3067 = vst [vmem:[#allocation8 + $0x1538] sm:$0xff] %v2298
    %3068 = vst [vmem:[#allocation8 + $0x1540] sm:$0xff] %v2299
    %3069 = vst [vmem:[#allocation8 + $0x1548] sm:$0xff] %v2300
    %3070 = vst [vmem:[#allocation8 + $0x1550] sm:$0xff] %v2301
    %3071 = vst [vmem:[#allocation8 + $0x1558] sm:$0xff] %v2302
    %3072 = vst [vmem:[#allocation8 + $0x1560] sm:$0xff] %v2303
    %3073 = vst [vmem:[#allocation8 + $0x1568] sm:$0xff] %v2304
    %3074 = vst [vmem:[#allocation8 + $0x1570] sm:$0xff] %v2305
    %3075 = vst [vmem:[#allocation8 + $0x1578] sm:$0xff] %v2306
    %3076 = vst [vmem:[#allocation8 + $0x1580] sm:$0xff] %v2307
    %3077 = vst [vmem:[#allocation8 + $0x1588] sm:$0xff] %v2308
    %3078 = vst [vmem:[#allocation8 + $0x1590] sm:$0xff] %v2309
    %3079 = vst [vmem:[#allocation8 + $0x1598] sm:$0xff] %v2310
    %3080 = vst [vmem:[#allocation8 + $0x15a0] sm:$0xff] %v2311
    %3081 = vst [vmem:[#allocation8 + $0x15a8] sm:$0xff] %v2312
    %3082 = vst [vmem:[#allocation8 + $0x15b0] sm:$0xff] %v2313
    %3083 = vst [vmem:[#allocation8 + $0x15b8] sm:$0xff] %v2314
    %3084 = vst [vmem:[#allocation8 + $0x15c0] sm:$0xff] %v2315
    %3085 = vst [vmem:[#allocation8 + $0x15c8] sm:$0xff] %v2316
    %3086 = vst [vmem:[#allocation8 + $0x15d0] sm:$0xff] %v2317
    %3087 = vst [vmem:[#allocation8 + $0x15d8] sm:$0xff] %v2318
    %3088 = vst [vmem:[#allocation8 + $0x15e0] sm:$0xff] %v2319
    %3089 = vst [vmem:[#allocation8 + $0x15e8] sm:$0xff] %v2320
    %3090 = vst [vmem:[#allocation8 + $0x15f0] sm:$0xff] %v2321
    %3091 = vst [vmem:[#allocation8 + $0x15f8] sm:$0xff] %v2322
    %3092 = vst [vmem:[#allocation8 + $0x1600] sm:$0xff] %v2323
    %3093 = vst [vmem:[#allocation8 + $0x1608] sm:$0xff] %v2324
    %3094 = vst [vmem:[#allocation8 + $0x1610] sm:$0xff] %v2325
    %3095 = vst [vmem:[#allocation8 + $0x1618] sm:$0xff] %v2326
    %3096 = vst [vmem:[#allocation8 + $0x1620] sm:$0xff] %v2327
    %3097 = vst [vmem:[#allocation8 + $0x1628] sm:$0xff] %v2328
    %3098 = vst [vmem:[#allocation8 + $0x1630] sm:$0xff] %v2329
    %3099 = vst [vmem:[#allocation8 + $0x1638] sm:$0xff] %v2330
    %3100 = vst [vmem:[#allocation8 + $0x1640] sm:$0xff] %v2331
    %3101 = vst [vmem:[#allocation8 + $0x1648] sm:$0xff] %v2332
    %3102 = vst [vmem:[#allocation8 + $0x1650] sm:$0xff] %v2333
    %3103 = vst [vmem:[#allocation8 + $0x1658] sm:$0xff] %v2334
    %3104 = vst [vmem:[#allocation8 + $0x1660] sm:$0xff] %v2335
    %3105 = vst [vmem:[#allocation8 + $0x1668] sm:$0xff] %v2336
    %3106 = vst [vmem:[#allocation8 + $0x1670] sm:$0xff] %v2337
    %3107 = vst [vmem:[#allocation8 + $0x1678] sm:$0xff] %v2338
    %3108 = vst [vmem:[#allocation8 + $0x1680] sm:$0xff] %v2339
    %3109 = vst [vmem:[#allocation8 + $0x1688] sm:$0xff] %v2340
    %3110 = vst [vmem:[#allocation8 + $0x1690] sm:$0xff] %v2341
    %3111 = vst [vmem:[#allocation8 + $0x1698] sm:$0xff] %v2342
    %3112 = vst [vmem:[#allocation8 + $0x16a0] sm:$0xff] %v2343
    %3113 = vst [vmem:[#allocation8 + $0x16a8] sm:$0xff] %v2344
    %3114 = vst [vmem:[#allocation8 + $0x16b0] sm:$0xff] %v2345
    %3115 = vst [vmem:[#allocation8 + $0x16b8] sm:$0xff] %v2346
    %3116 = vst [vmem:[#allocation8 + $0x16c0] sm:$0xff] %v2347
    %3117 = vst [vmem:[#allocation8 + $0x16c8] sm:$0xff] %v2348
    %3118 = vst [vmem:[#allocation8 + $0x16d0] sm:$0xff] %v2349
    %3119 = vst [vmem:[#allocation8 + $0x16d8] sm:$0xff] %v2350
    %3120 = vst [vmem:[#allocation8 + $0x16e0] sm:$0xff] %v2351
    %3121 = vst [vmem:[#allocation8 + $0x16e8] sm:$0xff] %v2352
    %3122 = vst [vmem:[#allocation8 + $0x16f0] sm:$0xff] %v2353
    %3123 = vst [vmem:[#allocation8 + $0x16f8] sm:$0xff] %v2354
    %3124 = vst [vmem:[#allocation8 + $0x1700] sm:$0xff] %v2355
    %3125 = vst [vmem:[#allocation8 + $0x1708] sm:$0xff] %v2356
    %3126 = vst [vmem:[#allocation8 + $0x1710] sm:$0xff] %v2357
    %3127 = vst [vmem:[#allocation8 + $0x1718] sm:$0xff] %v2358
    %3128 = vst [vmem:[#allocation8 + $0x1720] sm:$0xff] %v2359
    %3129 = vst [vmem:[#allocation8 + $0x1728] sm:$0xff] %v2360
    %3130 = vst [vmem:[#allocation8 + $0x1730] sm:$0xff] %v2361
    %3131 = vst [vmem:[#allocation8 + $0x1738] sm:$0xff] %v2362
    %3132 = vst [vmem:[#allocation8 + $0x1740] sm:$0xff] %v2363
    %3133 = vst [vmem:[#allocation8 + $0x1748] sm:$0xff] %v2364
    %3134 = vst [vmem:[#allocation8 + $0x1750] sm:$0xff] %v2365
    %3135 = vst [vmem:[#allocation8 + $0x1758] sm:$0xff] %v2366
    %3136 = vst [vmem:[#allocation8 + $0x1760] sm:$0xff] %v2367
    %3137 = vst [vmem:[#allocation8 + $0x1768] sm:$0xff] %v2368
    %3138 = vst [vmem:[#allocation8 + $0x1770] sm:$0xff] %v2369
    %3139 = vst [vmem:[#allocation8 + $0x1778] sm:$0xff] %v2370
    %3140 = vst [vmem:[#allocation8 + $0x1780] sm:$0xff] %v2371
    %3141 = vst [vmem:[#allocation8 + $0x1788] sm:$0xff] %v2372
    %3142 = vst [vmem:[#allocation8 + $0x1790] sm:$0xff] %v2373
    %3143 = vst [vmem:[#allocation8 + $0x1798] sm:$0xff] %v2374
    %3144 = vst [vmem:[#allocation8 + $0x17a0] sm:$0xff] %v2375
    %3145 = vst [vmem:[#allocation8 + $0x17a8] sm:$0xff] %v2376
    %3146 = vst [vmem:[#allocation8 + $0x17b0] sm:$0xff] %v2377
    %3147 = vst [vmem:[#allocation8 + $0x17b8] sm:$0xff] %v2378
    %3148 = vst [vmem:[#allocation8 + $0x17c0] sm:$0xff] %v2379
    %3149 = vst [vmem:[#allocation8 + $0x17c8] sm:$0xff] %v2380
    %3150 = vst [vmem:[#allocation8 + $0x17d0] sm:$0xff] %v2381
    %3151 = vst [vmem:[#allocation8 + $0x17d8] sm:$0xff] %v2382
    %3152 = vst [vmem:[#allocation8 + $0x17e0] sm:$0xff] %v2383
    %3153 = vst [vmem:[#allocation8 + $0x17e8] sm:$0xff] %v2384
    %3154 = vst [vmem:[#allocation8 + $0x17f0] sm:$0xff] %v2385
    %3155 = vst [vmem:[#allocation8 + $0x17f8] sm:$0xff] %v2386
    %3156 = vst [vmem:[#allocation8 + $0x1800] sm:$0xff] %v2387
    // Predicated region
    $region26: #{tpu_custom_call.1} parent=1 // pred_check
      _
    $region27: #{tpu_custom_call.1} parent=1 // pred_check_branch
      %3158 = sbr.rel (0) target = $region29
    $region28: #{tpu_custom_call.1} parent=1 // pred_region
      %3160 = vsyncadd [#allocation4], 0
      %s3161 = sshll.u32 [#allocation8], 4
      %s3162 = int_to_ptr.vmem [resolvable:$true] %s3161
      %s3163 = sshll.u32 %s3, 4
      %s3164 = int_to_ptr.hbm [resolvable:$true] %s3163
      %3169 = dma.vmem_to_hbm [thread:$0]  %s3162, 98432, %s3164, [#allocation4], 128, 128, 8
    $region29: #{tpu_custom_call.1} parent=1 // pred_fallthru
      _
    // Predicated region
    $region30: #{tpu_custom_call.1} parent=1 // pred_check
      _
    $region31: #{tpu_custom_call.1} parent=1 // pred_check_branch
      %3171 = sbr.rel (0) target = $region33
    $region32: #{tpu_custom_call.1} parent=1 // pred_region
      %3173 = dma.done [#allocation4], 98432
    $region33: #{tpu_custom_call.1} parent=1 // pred_fallthru
      _
    %3174 = vsyncpa [#allocation3], 1
    %3175 = vsyncpa [#allocation6], 1
    %3176 = vsyncpa [#allocation4], 1

</llo_original>
